<compile_context>
chip_gen: v7x
topology: tpu7x:2x2x1
jax: 0.10.0
libtpu: 0.0.40
codegen_flags: <defaults>
</compile_context>

<pallas_src>
import jax
import jax.numpy as jnp
import numpy as np
from jax.experimental import pallas as pl
from jax.experimental.pallas import tpu as pltpu

EPS = 1e-3       # BatchNorm eps=0.001 in the module
N_C2_TILES = 2   # C2=864 -> 2 tiles of 432 channels (matches v7x's 2 TCs)


def _fused_kernel(x_ref, scale_ref, w1_ref, g1_ref, b1_ref,
                  w2_ref, g2_ref, b2_ref, o_ref):
    hw = x_ref.shape[1]
    inv_hw = 1.0 / hw          # divide by the logical HW extent (196), not padding

    # x240 = x239 * x234 : per-input-channel scale broadcast over spatial lanes
    x = x_ref[...] * scale_ref[...]                                   # (Cin, HW) f32

    # conv2d77 (1x1) == channel matmul: y1ᵀ = W1 @ x   (bf16 MXU, f32 accumulate)
    y1 = jnp.dot(w1_ref[...].astype(jnp.bfloat16), x.astype(jnp.bfloat16),
                 preferred_element_type=jnp.float32)                  # (C1, HW)

    # batchnorm2d45 (training mode, biased variance) folded to one per-channel
    # FMA; one-pass statistics: var = E[y^2] - mean^2.
    m1 = jnp.sum(y1, axis=1, keepdims=True) * inv_hw                  # (C1, 1)
    v1 = jnp.sum(y1 * y1, axis=1, keepdims=True) * inv_hw - m1 * m1
    a1 = g1_ref[...] * jax.lax.rsqrt(v1 + EPS)
    y1n = y1 * a1 + (b1_ref[...] - m1 * a1)                           # (C1, HW)

    # conv2d78 (this grid step's C2 tile): y2ᵀ = W2_tile @ y1n
    w2 = w2_ref[...].astype(jnp.bfloat16)
    y2 = jnp.dot(w2, y1n.astype(jnp.bfloat16),
                 preferred_element_type=jnp.float32)                  # (tc2, HW)

    # batchnorm2d46: mean via the cheap linear path (reduce the small y1n, then
    # a 1-column MXU matvec) instead of a second full reduce of y2; variance
    # one-pass.
    m1n = jnp.sum(y1n, axis=1, keepdims=True) * inv_hw                # (C1, 1)
    m2 = jnp.dot(w2, m1n.astype(jnp.bfloat16),
                 preferred_element_type=jnp.float32)                  # (tc2, 1)
    v2 = jnp.sum(y2 * y2, axis=1, keepdims=True) * inv_hw - m2 * m2
    a2 = g2_ref[...] * jax.lax.rsqrt(v2 + EPS)
    o_ref[...] = y2 * a2 + (b2_ref[...] - m2 * a2)                    # (tc2, HW)


def fused_forward(x239, x234, w1, g1, b1, w2, g2, b2, *, n_c2_tiles=N_C2_TILES):
    """x239: (1, Cin, 1, 1), x234: (1, Cin, H, W) — NCHW, N must be 1 here."""
    n, cin, h, w = x234.shape
    assert n == 1, "kernel handles N=1 (as in the traced module)"
    hw = h * w
    c1 = w1.shape[0]   # 144
    c2 = w2.shape[0]   # 864
    assert c2 % n_c2_tiles == 0 and (c2 // n_c2_tiles) % 8 == 0
    tc2 = c2 // n_c2_tiles

    # NCHW (N=1) -> (C, HW): a pure reshape, no transpose / extra HBM traffic.
    x_mat = x234.reshape(cin, hw).astype(jnp.float32)
    scale = x239.reshape(cin, 1).astype(jnp.float32)

    # conv weights (Cout, Cin, 1, 1) -> (Cout, Cin): also a pure reshape.
    w1_mat = w1.reshape(c1, cin).astype(jnp.float32)
    w2_mat = w2.reshape(c2, c1).astype(jnp.float32)

    g1r = g1.reshape(c1, 1).astype(jnp.float32)
    b1r = b1.reshape(c1, 1).astype(jnp.float32)
    g2r = g2.reshape(c2, 1).astype(jnp.float32)
    b2r = b2.reshape(c2, 1).astype(jnp.float32)

    resident = lambda shape: pl.BlockSpec(shape, lambda i: (0, 0))   # same block every step
    c2_tiled = lambda shape: pl.BlockSpec(shape, lambda i: (i, 0))   # blocked on C2

    out_mat = pl.pallas_call(
        _fused_kernel,
        out_shape=jax.ShapeDtypeStruct((c2, hw), jnp.float32),
        grid=(n_c2_tiles,),
        in_specs=[
            resident((cin, hw)),    # x
            resident((cin, 1)),     # per-channel scale (x239)
            resident((c1, cin)),    # W1
            resident((c1, 1)),      # gamma1
            resident((c1, 1)),      # beta1
            c2_tiled((tc2, c1)),    # W2 tile
            c2_tiled((tc2, 1)),     # gamma2 tile
            c2_tiled((tc2, 1)),     # beta2 tile
        ],
        out_specs=c2_tiled((tc2, hw)),
        compiler_params=pltpu.CompilerParams(
            dimension_semantics=("parallel",)),
    )(x_mat, scale, w1_mat, g1r, b1r, w2_mat, g2r, b2r)

    # (C2, HW) -> NCHW: again a pure reshape, no transpose.
    return out_mat.reshape(1, c2, h, w)


def _reference(x239, x234, w1, g1, b1, w2, g2, b2):
    """Pure-JAX reference of the PyTorch forward (training-mode BN, f32)."""
    x = x239 * x234
    y1 = jax.lax.conv_general_dilated(x, w1, (1, 1), "VALID",
                                      dimension_numbers=("NCHW", "OIHW", "NCHW"))
    m1 = jnp.mean(y1, axis=(0, 2, 3), keepdims=True)
    v1 = jnp.mean((y1 - m1) ** 2, axis=(0, 2, 3), keepdims=True)
    y1 = (y1 - m1) / jnp.sqrt(v1 + EPS) * g1[None, :, None, None] + b1[None, :, None, None]
    y2 = jax.lax.conv_general_dilated(y1, w2, (1, 1), "VALID",
                                      dimension_numbers=("NCHW", "OIHW", "NCHW"))
    m2 = jnp.mean(y2, axis=(0, 2, 3), keepdims=True)
    v2 = jnp.mean((y2 - m2) ** 2, axis=(0, 2, 3), keepdims=True)
    return (y2 - m2) / jnp.sqrt(v2 + EPS) * g2[None, :, None, None] + b2[None, :, None, None]


if __name__ == "__main__":
    CIN, C1, C2, H, W = 432, 144, 864, 14, 14

    key = jax.random.PRNGKey(0)
    k = jax.random.split(key, 6)

    x234 = jax.random.normal(k[0], (1, CIN, H, W), dtype=jnp.float32)
    x239 = jax.random.normal(k[1], (1, CIN, 1, 1), dtype=jnp.float32)

    # Deterministic synthetic parameters (shapes from the module __init__)
    w1 = jax.random.normal(k[2], (C1, CIN, 1, 1), dtype=jnp.float32) * 0.05
    w2 = jax.random.normal(k[3], (C2, C1, 1, 1), dtype=jnp.float32) * 0.05
    g1 = 1.0 + 0.1 * jax.random.normal(k[4], (C1,), dtype=jnp.float32)
    b1 = 0.1 * jax.random.normal(k[5], (C1,), dtype=jnp.float32)
    g2 = jnp.ones((C2,), dtype=jnp.float32)
    b2 = jnp.zeros((C2,), dtype=jnp.float32)

    out = fused_forward(x239, x234, w1, g1, b1, w2, g2, b2)
    out = jax.block_until_ready(out)

    ref = jax.block_until_ready(_reference(x239, x234, w1, g1, b1, w2, g2, b2))
    # Tolerance accounts for bf16 MXU operands (f32 accumulation) vs the f32
    # reference, per the performance guidance.
    np.testing.assert_allclose(np.asarray(out), np.asarray(ref), atol=2e-2, rtol=2e-2)

    print("KERNEL_OK")
</pallas_src>

<mosaic_0001>
module attributes {stable_mosaic.version = 11 : i64} {
  func.func @_fused_kernel(%arg0: i32, %arg1: memref<432x196xf32, #tpu.memory_space<vmem>>, %arg2: memref<432x1xf32, #tpu.memory_space<vmem>>, %arg3: memref<144x432xf32, #tpu.memory_space<vmem>>, %arg4: memref<144x1xf32, #tpu.memory_space<vmem>>, %arg5: memref<144x1xf32, #tpu.memory_space<vmem>>, %arg6: memref<432x144xf32, #tpu.memory_space<vmem>>, %arg7: memref<432x1xf32, #tpu.memory_space<vmem>>, %arg8: memref<432x1xf32, #tpu.memory_space<vmem>>, %arg9: memref<432x196xf32, #tpu.memory_space<vmem>>) attributes {dimension_semantics = [#tpu.dimension_semantics<parallel>], iteration_bounds = array<i64: 2>, scalar_prefetch = 0 : i64, scratch_operands = 0 : i64, tpu.core_type = #tpu.core_type<tc>, window_params = [{pipeline_mode = #tpu.pipeline_mode<synchronous>, transform_indices = @transform_0, window_bounds = array<i64: 432, 196>}, {pipeline_mode = #tpu.pipeline_mode<synchronous>, transform_indices = @transform_1, window_bounds = array<i64: 432, 1>}, {pipeline_mode = #tpu.pipeline_mode<synchronous>, transform_indices = @transform_2, window_bounds = array<i64: 144, 432>}, {pipeline_mode = #tpu.pipeline_mode<synchronous>, transform_indices = @transform_3, window_bounds = array<i64: 144, 1>}, {pipeline_mode = #tpu.pipeline_mode<synchronous>, transform_indices = @transform_4, window_bounds = array<i64: 144, 1>}, {transform_indices = @transform_5, window_bounds = array<i64: 432, 144>}, {transform_indices = @transform_6, window_bounds = array<i64: 432, 1>}, {transform_indices = @transform_7, window_bounds = array<i64: 432, 1>}, {transform_indices = @transform_8, window_bounds = array<i64: 432, 196>}]} {
    %c0 = arith.constant 0 : index
    %c0_0 = arith.constant 0 : index
    %0 = vector.load %arg1[%c0, %c0_0] : memref<432x196xf32, #tpu.memory_space<vmem>>, vector<432x196xf32>
    %c0_1 = arith.constant 0 : index
    %c0_2 = arith.constant 0 : index
    %1 = vector.load %arg2[%c0_1, %c0_2] : memref<432x1xf32, #tpu.memory_space<vmem>>, vector<432x1xf32>
    %2 = vector.broadcast %1 : vector<432x1xf32> to vector<432x196xf32>
    %3 = arith.mulf %0, %2 : vector<432x196xf32>
    %c0_3 = arith.constant 0 : index
    %c0_4 = arith.constant 0 : index
    %4 = vector.load %arg3[%c0_3, %c0_4] : memref<144x432xf32, #tpu.memory_space<vmem>>, vector<144x432xf32>
    %5 = arith.truncf %4 : vector<144x432xf32> to vector<144x432xbf16>
    %6 = arith.truncf %3 : vector<432x196xf32> to vector<432x196xbf16>
    %cst = arith.constant dense<0.000000e+00> : vector<144x196xf32>
    %7 = tpu.matmul %5, %6, %cst {dimension_numbers = #tpu.dot_dimension_numbers<[1], [0], [0], [1], [0, 0, 1, 1], [], []>} : vector<144x432xbf16>, vector<432x196xbf16>, vector<144x196xf32> -> vector<144x196xf32>
    %cst_5 = arith.constant dense<0.000000e+00> : vector<144xf32>
    %8 = vector.multi_reduction <add>, %7, %cst_5 [1] : vector<144x196xf32> to vector<144xf32>
    %9 = vector.shape_cast %8 : vector<144xf32> to vector<144x1xf32>
    %cst_6 = arith.constant 0.00510204071 : f32
    %10 = vector.broadcast %cst_6 : f32 to vector<144x1xf32>
    %11 = arith.mulf %9, %10 : vector<144x1xf32>
    %12 = arith.mulf %7, %7 : vector<144x196xf32>
    %cst_7 = arith.constant dense<0.000000e+00> : vector<144xf32>
    %13 = vector.multi_reduction <add>, %12, %cst_7 [1] : vector<144x196xf32> to vector<144xf32>
    %14 = vector.shape_cast %13 : vector<144xf32> to vector<144x1xf32>
    %cst_8 = arith.constant 0.00510204071 : f32
    %15 = vector.broadcast %cst_8 : f32 to vector<144x1xf32>
    %16 = arith.mulf %14, %15 : vector<144x1xf32>
    %17 = arith.mulf %11, %11 : vector<144x1xf32>
    %18 = arith.subf %16, %17 : vector<144x1xf32>
    %c0_9 = arith.constant 0 : index
    %c0_10 = arith.constant 0 : index
    %19 = vector.load %arg4[%c0_9, %c0_10] : memref<144x1xf32, #tpu.memory_space<vmem>>, vector<144x1xf32>
    %cst_11 = arith.constant 1.000000e-03 : f32
    %20 = vector.broadcast %cst_11 : f32 to vector<144x1xf32>
    %21 = arith.addf %18, %20 : vector<144x1xf32>
    %22 = math.rsqrt %21 : vector<144x1xf32>
    %23 = arith.mulf %19, %22 : vector<144x1xf32>
    %24 = vector.broadcast %23 : vector<144x1xf32> to vector<144x196xf32>
    %25 = arith.mulf %7, %24 : vector<144x196xf32>
    %c0_12 = arith.constant 0 : index
    %c0_13 = arith.constant 0 : index
    %26 = vector.load %arg5[%c0_12, %c0_13] : memref<144x1xf32, #tpu.memory_space<vmem>>, vector<144x1xf32>
    %27 = arith.mulf %11, %23 : vector<144x1xf32>
    %28 = arith.subf %26, %27 : vector<144x1xf32>
    %29 = vector.broadcast %28 : vector<144x1xf32> to vector<144x196xf32>
    %30 = arith.addf %25, %29 : vector<144x196xf32>
    %c0_14 = arith.constant 0 : index
    %c0_15 = arith.constant 0 : index
    %31 = vector.load %arg6[%c0_14, %c0_15] : memref<432x144xf32, #tpu.memory_space<vmem>>, vector<432x144xf32>
    %32 = arith.truncf %31 : vector<432x144xf32> to vector<432x144xbf16>
    %33 = arith.truncf %30 : vector<144x196xf32> to vector<144x196xbf16>
    %cst_16 = arith.constant dense<0.000000e+00> : vector<432x196xf32>
    %34 = tpu.matmul %32, %33, %cst_16 {dimension_numbers = #tpu.dot_dimension_numbers<[1], [0], [0], [1], [0, 0, 1, 1], [], []>} : vector<432x144xbf16>, vector<144x196xbf16>, vector<432x196xf32> -> vector<432x196xf32>
    %cst_17 = arith.constant dense<0.000000e+00> : vector<144xf32>
    %35 = vector.multi_reduction <add>, %30, %cst_17 [1] : vector<144x196xf32> to vector<144xf32>
    %36 = vector.shape_cast %35 : vector<144xf32> to vector<144x1xf32>
    %cst_18 = arith.constant 0.00510204071 : f32
    %37 = vector.broadcast %cst_18 : f32 to vector<144x1xf32>
    %38 = arith.mulf %36, %37 : vector<144x1xf32>
    %39 = arith.truncf %38 : vector<144x1xf32> to vector<144x1xbf16>
    %cst_19 = arith.constant dense<0.000000e+00> : vector<432x1xf32>
    %40 = tpu.matmul %32, %39, %cst_19 {dimension_numbers = #tpu.dot_dimension_numbers<[1], [0], [0], [1], [0, 0, 1, 1], [], []>} : vector<432x144xbf16>, vector<144x1xbf16>, vector<432x1xf32> -> vector<432x1xf32>
    %41 = arith.mulf %34, %34 : vector<432x196xf32>
    %cst_20 = arith.constant dense<0.000000e+00> : vector<432xf32>
    %42 = vector.multi_reduction <add>, %41, %cst_20 [1] : vector<432x196xf32> to vector<432xf32>
    %43 = vector.shape_cast %42 : vector<432xf32> to vector<432x1xf32>
    %cst_21 = arith.constant 0.00510204071 : f32
    %44 = vector.broadcast %cst_21 : f32 to vector<432x1xf32>
    %45 = arith.mulf %43, %44 : vector<432x1xf32>
    %46 = arith.mulf %40, %40 : vector<432x1xf32>
    %47 = arith.subf %45, %46 : vector<432x1xf32>
    %c0_22 = arith.constant 0 : index
    %c0_23 = arith.constant 0 : index
    %48 = vector.load %arg7[%c0_22, %c0_23] : memref<432x1xf32, #tpu.memory_space<vmem>>, vector<432x1xf32>
    %cst_24 = arith.constant 1.000000e-03 : f32
    %49 = vector.broadcast %cst_24 : f32 to vector<432x1xf32>
    %50 = arith.addf %47, %49 : vector<432x1xf32>
    %51 = math.rsqrt %50 : vector<432x1xf32>
    %52 = arith.mulf %48, %51 : vector<432x1xf32>
    %53 = vector.broadcast %52 : vector<432x1xf32> to vector<432x196xf32>
    %54 = arith.mulf %34, %53 : vector<432x196xf32>
    %c0_25 = arith.constant 0 : index
    %c0_26 = arith.constant 0 : index
    %55 = vector.load %arg8[%c0_25, %c0_26] : memref<432x1xf32, #tpu.memory_space<vmem>>, vector<432x1xf32>
    %56 = arith.mulf %40, %52 : vector<432x1xf32>
    %57 = arith.subf %55, %56 : vector<432x1xf32>
    %58 = vector.broadcast %57 : vector<432x1xf32> to vector<432x196xf32>
    %59 = arith.addf %54, %58 : vector<432x196xf32>
    %c0_27 = arith.constant 0 : index
    %c0_28 = arith.constant 0 : index
    %60 = vector.load %arg9[%c0_27, %c0_28] : memref<432x196xf32, #tpu.memory_space<vmem>>, vector<432x196xf32>
    tpu.vector_store %arg9[%c0_27, %c0_28], %59 {strides = array<i32>} : memref<432x196xf32, #tpu.memory_space<vmem>>, vector<432x196xf32>,
    return
  }
  func.func @transform_0(%arg0: i32) -> (i32, i32) {
    %c0_i32 = arith.constant 0 : i32
    %c0_i32_0 = arith.constant 0 : i32
    %c0_i32_1 = arith.constant 0 : i32
    return %c0_i32, %c0_i32_0 : i32, i32
  }
  func.func @transform_1(%arg0: i32) -> (i32, i32) {
    %c0_i32 = arith.constant 0 : i32
    %c0_i32_0 = arith.constant 0 : i32
    %c0_i32_1 = arith.constant 0 : i32
    return %c0_i32, %c0_i32_0 : i32, i32
  }
  func.func @transform_2(%arg0: i32) -> (i32, i32) {
    %c0_i32 = arith.constant 0 : i32
    %c0_i32_0 = arith.constant 0 : i32
    %c0_i32_1 = arith.constant 0 : i32
    return %c0_i32, %c0_i32_0 : i32, i32
  }
  func.func @transform_3(%arg0: i32) -> (i32, i32) {
    %c0_i32 = arith.constant 0 : i32
    %c0_i32_0 = arith.constant 0 : i32
    %c0_i32_1 = arith.constant 0 : i32
    return %c0_i32, %c0_i32_0 : i32, i32
  }
  func.func @transform_4(%arg0: i32) -> (i32, i32) {
    %c0_i32 = arith.constant 0 : i32
    %c0_i32_0 = arith.constant 0 : i32
    %c0_i32_1 = arith.constant 0 : i32
    return %c0_i32, %c0_i32_0 : i32, i32
  }
  func.func @transform_5(%arg0: i32) -> (i32, i32) {
    %c0_i32 = arith.constant 0 : i32
    %c0_i32_0 = arith.constant 0 : i32
    return %arg0, %c0_i32 : i32, i32
  }
  func.func @transform_6(%arg0: i32) -> (i32, i32) {
    %c0_i32 = arith.constant 0 : i32
    %c0_i32_0 = arith.constant 0 : i32
    return %arg0, %c0_i32 : i32, i32
  }
  func.func @transform_7(%arg0: i32) -> (i32, i32) {
    %c0_i32 = arith.constant 0 : i32
    %c0_i32_0 = arith.constant 0 : i32
    return %arg0, %c0_i32 : i32, i32
  }
  func.func @transform_8(%arg0: i32) -> (i32, i32) {
    %c0_i32 = arith.constant 0 : i32
    %c0_i32_0 = arith.constant 0 : i32
    return %arg0, %c0_i32 : i32, i32
  }
}

</mosaic_0001>

<llo_original>
// kernel: tpu_custom_call.1
$region0: #{tpu_custom_call.1}
  #allocation0 [shape = 'u32[]', space=smem, size = 0x4, offset = 0x4, fixed_abs, tag = 'smem constant byte address 0x4 - core index']
  #allocation1 [shape = 'u32[144,128]{1,0:T(1,128)}', space=vmem, size = 0x12000, scoped, tag = 'internal scratch']
  %s0 = inlined_call_operand.vmem [shape: f32[432,196], index: 0, kind: input, shape index: {}]
  %s1 = inlined_call_operand.vmem [shape: f32[432,1], index: 1, kind: input, shape index: {}]
  %s2 = inlined_call_operand.vmem [shape: f32[144,432], index: 2, kind: input, shape index: {}]
  %s3 = inlined_call_operand.vmem [shape: f32[144,1], index: 3, kind: input, shape index: {}]
  %s4 = inlined_call_operand.vmem [shape: f32[144,1], index: 4, kind: input, shape index: {}]
  %s5 = inlined_call_operand.vmem [shape: f32[864,144], index: 5, kind: input, shape index: {}]
  %s6 = inlined_call_operand.vmem [shape: f32[864,1], index: 6, kind: input, shape index: {}]
  %s7 = inlined_call_operand.vmem [shape: f32[864,1], index: 7, kind: input, shape index: {}]
  %s8 = inlined_call_operand.vmem [shape: f32[864,196], index: 8, kind: output, shape index: {}]
  %s9 = sld [smem:[#allocation0]]
  $region65: #{tpu_custom_call.1} parent=0
    _
  %s11 = ssub.s32 1, %s9
  %s12 = scalar_select 0, %s11, %s9
  loop: start=0, step=1, limit=4
  $region2: #{tpu_custom_call.1} parent=0 // loop_pre_header
    _
  $region3: #{tpu_custom_call.1} parent=0 // loop_header
    %s14 = sphi 0, %s18
    %p15 = scmp.ge.s32.totalorder %s14, 4
    %s22 = sphi 0, %s22
    %s24 = sphi 0, %s22
    %s25 = sphi 0, %s24
    %s39 = sphi 0, %s25
    %s43 = sphi 0, %s43
    %s45 = sphi 0, %s43
    %s46 = sphi 0, %s45
    %s60 = sphi 0, %s46
    %s64 = sphi 0, %s64
    %s66 = sphi 0, %s64
    %s67 = sphi 0, %s66
    %s81 = sphi 0, %s67
    %s85 = sphi 0, %s85
    %s87 = sphi 0, %s85
    %s88 = sphi 0, %s87
    %s102 = sphi 0, %s88
    %s106 = sphi 0, %s106
    %s108 = sphi 0, %s106
    %s109 = sphi 0, %s108
    %s123 = sphi 0, %s109
    %s129 = sphi 0, %s131
    %s132 = sphi 0, %s129
    %s133 = sphi 0, %s132
    %s149 = sphi 0, %s133
    %s155 = sphi 0, %s157
    %s158 = sphi 0, %s155
    %s159 = sphi 0, %s158
    %s175 = sphi 0, %s159
    %s181 = sphi 0, %s183
    %s184 = sphi 0, %s181
    %s185 = sphi 0, %s184
    %s201 = sphi 0, %s185
    %s207 = sphi 0, %s209
    %s210 = sphi 0, %s207
    %s211 = sphi 0, %s210
    %s227 = sphi 0, %s211
  $region4: #{tpu_custom_call.1} parent=0 // loop_header_branch
    %17 = sbr.rel (%p15) target = $region8
  $region5: #{tpu_custom_call.1} parent=0 // loop_body
    %s19 = ssub.s32 %s14, 1
    %s20 = ssub.s32 %s14, 2
    %s21 = sadd.s32 %s14, 1
    %s23 = sadd.s32 %s22, 1
    %p26 = scmp.eq.s32.totalorder %s14, 1
    %p27 = scmp.ne.s32.totalorder %s22, %s24
    %p28 = scmp.eq.s32.totalorder %s14, 0
    %p29 = por %p27, %p28
    %p30 = scmp.ne.s32.totalorder %s22, %s24
    %p31 = scmp.eq.s32.totalorder %s19, 1
    %p32 = por %p30, %p31
    %p33 = scmp.ne.s32.totalorder %s24, %s25
    %p34 = scmp.eq.s32.totalorder %s19, 0
    %p35 = por %p33, %p34
    %p36 = scmp.ne.s32.totalorder %s24, %s25
    %p37 = scmp.eq.s32.totalorder %s20, 1
    %p38 = por %p36, %p37
    %p40 = scmp.ne.s32.totalorder %s25, %s39
    %p41 = scmp.eq.s32.totalorder %s20, 0
    %p42 = por %p40, %p41
    %s44 = sadd.s32 %s43, 1
    %p47 = scmp.eq.s32.totalorder %s14, 1
    %p48 = scmp.ne.s32.totalorder %s43, %s45
    %p49 = scmp.eq.s32.totalorder %s14, 0
    %p50 = por %p48, %p49
    %p51 = scmp.ne.s32.totalorder %s43, %s45
    %p52 = scmp.eq.s32.totalorder %s19, 1
    %p53 = por %p51, %p52
    %p54 = scmp.ne.s32.totalorder %s45, %s46
    %p55 = scmp.eq.s32.totalorder %s19, 0
    %p56 = por %p54, %p55
    %p57 = scmp.ne.s32.totalorder %s45, %s46
    %p58 = scmp.eq.s32.totalorder %s20, 1
    %p59 = por %p57, %p58
    %p61 = scmp.ne.s32.totalorder %s46, %s60
    %p62 = scmp.eq.s32.totalorder %s20, 0
    %p63 = por %p61, %p62
    %s65 = sadd.s32 %s64, 1
    %p68 = scmp.eq.s32.totalorder %s14, 1
    %p69 = scmp.ne.s32.totalorder %s64, %s66
    %p70 = scmp.eq.s32.totalorder %s14, 0
    %p71 = por %p69, %p70
    %p72 = scmp.ne.s32.totalorder %s64, %s66
    %p73 = scmp.eq.s32.totalorder %s19, 1
    %p74 = por %p72, %p73
    %p75 = scmp.ne.s32.totalorder %s66, %s67
    %p76 = scmp.eq.s32.totalorder %s19, 0
    %p77 = por %p75, %p76
    %p78 = scmp.ne.s32.totalorder %s66, %s67
    %p79 = scmp.eq.s32.totalorder %s20, 1
    %p80 = por %p78, %p79
    %p82 = scmp.ne.s32.totalorder %s67, %s81
    %p83 = scmp.eq.s32.totalorder %s20, 0
    %p84 = por %p82, %p83
    %s86 = sadd.s32 %s85, 1
    %p89 = scmp.eq.s32.totalorder %s14, 1
    %p90 = scmp.ne.s32.totalorder %s85, %s87
    %p91 = scmp.eq.s32.totalorder %s14, 0
    %p92 = por %p90, %p91
    %p93 = scmp.ne.s32.totalorder %s85, %s87
    %p94 = scmp.eq.s32.totalorder %s19, 1
    %p95 = por %p93, %p94
    %p96 = scmp.ne.s32.totalorder %s87, %s88
    %p97 = scmp.eq.s32.totalorder %s19, 0
    %p98 = por %p96, %p97
    %p99 = scmp.ne.s32.totalorder %s87, %s88
    %p100 = scmp.eq.s32.totalorder %s20, 1
    %p101 = por %p99, %p100
    %p103 = scmp.ne.s32.totalorder %s88, %s102
    %p104 = scmp.eq.s32.totalorder %s20, 0
    %p105 = por %p103, %p104
    %s107 = sadd.s32 %s106, 1
    %p110 = scmp.eq.s32.totalorder %s14, 1
    %p111 = scmp.ne.s32.totalorder %s106, %s108
    %p112 = scmp.eq.s32.totalorder %s14, 0
    %p113 = por %p111, %p112
    %p114 = scmp.ne.s32.totalorder %s106, %s108
    %p115 = scmp.eq.s32.totalorder %s19, 1
    %p116 = por %p114, %p115
    %p117 = scmp.ne.s32.totalorder %s108, %s109
    %p118 = scmp.eq.s32.totalorder %s19, 0
    %p119 = por %p117, %p118
    %p120 = scmp.ne.s32.totalorder %s108, %s109
    %p121 = scmp.eq.s32.totalorder %s20, 1
    %p122 = por %p120, %p121
    %p124 = scmp.ne.s32.totalorder %s109, %s123
    %p125 = scmp.eq.s32.totalorder %s20, 0
    %p126 = por %p124, %p125
    %s127 = ssub.s32 %s14, %s21
    %p128 = scmp.eq.s32.totalorder %s127, 0
    %s130 = sadd.s32 %s129, 1
    %s131 = scalar_select %p128, %s129, %s130
    %p134 = pneg %p128
    %p135 = scmp.eq.s32.totalorder %s14, 1
    %p136 = por %p134, %p135
    %p137 = scmp.ne.s32.totalorder %s129, %s132
    %p138 = scmp.eq.s32.totalorder %s14, 0
    %p139 = por %p137, %p138
    %p140 = scmp.ne.s32.totalorder %s129, %s132
    %p141 = scmp.eq.s32.totalorder %s19, 1
    %p142 = por %p140, %p141
    %p143 = scmp.ne.s32.totalorder %s132, %s133
    %p144 = scmp.eq.s32.totalorder %s19, 0
    %p145 = por %p143, %p144
    %p146 = scmp.ne.s32.totalorder %s132, %s133
    %p147 = scmp.eq.s32.totalorder %s20, 1
    %p148 = por %p146, %p147
    %p150 = scmp.ne.s32.totalorder %s133, %s149
    %p151 = scmp.eq.s32.totalorder %s20, 0
    %p152 = por %p150, %p151
    %s153 = ssub.s32 %s14, %s21
    %p154 = scmp.eq.s32.totalorder %s153, 0
    %s156 = sadd.s32 %s155, 1
    %s157 = scalar_select %p154, %s155, %s156
    %p160 = pneg %p154
    %p161 = scmp.eq.s32.totalorder %s14, 1
    %p162 = por %p160, %p161
    %p163 = scmp.ne.s32.totalorder %s155, %s158
    %p164 = scmp.eq.s32.totalorder %s14, 0
    %p165 = por %p163, %p164
    %p166 = scmp.ne.s32.totalorder %s155, %s158
    %p167 = scmp.eq.s32.totalorder %s19, 1
    %p168 = por %p166, %p167
    %p169 = scmp.ne.s32.totalorder %s158, %s159
    %p170 = scmp.eq.s32.totalorder %s19, 0
    %p171 = por %p169, %p170
    %p172 = scmp.ne.s32.totalorder %s158, %s159
    %p173 = scmp.eq.s32.totalorder %s20, 1
    %p174 = por %p172, %p173
    %p176 = scmp.ne.s32.totalorder %s159, %s175
    %p177 = scmp.eq.s32.totalorder %s20, 0
    %p178 = por %p176, %p177
    %s179 = ssub.s32 %s14, %s21
    %p180 = scmp.eq.s32.totalorder %s179, 0
    %s182 = sadd.s32 %s181, 1
    %s183 = scalar_select %p180, %s181, %s182
    %p186 = pneg %p180
    %p187 = scmp.eq.s32.totalorder %s14, 1
    %p188 = por %p186, %p187
    %p189 = scmp.ne.s32.totalorder %s181, %s184
    %p190 = scmp.eq.s32.totalorder %s14, 0
    %p191 = por %p189, %p190
    %p192 = scmp.ne.s32.totalorder %s181, %s184
    %p193 = scmp.eq.s32.totalorder %s19, 1
    %p194 = por %p192, %p193
    %p195 = scmp.ne.s32.totalorder %s184, %s185
    %p196 = scmp.eq.s32.totalorder %s19, 0
    %p197 = por %p195, %p196
    %p198 = scmp.ne.s32.totalorder %s184, %s185
    %p199 = scmp.eq.s32.totalorder %s20, 1
    %p200 = por %p198, %p199
    %p202 = scmp.ne.s32.totalorder %s185, %s201
    %p203 = scmp.eq.s32.totalorder %s20, 0
    %p204 = por %p202, %p203
    %s205 = ssub.s32 %s14, %s21
    %p206 = scmp.eq.s32.totalorder %s205, 0
    %s208 = sadd.s32 %s207, 1
    %s209 = scalar_select %p206, %s207, %s208
    %p212 = pneg %p206
    %p213 = scmp.eq.s32.totalorder %s14, 1
    %p214 = por %p212, %p213
    %p215 = scmp.ne.s32.totalorder %s207, %s210
    %p216 = scmp.eq.s32.totalorder %s14, 0
    %p217 = por %p215, %p216
    %p218 = scmp.ne.s32.totalorder %s207, %s210
    %p219 = scmp.eq.s32.totalorder %s19, 1
    %p220 = por %p218, %p219
    %p221 = scmp.ne.s32.totalorder %s210, %s211
    %p222 = scmp.eq.s32.totalorder %s19, 0
    %p223 = por %p221, %p222
    %p224 = scmp.ne.s32.totalorder %s210, %s211
    %p225 = scmp.eq.s32.totalorder %s20, 1
    %p226 = por %p224, %p225
    %p228 = scmp.ne.s32.totalorder %s211, %s227
    %p229 = scmp.eq.s32.totalorder %s20, 0
    %p230 = por %p228, %p229
    %p231 = scmp.le.s32.totalorder 1, %s14
    %p232 = scmp.lt.s32.totalorder %s14, 3
    %p233 = pnand %p231, %p232
    %p234 = pneg %p233
    // Predicated region
    $region9: #{tpu_custom_call.1} parent=5 // pred_check
      _
    $region10: #{tpu_custom_call.1} parent=5 // pred_check_branch
      %236 = sbr.rel (%p233) target = $region12
    $region11: #{tpu_custom_call.1} parent=5 // pred_region
      %s237 = ssub.s32 %s14, 1
      // Predicated region
      $region13: #{tpu_custom_call.1} parent=11 // pred_check
        %p238 = pneg %p35
      $region14: #{tpu_custom_call.1} parent=11 // pred_check_branch
        %240 = sbr.rel (%p238) target = $region16
      $region15: #{tpu_custom_call.1} parent=11 // pred_region
        _
      $region16: #{tpu_custom_call.1} parent=11 // pred_fallthru
        _
      // Predicated region
      $region17: #{tpu_custom_call.1} parent=11 // pred_check
        %p241 = pneg %p56
      $region18: #{tpu_custom_call.1} parent=11 // pred_check_branch
        %243 = sbr.rel (%p241) target = $region20
      $region19: #{tpu_custom_call.1} parent=11 // pred_region
        _
      $region20: #{tpu_custom_call.1} parent=11 // pred_fallthru
        _
      // Predicated region
      $region21: #{tpu_custom_call.1} parent=11 // pred_check
        %p244 = pneg %p77
      $region22: #{tpu_custom_call.1} parent=11 // pred_check_branch
        %246 = sbr.rel (%p244) target = $region24
      $region23: #{tpu_custom_call.1} parent=11 // pred_region
        _
      $region24: #{tpu_custom_call.1} parent=11 // pred_fallthru
        _
      // Predicated region
      $region25: #{tpu_custom_call.1} parent=11 // pred_check
        %p247 = pneg %p98
      $region26: #{tpu_custom_call.1} parent=11 // pred_check_branch
        %249 = sbr.rel (%p247) target = $region28
      $region27: #{tpu_custom_call.1} parent=11 // pred_region
        _
      $region28: #{tpu_custom_call.1} parent=11 // pred_fallthru
        _
      // Predicated region
      $region29: #{tpu_custom_call.1} parent=11 // pred_check
        %p250 = pneg %p119
      $region30: #{tpu_custom_call.1} parent=11 // pred_check_branch
        %252 = sbr.rel (%p250) target = $region32
      $region31: #{tpu_custom_call.1} parent=11 // pred_region
        _
      $region32: #{tpu_custom_call.1} parent=11 // pred_fallthru
        _
    $region12: #{tpu_custom_call.1} parent=5 // pred_fallthru
      _
    %p253 = scmp.lt.s32.totalorder %s14, 2
    // Predicated region
    $region33: #{tpu_custom_call.1} parent=5 // pred_check
      %p254 = pneg %p253
    $region34: #{tpu_custom_call.1} parent=5 // pred_check_branch
      %256 = sbr.rel (%p254) target = $region36
    $region35: #{tpu_custom_call.1} parent=5 // pred_region
      // Predicated region
      $region37: #{tpu_custom_call.1} parent=35 // pred_check
        %p257 = pneg %p139
      $region38: #{tpu_custom_call.1} parent=35 // pred_check_branch
        %259 = sbr.rel (%p257) target = $region40
      $region39: #{tpu_custom_call.1} parent=35 // pred_region
        %s260 = smul.u32 54, %s14
        %p261 = scmp.lt.s32.totalorder %s260, 107
        %s262 = scalar_select %p261, %s260, 107
        %s263 = smul.addr %s262, 2
        %s264 = smul.addr %s263, 8
        %s265 = scalar_lea.vmem %s5, %s264
        %s266 = smul.u32 54, %s14
      $region40: #{tpu_custom_call.1} parent=35 // pred_fallthru
        _
      // Predicated region
      $region41: #{tpu_custom_call.1} parent=35 // pred_check
        %p267 = pneg %p165
      $region42: #{tpu_custom_call.1} parent=35 // pred_check_branch
        %269 = sbr.rel (%p267) target = $region44
      $region43: #{tpu_custom_call.1} parent=35 // pred_region
        %s270 = smul.u32 54, %s14
        %p271 = scmp.lt.s32.totalorder %s270, 107
        %s272 = scalar_select %p271, %s270, 107
        %s273 = smul.addr %s272, 8
        %s274 = scalar_lea.vmem %s6, %s273
        %s275 = smul.u32 54, %s14
      $region44: #{tpu_custom_call.1} parent=35 // pred_fallthru
        _
      // Predicated region
      $region45: #{tpu_custom_call.1} parent=35 // pred_check
        %p276 = pneg %p191
      $region46: #{tpu_custom_call.1} parent=35 // pred_check_branch
        %278 = sbr.rel (%p276) target = $region48
      $region47: #{tpu_custom_call.1} parent=35 // pred_region
        %s279 = smul.u32 54, %s14
        %p280 = scmp.lt.s32.totalorder %s279, 107
        %s281 = scalar_select %p280, %s279, 107
        %s282 = smul.addr %s281, 8
        %s283 = scalar_lea.vmem %s7, %s282
        %s284 = smul.u32 54, %s14
      $region48: #{tpu_custom_call.1} parent=35 // pred_fallthru
        _
    $region36: #{tpu_custom_call.1} parent=5 // pred_fallthru
      _
    %p285 = scmp.le.s32.totalorder 1, %s14
    %p286 = scmp.lt.s32.totalorder %s14, 3
    %p287 = pnand %p285, %p286
    %p288 = pneg %p287
    // Predicated region
    $region49: #{tpu_custom_call.1} parent=5 // pred_check
      _
    $region50: #{tpu_custom_call.1} parent=5 // pred_check_branch
      %290 = sbr.rel (%p287) target = $region52
    $region51: #{tpu_custom_call.1} parent=5 // pred_region
      %s291 = ssub.s32 %s14, 1
      %p292 = pneg %p35
      %p293 = pneg %p32
      %p294 = pneg %p56
      %p295 = pneg %p53
      %p296 = pneg %p77
      %p297 = pneg %p74
      %p298 = pneg %p98
      %p299 = pneg %p95
      %p300 = pneg %p119
      %p301 = pneg %p116
      %s302 = smul.u32 54, %s19
      %p303 = scmp.lt.s32.totalorder %s302, 107
      %s304 = scalar_select %p303, %s302, 107
      %s305 = smul.addr %s304, 2
      %s306 = smul.addr %s305, 8
      %s307 = scalar_lea.vmem %s5, %s306
      %p308 = pneg %p145
      %p309 = pneg %p142
      %s310 = smul.u32 54, %s19
      %p311 = scmp.lt.s32.totalorder %s310, 107
      %s312 = scalar_select %p311, %s310, 107
      %s313 = smul.addr %s312, 8
      %s314 = scalar_lea.vmem %s6, %s313
      %p315 = pneg %p171
      %p316 = pneg %p168
      %s317 = smul.u32 54, %s19
      %p318 = scmp.lt.s32.totalorder %s317, 107
      %s319 = scalar_select %p318, %s317, 107
      %s320 = smul.addr %s319, 8
      %s321 = scalar_lea.vmem %s7, %s320
      %p322 = pneg %p197
      %p323 = pneg %p194
      %p324 = pneg %p223
      %p325 = pneg %p220
      %s326 = smul.u32 54, %s19
      %p327 = scmp.lt.s32.totalorder %s326, 107
      %s328 = scalar_select %p327, %s326, 107
      %s329 = smul.addr %s328, 2
      %s330 = smul.addr %s329, 8
      %s331 = scalar_lea.vmem %s8, %s330
      %s332 = smul.u32 54, %s19
      %p333 = scmp.lt.s32.totalorder %s332, 107
      %s334 = scalar_select %p333, %s332, 107
      %s335 = smul.addr %s334, 2
      %s336 = smul.addr %s335, 8
      %s337 = scalar_lea.vmem %s5, %s336
      %s338 = smul.u32 54, %s19
      %s339 = smul.u32 54, %s19
      %p340 = scmp.lt.s32.totalorder %s339, 107
      %s341 = scalar_select %p340, %s339, 107
      %s342 = smul.addr %s341, 8
      %s343 = scalar_lea.vmem %s6, %s342
      %s344 = smul.u32 54, %s19
      %s345 = smul.u32 54, %s19
      %p346 = scmp.lt.s32.totalorder %s345, 107
      %s347 = scalar_select %p346, %s345, 107
      %s348 = smul.addr %s347, 8
      %s349 = scalar_lea.vmem %s7, %s348
      %s350 = smul.u32 54, %s19
      %s351 = smul.u32 54, %s19
      %p352 = scmp.lt.s32.totalorder %s351, 107
      %s353 = scalar_select %p352, %s351, 107
      %s354 = smul.addr %s353, 2
      %s355 = smul.addr %s354, 8
      %s356 = scalar_lea.vmem %s8, %s355
      %s357 = smul.u32 54, %s19
      %v359 = vld [vmem:[%s0] sm:$0xff]
      %v360 = vld [vmem:[%s0 + $0x8] sm:$0xff]
      %v361 = vld [vmem:[%s0 + $0x10] sm:$0xff]
      %v362 = vld [vmem:[%s0 + $0x18] sm:$0xff]
      %v363 = vld [vmem:[%s0 + $0x20] sm:$0xff]
      %v364 = vld [vmem:[%s0 + $0x28] sm:$0xff]
      %v365 = vld [vmem:[%s0 + $0x30] sm:$0xff]
      %v366 = vld [vmem:[%s0 + $0x38] sm:$0xff]
      %v367 = vld [vmem:[%s0 + $0x40] sm:$0xff]
      %v368 = vld [vmem:[%s0 + $0x48] sm:$0xff]
      %v369 = vld [vmem:[%s0 + $0x50] sm:$0xff]
      %v370 = vld [vmem:[%s0 + $0x58] sm:$0xff]
      %v371 = vld [vmem:[%s0 + $0x60] sm:$0xff]
      %v372 = vld [vmem:[%s0 + $0x68] sm:$0xff]
      %v373 = vld [vmem:[%s0 + $0x70] sm:$0xff]
      %v374 = vld [vmem:[%s0 + $0x78] sm:$0xff]
      %v375 = vld [vmem:[%s0 + $0x80] sm:$0xff]
      %v376 = vld [vmem:[%s0 + $0x88] sm:$0xff]
      %v377 = vld [vmem:[%s0 + $0x90] sm:$0xff]
      %v378 = vld [vmem:[%s0 + $0x98] sm:$0xff]
      %v379 = vld [vmem:[%s0 + $0xa0] sm:$0xff]
      %v380 = vld [vmem:[%s0 + $0xa8] sm:$0xff]
      %v381 = vld [vmem:[%s0 + $0xb0] sm:$0xff]
      %v382 = vld [vmem:[%s0 + $0xb8] sm:$0xff]
      %v383 = vld [vmem:[%s0 + $0xc0] sm:$0xff]
      %v384 = vld [vmem:[%s0 + $0xc8] sm:$0xff]
      %v385 = vld [vmem:[%s0 + $0xd0] sm:$0xff]
      %v386 = vld [vmem:[%s0 + $0xd8] sm:$0xff]
      %v387 = vld [vmem:[%s0 + $0xe0] sm:$0xff]
      %v388 = vld [vmem:[%s0 + $0xe8] sm:$0xff]
      %v389 = vld [vmem:[%s0 + $0xf0] sm:$0xff]
      %v390 = vld [vmem:[%s0 + $0xf8] sm:$0xff]
      %v391 = vld [vmem:[%s0 + $0x100] sm:$0xff]
      %v392 = vld [vmem:[%s0 + $0x108] sm:$0xff]
      %v393 = vld [vmem:[%s0 + $0x110] sm:$0xff]
      %v394 = vld [vmem:[%s0 + $0x118] sm:$0xff]
      %v395 = vld [vmem:[%s0 + $0x120] sm:$0xff]
      %v396 = vld [vmem:[%s0 + $0x128] sm:$0xff]
      %v397 = vld [vmem:[%s0 + $0x130] sm:$0xff]
      %v398 = vld [vmem:[%s0 + $0x138] sm:$0xff]
      %v399 = vld [vmem:[%s0 + $0x140] sm:$0xff]
      %v400 = vld [vmem:[%s0 + $0x148] sm:$0xff]
      %v401 = vld [vmem:[%s0 + $0x150] sm:$0xff]
      %v402 = vld [vmem:[%s0 + $0x158] sm:$0xff]
      %v403 = vld [vmem:[%s0 + $0x160] sm:$0xff]
      %v404 = vld [vmem:[%s0 + $0x168] sm:$0xff]
      %v405 = vld [vmem:[%s0 + $0x170] sm:$0xff]
      %v406 = vld [vmem:[%s0 + $0x178] sm:$0xff]
      %v407 = vld [vmem:[%s0 + $0x180] sm:$0xff]
      %v408 = vld [vmem:[%s0 + $0x188] sm:$0xff]
      %v409 = vld [vmem:[%s0 + $0x190] sm:$0xff]
      %v410 = vld [vmem:[%s0 + $0x198] sm:$0xff]
      %v411 = vld [vmem:[%s0 + $0x1a0] sm:$0xff]
      %v412 = vld [vmem:[%s0 + $0x1a8] sm:$0xff]
      %v413 = vld [vmem:[%s0 + $0x1b0] sm:$0xff]
      %v414 = vld [vmem:[%s0 + $0x1b8] sm:$0xff]
      %v415 = vld [vmem:[%s0 + $0x1c0] sm:$0xff]
      %v416 = vld [vmem:[%s0 + $0x1c8] sm:$0xff]
      %v417 = vld [vmem:[%s0 + $0x1d0] sm:$0xff]
      %v418 = vld [vmem:[%s0 + $0x1d8] sm:$0xff]
      %v419 = vld [vmem:[%s0 + $0x1e0] sm:$0xff]
      %v420 = vld [vmem:[%s0 + $0x1e8] sm:$0xff]
      %v421 = vld [vmem:[%s0 + $0x1f0] sm:$0xff]
      %v422 = vld [vmem:[%s0 + $0x1f8] sm:$0xff]
      %v423 = vld [vmem:[%s0 + $0x200] sm:$0xff]
      %v424 = vld [vmem:[%s0 + $0x208] sm:$0xff]
      %v425 = vld [vmem:[%s0 + $0x210] sm:$0xff]
      %v426 = vld [vmem:[%s0 + $0x218] sm:$0xff]
      %v427 = vld [vmem:[%s0 + $0x220] sm:$0xff]
      %v428 = vld [vmem:[%s0 + $0x228] sm:$0xff]
      %v429 = vld [vmem:[%s0 + $0x230] sm:$0xff]
      %v430 = vld [vmem:[%s0 + $0x238] sm:$0xff]
      %v431 = vld [vmem:[%s0 + $0x240] sm:$0xff]
      %v432 = vld [vmem:[%s0 + $0x248] sm:$0xff]
      %v433 = vld [vmem:[%s0 + $0x250] sm:$0xff]
      %v434 = vld [vmem:[%s0 + $0x258] sm:$0xff]
      %v435 = vld [vmem:[%s0 + $0x260] sm:$0xff]
      %v436 = vld [vmem:[%s0 + $0x268] sm:$0xff]
      %v437 = vld [vmem:[%s0 + $0x270] sm:$0xff]
      %v438 = vld [vmem:[%s0 + $0x278] sm:$0xff]
      %v439 = vld [vmem:[%s0 + $0x280] sm:$0xff]
      %v440 = vld [vmem:[%s0 + $0x288] sm:$0xff]
      %v441 = vld [vmem:[%s0 + $0x290] sm:$0xff]
      %v442 = vld [vmem:[%s0 + $0x298] sm:$0xff]
      %v443 = vld [vmem:[%s0 + $0x2a0] sm:$0xff]
      %v444 = vld [vmem:[%s0 + $0x2a8] sm:$0xff]
      %v445 = vld [vmem:[%s0 + $0x2b0] sm:$0xff]
      %v446 = vld [vmem:[%s0 + $0x2b8] sm:$0xff]
      %v447 = vld [vmem:[%s0 + $0x2c0] sm:$0xff]
      %v448 = vld [vmem:[%s0 + $0x2c8] sm:$0xff]
      %v449 = vld [vmem:[%s0 + $0x2d0] sm:$0xff]
      %v450 = vld [vmem:[%s0 + $0x2d8] sm:$0xff]
      %v451 = vld [vmem:[%s0 + $0x2e0] sm:$0xff]
      %v452 = vld [vmem:[%s0 + $0x2e8] sm:$0xff]
      %v453 = vld [vmem:[%s0 + $0x2f0] sm:$0xff]
      %v454 = vld [vmem:[%s0 + $0x2f8] sm:$0xff]
      %v455 = vld [vmem:[%s0 + $0x300] sm:$0xff]
      %v456 = vld [vmem:[%s0 + $0x308] sm:$0xff]
      %v457 = vld [vmem:[%s0 + $0x310] sm:$0xff]
      %v458 = vld [vmem:[%s0 + $0x318] sm:$0xff]
      %v459 = vld [vmem:[%s0 + $0x320] sm:$0xff]
      %v460 = vld [vmem:[%s0 + $0x328] sm:$0xff]
      %v461 = vld [vmem:[%s0 + $0x330] sm:$0xff]
      %v462 = vld [vmem:[%s0 + $0x338] sm:$0xff]
      %v463 = vld [vmem:[%s0 + $0x340] sm:$0xff]
      %v464 = vld [vmem:[%s0 + $0x348] sm:$0xff]
      %v465 = vld [vmem:[%s0 + $0x350] sm:$0xff]
      %v466 = vld [vmem:[%s0 + $0x358] sm:$0xff]
      %v467 = vld [vmem:[%s1] sm:$0xff]
      %v468 = vld [vmem:[%s1 + $0x8] sm:$0xff]
      %v469 = vld [vmem:[%s1 + $0x10] sm:$0xff]
      %v470 = vld [vmem:[%s1 + $0x18] sm:$0xff]
      %v471 = vld [vmem:[%s1 + $0x20] sm:$0xff]
      %v472 = vld [vmem:[%s1 + $0x28] sm:$0xff]
      %v473 = vld [vmem:[%s1 + $0x30] sm:$0xff]
      %v474 = vld [vmem:[%s1 + $0x38] sm:$0xff]
      %v475 = vld [vmem:[%s1 + $0x40] sm:$0xff]
      %v476 = vld [vmem:[%s1 + $0x48] sm:$0xff]
      %v477 = vld [vmem:[%s1 + $0x50] sm:$0xff]
      %v478 = vld [vmem:[%s1 + $0x58] sm:$0xff]
      %v479 = vld [vmem:[%s1 + $0x60] sm:$0xff]
      %v480 = vld [vmem:[%s1 + $0x68] sm:$0xff]
      %v481 = vld [vmem:[%s1 + $0x70] sm:$0xff]
      %v482 = vld [vmem:[%s1 + $0x78] sm:$0xff]
      %v483 = vld [vmem:[%s1 + $0x80] sm:$0xff]
      %v484 = vld [vmem:[%s1 + $0x88] sm:$0xff]
      %v485 = vld [vmem:[%s1 + $0x90] sm:$0xff]
      %v486 = vld [vmem:[%s1 + $0x98] sm:$0xff]
      %v487 = vld [vmem:[%s1 + $0xa0] sm:$0xff]
      %v488 = vld [vmem:[%s1 + $0xa8] sm:$0xff]
      %v489 = vld [vmem:[%s1 + $0xb0] sm:$0xff]
      %v490 = vld [vmem:[%s1 + $0xb8] sm:$0xff]
      %v491 = vld [vmem:[%s1 + $0xc0] sm:$0xff]
      %v492 = vld [vmem:[%s1 + $0xc8] sm:$0xff]
      %v493 = vld [vmem:[%s1 + $0xd0] sm:$0xff]
      %v494 = vld [vmem:[%s1 + $0xd8] sm:$0xff]
      %v495 = vld [vmem:[%s1 + $0xe0] sm:$0xff]
      %v496 = vld [vmem:[%s1 + $0xe8] sm:$0xff]
      %v497 = vld [vmem:[%s1 + $0xf0] sm:$0xff]
      %v498 = vld [vmem:[%s1 + $0xf8] sm:$0xff]
      %v499 = vld [vmem:[%s1 + $0x100] sm:$0xff]
      %v500 = vld [vmem:[%s1 + $0x108] sm:$0xff]
      %v501 = vld [vmem:[%s1 + $0x110] sm:$0xff]
      %v502 = vld [vmem:[%s1 + $0x118] sm:$0xff]
      %v503 = vld [vmem:[%s1 + $0x120] sm:$0xff]
      %v504 = vld [vmem:[%s1 + $0x128] sm:$0xff]
      %v505 = vld [vmem:[%s1 + $0x130] sm:$0xff]
      %v506 = vld [vmem:[%s1 + $0x138] sm:$0xff]
      %v507 = vld [vmem:[%s1 + $0x140] sm:$0xff]
      %v508 = vld [vmem:[%s1 + $0x148] sm:$0xff]
      %v509 = vld [vmem:[%s1 + $0x150] sm:$0xff]
      %v510 = vld [vmem:[%s1 + $0x158] sm:$0xff]
      %v511 = vld [vmem:[%s1 + $0x160] sm:$0xff]
      %v512 = vld [vmem:[%s1 + $0x168] sm:$0xff]
      %v513 = vld [vmem:[%s1 + $0x170] sm:$0xff]
      %v514 = vld [vmem:[%s1 + $0x178] sm:$0xff]
      %v515 = vld [vmem:[%s1 + $0x180] sm:$0xff]
      %v516 = vld [vmem:[%s1 + $0x188] sm:$0xff]
      %v517 = vld [vmem:[%s1 + $0x190] sm:$0xff]
      %v518 = vld [vmem:[%s1 + $0x198] sm:$0xff]
      %v519 = vld [vmem:[%s1 + $0x1a0] sm:$0xff]
      %v520 = vld [vmem:[%s1 + $0x1a8] sm:$0xff]
      %522 = vset.pattern.permute.xlu0 0
      %523 = vperm.xlu0 %522, %v467
      %v524 = vpop.permute.xlu0 %523
      %527 = vset.pattern.permute.xlu0 0
      %528 = vperm.xlu0 %527, %v468
      %v529 = vpop.permute.xlu0 %528
      %532 = vset.pattern.permute.xlu0 0
      %533 = vperm.xlu0 %532, %v469
      %v534 = vpop.permute.xlu0 %533
      %537 = vset.pattern.permute.xlu0 0
      %538 = vperm.xlu0 %537, %v470
      %v539 = vpop.permute.xlu0 %538
      %542 = vset.pattern.permute.xlu0 0
      %543 = vperm.xlu0 %542, %v471
      %v544 = vpop.permute.xlu0 %543
      %547 = vset.pattern.permute.xlu0 0
      %548 = vperm.xlu0 %547, %v472
      %v549 = vpop.permute.xlu0 %548
      %552 = vset.pattern.permute.xlu0 0
      %553 = vperm.xlu0 %552, %v473
      %v554 = vpop.permute.xlu0 %553
      %557 = vset.pattern.permute.xlu0 0
      %558 = vperm.xlu0 %557, %v474
      %v559 = vpop.permute.xlu0 %558
      %562 = vset.pattern.permute.xlu0 0
      %563 = vperm.xlu0 %562, %v475
      %v564 = vpop.permute.xlu0 %563
      %567 = vset.pattern.permute.xlu0 0
      %568 = vperm.xlu0 %567, %v476
      %v569 = vpop.permute.xlu0 %568
      %572 = vset.pattern.permute.xlu0 0
      %573 = vperm.xlu0 %572, %v477
      %v574 = vpop.permute.xlu0 %573
      %577 = vset.pattern.permute.xlu0 0
      %578 = vperm.xlu0 %577, %v478
      %v579 = vpop.permute.xlu0 %578
      %582 = vset.pattern.permute.xlu0 0
      %583 = vperm.xlu0 %582, %v479
      %v584 = vpop.permute.xlu0 %583
      %587 = vset.pattern.permute.xlu0 0
      %588 = vperm.xlu0 %587, %v480
      %v589 = vpop.permute.xlu0 %588
      %592 = vset.pattern.permute.xlu0 0
      %593 = vperm.xlu0 %592, %v481
      %v594 = vpop.permute.xlu0 %593
      %597 = vset.pattern.permute.xlu0 0
      %598 = vperm.xlu0 %597, %v482
      %v599 = vpop.permute.xlu0 %598
      %602 = vset.pattern.permute.xlu0 0
      %603 = vperm.xlu0 %602, %v483
      %v604 = vpop.permute.xlu0 %603
      %607 = vset.pattern.permute.xlu0 0
      %608 = vperm.xlu0 %607, %v484
      %v609 = vpop.permute.xlu0 %608
      %612 = vset.pattern.permute.xlu0 0
      %613 = vperm.xlu0 %612, %v485
      %v614 = vpop.permute.xlu0 %613
      %617 = vset.pattern.permute.xlu0 0
      %618 = vperm.xlu0 %617, %v486
      %v619 = vpop.permute.xlu0 %618
      %622 = vset.pattern.permute.xlu0 0
      %623 = vperm.xlu0 %622, %v487
      %v624 = vpop.permute.xlu0 %623
      %627 = vset.pattern.permute.xlu0 0
      %628 = vperm.xlu0 %627, %v488
      %v629 = vpop.permute.xlu0 %628
      %632 = vset.pattern.permute.xlu0 0
      %633 = vperm.xlu0 %632, %v489
      %v634 = vpop.permute.xlu0 %633
      %637 = vset.pattern.permute.xlu0 0
      %638 = vperm.xlu0 %637, %v490
      %v639 = vpop.permute.xlu0 %638
      %642 = vset.pattern.permute.xlu0 0
      %643 = vperm.xlu0 %642, %v491
      %v644 = vpop.permute.xlu0 %643
      %647 = vset.pattern.permute.xlu0 0
      %648 = vperm.xlu0 %647, %v492
      %v649 = vpop.permute.xlu0 %648
      %652 = vset.pattern.permute.xlu0 0
      %653 = vperm.xlu0 %652, %v493
      %v654 = vpop.permute.xlu0 %653
      %657 = vset.pattern.permute.xlu0 0
      %658 = vperm.xlu0 %657, %v494
      %v659 = vpop.permute.xlu0 %658
      %662 = vset.pattern.permute.xlu0 0
      %663 = vperm.xlu0 %662, %v495
      %v664 = vpop.permute.xlu0 %663
      %667 = vset.pattern.permute.xlu0 0
      %668 = vperm.xlu0 %667, %v496
      %v669 = vpop.permute.xlu0 %668
      %672 = vset.pattern.permute.xlu0 0
      %673 = vperm.xlu0 %672, %v497
      %v674 = vpop.permute.xlu0 %673
      %677 = vset.pattern.permute.xlu0 0
      %678 = vperm.xlu0 %677, %v498
      %v679 = vpop.permute.xlu0 %678
      %682 = vset.pattern.permute.xlu0 0
      %683 = vperm.xlu0 %682, %v499
      %v684 = vpop.permute.xlu0 %683
      %687 = vset.pattern.permute.xlu0 0
      %688 = vperm.xlu0 %687, %v500
      %v689 = vpop.permute.xlu0 %688
      %692 = vset.pattern.permute.xlu0 0
      %693 = vperm.xlu0 %692, %v501
      %v694 = vpop.permute.xlu0 %693
      %697 = vset.pattern.permute.xlu0 0
      %698 = vperm.xlu0 %697, %v502
      %v699 = vpop.permute.xlu0 %698
      %702 = vset.pattern.permute.xlu0 0
      %703 = vperm.xlu0 %702, %v503
      %v704 = vpop.permute.xlu0 %703
      %707 = vset.pattern.permute.xlu0 0
      %708 = vperm.xlu0 %707, %v504
      %v709 = vpop.permute.xlu0 %708
      %712 = vset.pattern.permute.xlu0 0
      %713 = vperm.xlu0 %712, %v505
      %v714 = vpop.permute.xlu0 %713
      %717 = vset.pattern.permute.xlu0 0
      %718 = vperm.xlu0 %717, %v506
      %v719 = vpop.permute.xlu0 %718
      %722 = vset.pattern.permute.xlu0 0
      %723 = vperm.xlu0 %722, %v507
      %v724 = vpop.permute.xlu0 %723
      %727 = vset.pattern.permute.xlu0 0
      %728 = vperm.xlu0 %727, %v508
      %v729 = vpop.permute.xlu0 %728
      %732 = vset.pattern.permute.xlu0 0
      %733 = vperm.xlu0 %732, %v509
      %v734 = vpop.permute.xlu0 %733
      %737 = vset.pattern.permute.xlu0 0
      %738 = vperm.xlu0 %737, %v510
      %v739 = vpop.permute.xlu0 %738
      %742 = vset.pattern.permute.xlu0 0
      %743 = vperm.xlu0 %742, %v511
      %v744 = vpop.permute.xlu0 %743
      %747 = vset.pattern.permute.xlu0 0
      %748 = vperm.xlu0 %747, %v512
      %v749 = vpop.permute.xlu0 %748
      %752 = vset.pattern.permute.xlu0 0
      %753 = vperm.xlu0 %752, %v513
      %v754 = vpop.permute.xlu0 %753
      %757 = vset.pattern.permute.xlu0 0
      %758 = vperm.xlu0 %757, %v514
      %v759 = vpop.permute.xlu0 %758
      %762 = vset.pattern.permute.xlu0 0
      %763 = vperm.xlu0 %762, %v515
      %v764 = vpop.permute.xlu0 %763
      %767 = vset.pattern.permute.xlu0 0
      %768 = vperm.xlu0 %767, %v516
      %v769 = vpop.permute.xlu0 %768
      %772 = vset.pattern.permute.xlu0 0
      %773 = vperm.xlu0 %772, %v517
      %v774 = vpop.permute.xlu0 %773
      %777 = vset.pattern.permute.xlu0 0
      %778 = vperm.xlu0 %777, %v518
      %v779 = vpop.permute.xlu0 %778
      %782 = vset.pattern.permute.xlu0 0
      %783 = vperm.xlu0 %782, %v519
      %v784 = vpop.permute.xlu0 %783
      %787 = vset.pattern.permute.xlu0 0
      %788 = vperm.xlu0 %787, %v520
      %v789 = vpop.permute.xlu0 %788
      %v791 = vmul.f32 %v359, %v524
      %v792 = vmul.f32 %v360, %v524
      %v793 = vmul.f32 %v361, %v529
      %v794 = vmul.f32 %v362, %v529
      %v795 = vmul.f32 %v363, %v534
      %v796 = vmul.f32 %v364, %v534
      %v797 = vmul.f32 %v365, %v539
      %v798 = vmul.f32 %v366, %v539
      %v799 = vmul.f32 %v367, %v544
      %v800 = vmul.f32 %v368, %v544
      %v801 = vmul.f32 %v369, %v549
      %v802 = vmul.f32 %v370, %v549
      %v803 = vmul.f32 %v371, %v554
      %v804 = vmul.f32 %v372, %v554
      %v805 = vmul.f32 %v373, %v559
      %v806 = vmul.f32 %v374, %v559
      %v807 = vmul.f32 %v375, %v564
      %v808 = vmul.f32 %v376, %v564
      %v809 = vmul.f32 %v377, %v569
      %v810 = vmul.f32 %v378, %v569
      %v811 = vmul.f32 %v379, %v574
      %v812 = vmul.f32 %v380, %v574
      %v813 = vmul.f32 %v381, %v579
      %v814 = vmul.f32 %v382, %v579
      %v815 = vmul.f32 %v383, %v584
      %v816 = vmul.f32 %v384, %v584
      %v817 = vmul.f32 %v385, %v589
      %v818 = vmul.f32 %v386, %v589
      %v819 = vmul.f32 %v387, %v594
      %v820 = vmul.f32 %v388, %v594
      %v821 = vmul.f32 %v389, %v599
      %v822 = vmul.f32 %v390, %v599
      %v823 = vmul.f32 %v391, %v604
      %v824 = vmul.f32 %v392, %v604
      %v825 = vmul.f32 %v393, %v609
      %v826 = vmul.f32 %v394, %v609
      %v827 = vmul.f32 %v395, %v614
      %v828 = vmul.f32 %v396, %v614
      %v829 = vmul.f32 %v397, %v619
      %v830 = vmul.f32 %v398, %v619
      %v831 = vmul.f32 %v399, %v624
      %v832 = vmul.f32 %v400, %v624
      %v833 = vmul.f32 %v401, %v629
      %v834 = vmul.f32 %v402, %v629
      %v835 = vmul.f32 %v403, %v634
      %v836 = vmul.f32 %v404, %v634
      %v837 = vmul.f32 %v405, %v639
      %v838 = vmul.f32 %v406, %v639
      %v839 = vmul.f32 %v407, %v644
      %v840 = vmul.f32 %v408, %v644
      %v841 = vmul.f32 %v409, %v649
      %v842 = vmul.f32 %v410, %v649
      %v843 = vmul.f32 %v411, %v654
      %v844 = vmul.f32 %v412, %v654
      %v845 = vmul.f32 %v413, %v659
      %v846 = vmul.f32 %v414, %v659
      %v847 = vmul.f32 %v415, %v664
      %v848 = vmul.f32 %v416, %v664
      %v849 = vmul.f32 %v417, %v669
      %v850 = vmul.f32 %v418, %v669
      %v851 = vmul.f32 %v419, %v674
      %v852 = vmul.f32 %v420, %v674
      %v853 = vmul.f32 %v421, %v679
      %v854 = vmul.f32 %v422, %v679
      %v855 = vmul.f32 %v423, %v684
      %v856 = vmul.f32 %v424, %v684
      %v857 = vmul.f32 %v425, %v689
      %v858 = vmul.f32 %v426, %v689
      %v859 = vmul.f32 %v427, %v694
      %v860 = vmul.f32 %v428, %v694
      %v861 = vmul.f32 %v429, %v699
      %v862 = vmul.f32 %v430, %v699
      %v863 = vmul.f32 %v431, %v704
      %v864 = vmul.f32 %v432, %v704
      %v865 = vmul.f32 %v433, %v709
      %v866 = vmul.f32 %v434, %v709
      %v867 = vmul.f32 %v435, %v714
      %v868 = vmul.f32 %v436, %v714
      %v869 = vmul.f32 %v437, %v719
      %v870 = vmul.f32 %v438, %v719
      %v871 = vmul.f32 %v439, %v724
      %v872 = vmul.f32 %v440, %v724
      %v873 = vmul.f32 %v441, %v729
      %v874 = vmul.f32 %v442, %v729
      %v875 = vmul.f32 %v443, %v734
      %v876 = vmul.f32 %v444, %v734
      %v877 = vmul.f32 %v445, %v739
      %v878 = vmul.f32 %v446, %v739
      %v879 = vmul.f32 %v447, %v744
      %v880 = vmul.f32 %v448, %v744
      %v881 = vmul.f32 %v449, %v749
      %v882 = vmul.f32 %v450, %v749
      %v883 = vmul.f32 %v451, %v754
      %v884 = vmul.f32 %v452, %v754
      %v885 = vmul.f32 %v453, %v759
      %v886 = vmul.f32 %v454, %v759
      %v887 = vmul.f32 %v455, %v764
      %v888 = vmul.f32 %v456, %v764
      %v889 = vmul.f32 %v457, %v769
      %v890 = vmul.f32 %v458, %v769
      %v891 = vmul.f32 %v459, %v774
      %v892 = vmul.f32 %v460, %v774
      %v893 = vmul.f32 %v461, %v779
      %v894 = vmul.f32 %v462, %v779
      %v895 = vmul.f32 %v463, %v784
      %v896 = vmul.f32 %v464, %v784
      %v897 = vmul.f32 %v465, %v789
      %v898 = vmul.f32 %v466, %v789
      %v899 = vld [vmem:[%s2] sm:$0xff]
      %v900 = vld [vmem:[%s2 + $0x8] sm:$0xff]
      %v901 = vld [vmem:[%s2 + $0x10] sm:$0xff]
      %v902 = vld [vmem:[%s2 + $0x18] sm:$0xff]
      %v903 = vld [vmem:[%s2 + $0x20] sm:$0xff]
      %v904 = vld [vmem:[%s2 + $0x28] sm:$0xff]
      %v905 = vld [vmem:[%s2 + $0x30] sm:$0xff]
      %v906 = vld [vmem:[%s2 + $0x38] sm:$0xff]
      %v907 = vld [vmem:[%s2 + $0x40] sm:$0xff]
      %v908 = vld [vmem:[%s2 + $0x48] sm:$0xff]
      %v909 = vld [vmem:[%s2 + $0x50] sm:$0xff]
      %v910 = vld [vmem:[%s2 + $0x58] sm:$0xff]
      %v911 = vld [vmem:[%s2 + $0x60] sm:$0xff]
      %v912 = vld [vmem:[%s2 + $0x68] sm:$0xff]
      %v913 = vld [vmem:[%s2 + $0x70] sm:$0xff]
      %v914 = vld [vmem:[%s2 + $0x78] sm:$0xff]
      %v915 = vld [vmem:[%s2 + $0x80] sm:$0xff]
      %v916 = vld [vmem:[%s2 + $0x88] sm:$0xff]
      %v917 = vld [vmem:[%s2 + $0x90] sm:$0xff]
      %v918 = vld [vmem:[%s2 + $0x98] sm:$0xff]
      %v919 = vld [vmem:[%s2 + $0xa0] sm:$0xff]
      %v920 = vld [vmem:[%s2 + $0xa8] sm:$0xff]
      %v921 = vld [vmem:[%s2 + $0xb0] sm:$0xff]
      %v922 = vld [vmem:[%s2 + $0xb8] sm:$0xff]
      %v923 = vld [vmem:[%s2 + $0xc0] sm:$0xff]
      %v924 = vld [vmem:[%s2 + $0xc8] sm:$0xff]
      %v925 = vld [vmem:[%s2 + $0xd0] sm:$0xff]
      %v926 = vld [vmem:[%s2 + $0xd8] sm:$0xff]
      %v927 = vld [vmem:[%s2 + $0xe0] sm:$0xff]
      %v928 = vld [vmem:[%s2 + $0xe8] sm:$0xff]
      %v929 = vld [vmem:[%s2 + $0xf0] sm:$0xff]
      %v930 = vld [vmem:[%s2 + $0xf8] sm:$0xff]
      %v931 = vld [vmem:[%s2 + $0x100] sm:$0xff]
      %v932 = vld [vmem:[%s2 + $0x108] sm:$0xff]
      %v933 = vld [vmem:[%s2 + $0x110] sm:$0xff]
      %v934 = vld [vmem:[%s2 + $0x118] sm:$0xff]
      %v935 = vld [vmem:[%s2 + $0x120] sm:$0xff]
      %v936 = vld [vmem:[%s2 + $0x128] sm:$0xff]
      %v937 = vld [vmem:[%s2 + $0x130] sm:$0xff]
      %v938 = vld [vmem:[%s2 + $0x138] sm:$0xff]
      %v939 = vld [vmem:[%s2 + $0x140] sm:$0xff]
      %v940 = vld [vmem:[%s2 + $0x148] sm:$0xff]
      %v941 = vld [vmem:[%s2 + $0x150] sm:$0xff]
      %v942 = vld [vmem:[%s2 + $0x158] sm:$0xff]
      %v943 = vld [vmem:[%s2 + $0x160] sm:$0xff]
      %v944 = vld [vmem:[%s2 + $0x168] sm:$0xff]
      %v945 = vld [vmem:[%s2 + $0x170] sm:$0xff]
      %v946 = vld [vmem:[%s2 + $0x178] sm:$0xff]
      %v947 = vld [vmem:[%s2 + $0x180] sm:$0xff]
      %v948 = vld [vmem:[%s2 + $0x188] sm:$0xff]
      %v949 = vld [vmem:[%s2 + $0x190] sm:$0xff]
      %v950 = vld [vmem:[%s2 + $0x198] sm:$0xff]
      %v951 = vld [vmem:[%s2 + $0x1a0] sm:$0xff]
      %v952 = vld [vmem:[%s2 + $0x1a8] sm:$0xff]
      %v953 = vld [vmem:[%s2 + $0x1b0] sm:$0xff]
      %v954 = vld [vmem:[%s2 + $0x1b8] sm:$0xff]
      %v955 = vld [vmem:[%s2 + $0x1c0] sm:$0xff]
      %v956 = vld [vmem:[%s2 + $0x1c8] sm:$0xff]
      %v957 = vld [vmem:[%s2 + $0x1d0] sm:$0xff]
      %v958 = vld [vmem:[%s2 + $0x1d8] sm:$0xff]
      %v959 = vld [vmem:[%s2 + $0x1e0] sm:$0xff]
      %v960 = vld [vmem:[%s2 + $0x1e8] sm:$0xff]
      %v961 = vld [vmem:[%s2 + $0x1f0] sm:$0xff]
      %v962 = vld [vmem:[%s2 + $0x1f8] sm:$0xff]
      %v963 = vld [vmem:[%s2 + $0x200] sm:$0xff]
      %v964 = vld [vmem:[%s2 + $0x208] sm:$0xff]
      %v965 = vld [vmem:[%s2 + $0x210] sm:$0xff]
      %v966 = vld [vmem:[%s2 + $0x218] sm:$0xff]
      %v967 = vld [vmem:[%s2 + $0x220] sm:$0xff]
      %v968 = vld [vmem:[%s2 + $0x228] sm:$0xff]
      %v969 = vld [vmem:[%s2 + $0x230] sm:$0xff]
      %v970 = vld [vmem:[%s2 + $0x238] sm:$0xff]
      %v971 = vpack.c.bf16 %v903, %v899
      %v972 = vpack.c.bf16 %v904, %v900
      %v973 = vpack.c.bf16 %v905, %v901
      %v974 = vpack.c.bf16 %v906, %v902
      %v975 = vpack.c.bf16 %v911, %v907
      %v976 = vpack.c.bf16 %v912, %v908
      %v977 = vpack.c.bf16 %v913, %v909
      %v978 = vpack.c.bf16 %v914, %v910
      %v979 = vpack.c.bf16 %v919, %v915
      %v980 = vpack.c.bf16 %v920, %v916
      %v981 = vpack.c.bf16 %v921, %v917
      %v982 = vpack.c.bf16 %v922, %v918
      %v983 = vpack.c.bf16 %v927, %v923
      %v984 = vpack.c.bf16 %v928, %v924
      %v985 = vpack.c.bf16 %v929, %v925
      %v986 = vpack.c.bf16 %v930, %v926
      %v987 = vpack.c.bf16 %v935, %v931
      %v988 = vpack.c.bf16 %v936, %v932
      %v989 = vpack.c.bf16 %v937, %v933
      %v990 = vpack.c.bf16 %v938, %v934
      %v991 = vpack.c.bf16 %v943, %v939
      %v992 = vpack.c.bf16 %v944, %v940
      %v993 = vpack.c.bf16 %v945, %v941
      %v994 = vpack.c.bf16 %v946, %v942
      %v995 = vpack.c.bf16 %v951, %v947
      %v996 = vpack.c.bf16 %v952, %v948
      %v997 = vpack.c.bf16 %v953, %v949
      %v998 = vpack.c.bf16 %v954, %v950
      %v999 = vpack.c.bf16 %v959, %v955
      %v1000 = vpack.c.bf16 %v960, %v956
      %v1001 = vpack.c.bf16 %v961, %v957
      %v1002 = vpack.c.bf16 %v962, %v958
      %v1003 = vpack.c.bf16 %v967, %v963
      %v1004 = vpack.c.bf16 %v968, %v964
      %v1005 = vpack.c.bf16 %v969, %v965
      %v1006 = vpack.c.bf16 %v970, %v966
      %v1007 = vpack.c.bf16 %v793, %v791
      %v1008 = vpack.c.bf16 %v794, %v792
      %v1009 = vpack.c.bf16 %v797, %v795
      %v1010 = vpack.c.bf16 %v798, %v796
      %v1011 = vpack.c.bf16 %v801, %v799
      %v1012 = vpack.c.bf16 %v802, %v800
      %v1013 = vpack.c.bf16 %v805, %v803
      %v1014 = vpack.c.bf16 %v806, %v804
      %v1015 = vpack.c.bf16 %v809, %v807
      %v1016 = vpack.c.bf16 %v810, %v808
      %v1017 = vpack.c.bf16 %v813, %v811
      %v1018 = vpack.c.bf16 %v814, %v812
      %v1019 = vpack.c.bf16 %v817, %v815
      %v1020 = vpack.c.bf16 %v818, %v816
      %v1021 = vpack.c.bf16 %v821, %v819
      %v1022 = vpack.c.bf16 %v822, %v820
      %v1023 = vpack.c.bf16 %v825, %v823
      %v1024 = vpack.c.bf16 %v826, %v824
      %v1025 = vpack.c.bf16 %v829, %v827
      %v1026 = vpack.c.bf16 %v830, %v828
      %v1027 = vpack.c.bf16 %v833, %v831
      %v1028 = vpack.c.bf16 %v834, %v832
      %v1029 = vpack.c.bf16 %v837, %v835
      %v1030 = vpack.c.bf16 %v838, %v836
      %v1031 = vpack.c.bf16 %v841, %v839
      %v1032 = vpack.c.bf16 %v842, %v840
      %v1033 = vpack.c.bf16 %v845, %v843
      %v1034 = vpack.c.bf16 %v846, %v844
      %v1035 = vpack.c.bf16 %v849, %v847
      %v1036 = vpack.c.bf16 %v850, %v848
      %v1037 = vpack.c.bf16 %v853, %v851
      %v1038 = vpack.c.bf16 %v854, %v852
      %v1039 = vpack.c.bf16 %v857, %v855
      %v1040 = vpack.c.bf16 %v858, %v856
      %v1041 = vpack.c.bf16 %v861, %v859
      %v1042 = vpack.c.bf16 %v862, %v860
      %v1043 = vpack.c.bf16 %v865, %v863
      %v1044 = vpack.c.bf16 %v866, %v864
      %v1045 = vpack.c.bf16 %v869, %v867
      %v1046 = vpack.c.bf16 %v870, %v868
      %v1047 = vpack.c.bf16 %v873, %v871
      %v1048 = vpack.c.bf16 %v874, %v872
      %v1049 = vpack.c.bf16 %v877, %v875
      %v1050 = vpack.c.bf16 %v878, %v876
      %v1051 = vpack.c.bf16 %v881, %v879
      %v1052 = vpack.c.bf16 %v882, %v880
      %v1053 = vpack.c.bf16 %v885, %v883
      %v1054 = vpack.c.bf16 %v886, %v884
      %v1055 = vpack.c.bf16 %v889, %v887
      %v1056 = vpack.c.bf16 %v890, %v888
      %v1057 = vpack.c.bf16 %v893, %v891
      %v1058 = vpack.c.bf16 %v894, %v892
      %v1059 = vpack.c.bf16 %v897, %v895
      %v1060 = vpack.c.bf16 %v898, %v896
      %vm1061 = vcmask 392192
      %v1063 = vsel %vm1061, %v974, 0
      %v1066 = vsel %vm1061, %v978, 0
      %v1069 = vsel %vm1061, %v982, 0
      %v1072 = vsel %vm1061, %v986, 0
      %v1075 = vsel %vm1061, %v990, 0
      %v1078 = vsel %vm1061, %v994, 0
      %v1081 = vsel %vm1061, %v998, 0
      %v1084 = vsel %vm1061, %v1002, 0
      %v1087 = vsel %vm1061, %v1006, 0
      %1089 = vmatprep.subr.bf16.mxu0 %v1008
      %1090 = vmatpush1.bf16.msra.mxu0 %v1007
      %1091 = vmatprep.subr.bf16.mxu0 %v1010
      %1092 = vmatpush1.bf16.msra.mxu0 %v1009
      %1093 = vmatprep.subr.bf16.mxu0 %v1012
      %1094 = vmatpush1.bf16.msra.mxu0 %v1011
      %1095 = vmatprep.subr.bf16.mxu0 %v1014
      %1096 = vmatpush1.bf16.msra.mxu0 %v1013
      %1097 = vmatprep.subr.bf16.mxu0 %v1016
      %1098 = vmatpush1.bf16.msra.mxu0 %v1015
      %1099 = vmatprep.subr.bf16.mxu0 %v1018
      %1100 = vmatpush1.bf16.msra.mxu0 %v1017
      %1101 = vmatprep.subr.bf16.mxu0 %v1020
      %1102 = vmatpush1.bf16.msra.mxu0 %v1019
      %1103 = vmatprep.subr.bf16.mxu0 %v1022
      %1104 = vmatpush1.bf16.msra.mxu0 %v1021
      %1105 = vmatprep.subr.bf16.mxu0 %v1024
      %1106 = vmatpush1.bf16.msra.mxu0 %v1023
      %1107 = vmatprep.subr.bf16.mxu0 %v1026
      %1108 = vmatpush1.bf16.msra.mxu0 %v1025
      %1109 = vmatprep.subr.bf16.mxu0 %v1028
      %1110 = vmatpush1.bf16.msra.mxu0 %v1027
      %1111 = vmatprep.subr.bf16.mxu0 %v1030
      %1112 = vmatpush1.bf16.msra.mxu0 %v1029
      %1113 = vmatprep.subr.bf16.mxu0 %v1032
      %1114 = vmatpush1.bf16.msra.mxu0 %v1031
      %1115 = vmatprep.subr.bf16.mxu0 %v1034
      %1116 = vmatpush1.bf16.msra.mxu0 %v1033
      %1117 = vmatprep.subr.bf16.mxu0 %v1036
      %1118 = vmatpush1.bf16.msra.mxu0 %v1035
      %1119 = vmatprep.subr.bf16.mxu0 %v1038
      %1120 = vmatpush1.bf16.msra.mxu0 %v1037
      %1121 = vmatprep.mubr.bf16.mxu0 %v972
      %1122 = vmatmul.mubr.bf16.gmra.mrb[0].mxu0 %v971
      %v1123 = vpop.f32.mrb[0].mxu0
      %v1124 = vadd.f32 0.0, %v1123
      %v1125 = vpop.f32.mrb[0].mxu0
      %v1126 = vadd.f32 0.0, %v1125
      %v1127 = vpop.f32.mrb[0].mxu0
      %v1128 = vadd.f32 0.0, %v1127
      %v1129 = vpop.f32.mrb[0].mxu0
      %v1130 = vadd.f32 0.0, %v1129
      %1131 = vmatprep.mubr.bf16.mxu0 %v976
      %1132 = vmatmul.mubr.bf16.gmra.mrb[0].mxu0 %v975
      %v1133 = vpop.f32.mrb[0].mxu0
      %v1134 = vadd.f32 0.0, %v1133
      %v1135 = vpop.f32.mrb[0].mxu0
      %v1136 = vadd.f32 0.0, %v1135
      %v1137 = vpop.f32.mrb[0].mxu0
      %v1138 = vadd.f32 0.0, %v1137
      %v1139 = vpop.f32.mrb[0].mxu0
      %v1140 = vadd.f32 0.0, %v1139
      %1141 = vmatprep.mubr.bf16.mxu0 %v980
      %1142 = vmatmul.mubr.bf16.gmra.mrb[0].mxu0 %v979
      %v1143 = vpop.f32.mrb[0].mxu0
      %v1144 = vadd.f32 0.0, %v1143
      %v1145 = vpop.f32.mrb[0].mxu0
      %v1146 = vadd.f32 0.0, %v1145
      %v1147 = vpop.f32.mrb[0].mxu0
      %v1148 = vadd.f32 0.0, %v1147
      %v1149 = vpop.f32.mrb[0].mxu0
      %v1150 = vadd.f32 0.0, %v1149
      %1151 = vmatprep.mubr.bf16.mxu0 %v984
      %1152 = vmatmul.mubr.bf16.gmra.mrb[0].mxu0 %v983
      %v1153 = vpop.f32.mrb[0].mxu0
      %v1154 = vadd.f32 0.0, %v1153
      %v1155 = vpop.f32.mrb[0].mxu0
      %v1156 = vadd.f32 0.0, %v1155
      %v1157 = vpop.f32.mrb[0].mxu0
      %v1158 = vadd.f32 0.0, %v1157
      %v1159 = vpop.f32.mrb[0].mxu0
      %v1160 = vadd.f32 0.0, %v1159
      %1161 = vmatprep.mubr.bf16.mxu0 %v988
      %1162 = vmatmul.mubr.bf16.gmra.mrb[0].mxu0 %v987
      %v1163 = vpop.f32.mrb[0].mxu0
      %v1164 = vadd.f32 0.0, %v1163
      %v1165 = vpop.f32.mrb[0].mxu0
      %v1166 = vadd.f32 0.0, %v1165
      %v1167 = vpop.f32.mrb[0].mxu0
      %v1168 = vadd.f32 0.0, %v1167
      %v1169 = vpop.f32.mrb[0].mxu0
      %v1170 = vadd.f32 0.0, %v1169
      %1171 = vmatprep.mubr.bf16.mxu0 %v992
      %1172 = vmatmul.mubr.bf16.gmra.mrb[0].mxu0 %v991
      %v1173 = vpop.f32.mrb[0].mxu0
      %v1174 = vadd.f32 0.0, %v1173
      %v1175 = vpop.f32.mrb[0].mxu0
      %v1176 = vadd.f32 0.0, %v1175
      %v1177 = vpop.f32.mrb[0].mxu0
      %v1178 = vadd.f32 0.0, %v1177
      %v1179 = vpop.f32.mrb[0].mxu0
      %v1180 = vadd.f32 0.0, %v1179
      %1181 = vmatprep.mubr.bf16.mxu0 %v996
      %1182 = vmatmul.mubr.bf16.gmra.mrb[0].mxu0 %v995
      %v1183 = vpop.f32.mrb[0].mxu0
      %v1184 = vadd.f32 0.0, %v1183
      %v1185 = vpop.f32.mrb[0].mxu0
      %v1186 = vadd.f32 0.0, %v1185
      %v1187 = vpop.f32.mrb[0].mxu0
      %v1188 = vadd.f32 0.0, %v1187
      %v1189 = vpop.f32.mrb[0].mxu0
      %v1190 = vadd.f32 0.0, %v1189
      %1191 = vmatprep.mubr.bf16.mxu0 %v1000
      %1192 = vmatmul.mubr.bf16.gmra.mrb[0].mxu0 %v999
      %v1193 = vpop.f32.mrb[0].mxu0
      %v1194 = vadd.f32 0.0, %v1193
      %v1195 = vpop.f32.mrb[0].mxu0
      %v1196 = vadd.f32 0.0, %v1195
      %v1197 = vpop.f32.mrb[0].mxu0
      %v1198 = vadd.f32 0.0, %v1197
      %v1199 = vpop.f32.mrb[0].mxu0
      %v1200 = vadd.f32 0.0, %v1199
      %1201 = vmatprep.mubr.bf16.mxu0 %v1004
      %1202 = vmatmul.mubr.bf16.gmra.mrb[0].mxu0 %v1003
      %v1203 = vpop.f32.mrb[0].mxu0
      %v1204 = vadd.f32 0.0, %v1203
      %v1205 = vpop.f32.mrb[0].mxu0
      %v1206 = vadd.f32 0.0, %v1205
      %v1207 = vpop.f32.mrb[0].mxu0
      %v1208 = vadd.f32 0.0, %v1207
      %v1209 = vpop.f32.mrb[0].mxu0
      %v1210 = vadd.f32 0.0, %v1209
      %1211 = vdwg.mxu0
      %1212 = vmatprep.subr.bf16.mxu0 %v1040
      %1213 = vmatpush1.bf16.msra.mxu0 %v1039
      %1214 = vmatprep.subr.bf16.mxu0 %v1042
      %1215 = vmatpush1.bf16.msra.mxu0 %v1041
      %1216 = vmatprep.subr.bf16.mxu0 %v1044
      %1217 = vmatpush1.bf16.msra.mxu0 %v1043
      %1218 = vmatprep.subr.bf16.mxu0 %v1046
      %1219 = vmatpush1.bf16.msra.mxu0 %v1045
      %1220 = vmatprep.subr.bf16.mxu0 %v1048
      %1221 = vmatpush1.bf16.msra.mxu0 %v1047
      %1222 = vmatprep.subr.bf16.mxu0 %v1050
      %1223 = vmatpush1.bf16.msra.mxu0 %v1049
      %1224 = vmatprep.subr.bf16.mxu0 %v1052
      %1225 = vmatpush1.bf16.msra.mxu0 %v1051
      %1226 = vmatprep.subr.bf16.mxu0 %v1054
      %1227 = vmatpush1.bf16.msra.mxu0 %v1053
      %1228 = vmatprep.subr.bf16.mxu0 %v1056
      %1229 = vmatpush1.bf16.msra.mxu0 %v1055
      %1230 = vmatprep.subr.bf16.mxu0 %v1058
      %1231 = vmatpush1.bf16.msra.mxu0 %v1057
      %1232 = vmatprep.subr.bf16.mxu0 %v1060
      %1233 = vmatpush1.bf16.msra.mxu0 %v1059
      %1234 = vmatprep.subr.bf16.mxu0 0
      %1235 = vmatpush1.bf16.msra.mxu0 0
      %1236 = vmatprep.subr.bf16.mxu0 0
      %1237 = vmatpush1.bf16.msra.mxu0 0
      %1238 = vmatprep.subr.bf16.mxu0 0
      %1239 = vmatpush1.bf16.msra.mxu0 0
      %1240 = vmatprep.subr.bf16.mxu0 0
      %1241 = vmatpush1.bf16.msra.mxu0 0
      %1242 = vmatprep.subr.bf16.mxu0 0
      %1243 = vmatpush1.bf16.msra.mxu0 0
      %1244 = vmatprep.mubr.bf16.mxu0 %v1063
      %1245 = vmatmul.mubr.bf16.gmra.mrb[0].mxu0 %v973
      %v1246 = vpop.f32.mrb[0].mxu0
      %v1247 = vadd.f32 %v1124, %v1246
      %v1248 = vpop.f32.mrb[0].mxu0
      %v1249 = vadd.f32 %v1126, %v1248
      %v1250 = vpop.f32.mrb[0].mxu0
      %v1251 = vadd.f32 %v1128, %v1250
      %v1252 = vpop.f32.mrb[0].mxu0
      %v1253 = vadd.f32 %v1130, %v1252
      %1254 = vmatprep.mubr.bf16.mxu0 %v1066
      %1255 = vmatmul.mubr.bf16.gmra.mrb[0].mxu0 %v977
      %v1256 = vpop.f32.mrb[0].mxu0
      %v1257 = vadd.f32 %v1134, %v1256
      %v1258 = vpop.f32.mrb[0].mxu0
      %v1259 = vadd.f32 %v1136, %v1258
      %v1260 = vpop.f32.mrb[0].mxu0
      %v1261 = vadd.f32 %v1138, %v1260
      %v1262 = vpop.f32.mrb[0].mxu0
      %v1263 = vadd.f32 %v1140, %v1262
      %1264 = vmatprep.mubr.bf16.mxu0 %v1069
      %1265 = vmatmul.mubr.bf16.gmra.mrb[0].mxu0 %v981
      %v1266 = vpop.f32.mrb[0].mxu0
      %v1267 = vadd.f32 %v1144, %v1266
      %v1268 = vpop.f32.mrb[0].mxu0
      %v1269 = vadd.f32 %v1146, %v1268
      %v1270 = vpop.f32.mrb[0].mxu0
      %v1271 = vadd.f32 %v1148, %v1270
      %v1272 = vpop.f32.mrb[0].mxu0
      %v1273 = vadd.f32 %v1150, %v1272
      %1274 = vmatprep.mubr.bf16.mxu0 %v1072
      %1275 = vmatmul.mubr.bf16.gmra.mrb[0].mxu0 %v985
      %v1276 = vpop.f32.mrb[0].mxu0
      %v1277 = vadd.f32 %v1154, %v1276
      %v1278 = vpop.f32.mrb[0].mxu0
      %v1279 = vadd.f32 %v1156, %v1278
      %v1280 = vpop.f32.mrb[0].mxu0
      %v1281 = vadd.f32 %v1158, %v1280
      %v1282 = vpop.f32.mrb[0].mxu0
      %v1283 = vadd.f32 %v1160, %v1282
      %1284 = vmatprep.mubr.bf16.mxu0 %v1075
      %1285 = vmatmul.mubr.bf16.gmra.mrb[0].mxu0 %v989
      %v1286 = vpop.f32.mrb[0].mxu0
      %v1287 = vadd.f32 %v1164, %v1286
      %v1288 = vpop.f32.mrb[0].mxu0
      %v1289 = vadd.f32 %v1166, %v1288
      %v1290 = vpop.f32.mrb[0].mxu0
      %v1291 = vadd.f32 %v1168, %v1290
      %v1292 = vpop.f32.mrb[0].mxu0
      %v1293 = vadd.f32 %v1170, %v1292
      %1294 = vmatprep.mubr.bf16.mxu0 %v1078
      %1295 = vmatmul.mubr.bf16.gmra.mrb[0].mxu0 %v993
      %v1296 = vpop.f32.mrb[0].mxu0
      %v1297 = vadd.f32 %v1174, %v1296
      %v1298 = vpop.f32.mrb[0].mxu0
      %v1299 = vadd.f32 %v1176, %v1298
      %v1300 = vpop.f32.mrb[0].mxu0
      %v1301 = vadd.f32 %v1178, %v1300
      %v1302 = vpop.f32.mrb[0].mxu0
      %v1303 = vadd.f32 %v1180, %v1302
      %1304 = vmatprep.mubr.bf16.mxu0 %v1081
      %1305 = vmatmul.mubr.bf16.gmra.mrb[0].mxu0 %v997
      %v1306 = vpop.f32.mrb[0].mxu0
      %v1307 = vadd.f32 %v1184, %v1306
      %v1308 = vpop.f32.mrb[0].mxu0
      %v1309 = vadd.f32 %v1186, %v1308
      %v1310 = vpop.f32.mrb[0].mxu0
      %v1311 = vadd.f32 %v1188, %v1310
      %v1312 = vpop.f32.mrb[0].mxu0
      %v1313 = vadd.f32 %v1190, %v1312
      %1314 = vmatprep.mubr.bf16.mxu0 %v1084
      %1315 = vmatmul.mubr.bf16.gmra.mrb[0].mxu0 %v1001
      %v1316 = vpop.f32.mrb[0].mxu0
      %v1317 = vadd.f32 %v1194, %v1316
      %v1318 = vpop.f32.mrb[0].mxu0
      %v1319 = vadd.f32 %v1196, %v1318
      %v1320 = vpop.f32.mrb[0].mxu0
      %v1321 = vadd.f32 %v1198, %v1320
      %v1322 = vpop.f32.mrb[0].mxu0
      %v1323 = vadd.f32 %v1200, %v1322
      %1324 = vmatprep.mubr.bf16.mxu0 %v1087
      %1325 = vmatmul.mubr.bf16.gmra.mrb[0].mxu0 %v1005
      %v1326 = vpop.f32.mrb[0].mxu0
      %v1327 = vadd.f32 %v1204, %v1326
      %v1328 = vpop.f32.mrb[0].mxu0
      %v1329 = vadd.f32 %v1206, %v1328
      %v1330 = vpop.f32.mrb[0].mxu0
      %v1331 = vadd.f32 %v1208, %v1330
      %v1332 = vpop.f32.mrb[0].mxu0
      %v1333 = vadd.f32 %v1210, %v1332
      %1334 = vdwg.mxu0
      %vm1335 = vcmask 556032
      %v1336 = vsel %vm1335, %v1249, 0.0
      %v1337 = vadd.f32 %v1247, %v1336
      %1338 = vadd.xlane.f32.xlu0 %v1337
      %v1339 = vpop.xlane.xlu0 %1338
      %v1340 = vsel %vm1335, %v1253, 0.0
      %v1341 = vadd.f32 %v1251, %v1340
      %1342 = vadd.xlane.f32.xlu0 %v1341
      %v1343 = vpop.xlane.xlu0 %1342
      %v1344 = vsel %vm1335, %v1259, 0.0
      %v1345 = vadd.f32 %v1257, %v1344
      %1346 = vadd.xlane.f32.xlu0 %v1345
      %v1347 = vpop.xlane.xlu0 %1346
      %v1348 = vsel %vm1335, %v1263, 0.0
      %v1349 = vadd.f32 %v1261, %v1348
      %1350 = vadd.xlane.f32.xlu0 %v1349
      %v1351 = vpop.xlane.xlu0 %1350
      %v1352 = vsel %vm1335, %v1269, 0.0
      %v1353 = vadd.f32 %v1267, %v1352
      %1354 = vadd.xlane.f32.xlu0 %v1353
      %v1355 = vpop.xlane.xlu0 %1354
      %v1356 = vsel %vm1335, %v1273, 0.0
      %v1357 = vadd.f32 %v1271, %v1356
      %1358 = vadd.xlane.f32.xlu0 %v1357
      %v1359 = vpop.xlane.xlu0 %1358
      %v1360 = vsel %vm1335, %v1279, 0.0
      %v1361 = vadd.f32 %v1277, %v1360
      %1362 = vadd.xlane.f32.xlu0 %v1361
      %v1363 = vpop.xlane.xlu0 %1362
      %v1364 = vsel %vm1335, %v1283, 0.0
      %v1365 = vadd.f32 %v1281, %v1364
      %1366 = vadd.xlane.f32.xlu0 %v1365
      %v1367 = vpop.xlane.xlu0 %1366
      %v1368 = vsel %vm1335, %v1289, 0.0
      %v1369 = vadd.f32 %v1287, %v1368
      %1370 = vadd.xlane.f32.xlu0 %v1369
      %v1371 = vpop.xlane.xlu0 %1370
      %v1372 = vsel %vm1335, %v1293, 0.0
      %v1373 = vadd.f32 %v1291, %v1372
      %1374 = vadd.xlane.f32.xlu0 %v1373
      %v1375 = vpop.xlane.xlu0 %1374
      %v1376 = vsel %vm1335, %v1299, 0.0
      %v1377 = vadd.f32 %v1297, %v1376
      %1378 = vadd.xlane.f32.xlu0 %v1377
      %v1379 = vpop.xlane.xlu0 %1378
      %v1380 = vsel %vm1335, %v1303, 0.0
      %v1381 = vadd.f32 %v1301, %v1380
      %1382 = vadd.xlane.f32.xlu0 %v1381
      %v1383 = vpop.xlane.xlu0 %1382
      %v1384 = vsel %vm1335, %v1309, 0.0
      %v1385 = vadd.f32 %v1307, %v1384
      %1386 = vadd.xlane.f32.xlu0 %v1385
      %v1387 = vpop.xlane.xlu0 %1386
      %v1388 = vsel %vm1335, %v1313, 0.0
      %v1389 = vadd.f32 %v1311, %v1388
      %1390 = vadd.xlane.f32.xlu0 %v1389
      %v1391 = vpop.xlane.xlu0 %1390
      %v1392 = vsel %vm1335, %v1319, 0.0
      %v1393 = vadd.f32 %v1317, %v1392
      %1394 = vadd.xlane.f32.xlu0 %v1393
      %v1395 = vpop.xlane.xlu0 %1394
      %v1396 = vsel %vm1335, %v1323, 0.0
      %v1397 = vadd.f32 %v1321, %v1396
      %1398 = vadd.xlane.f32.xlu0 %v1397
      %v1399 = vpop.xlane.xlu0 %1398
      %v1400 = vsel %vm1335, %v1329, 0.0
      %v1401 = vadd.f32 %v1327, %v1400
      %1402 = vadd.xlane.f32.xlu0 %v1401
      %v1403 = vpop.xlane.xlu0 %1402
      %v1404 = vsel %vm1335, %v1333, 0.0
      %v1405 = vadd.f32 %v1331, %v1404
      %1406 = vadd.xlane.f32.xlu0 %v1405
      %v1407 = vpop.xlane.xlu0 %1406
      %v1408 = vmul.f32 %v1339, 0.0051020407
      %v1409 = vmul.f32 %v1343, 0.0051020407
      %v1410 = vmul.f32 %v1347, 0.0051020407
      %v1411 = vmul.f32 %v1351, 0.0051020407
      %v1412 = vmul.f32 %v1355, 0.0051020407
      %v1413 = vmul.f32 %v1359, 0.0051020407
      %v1414 = vmul.f32 %v1363, 0.0051020407
      %v1415 = vmul.f32 %v1367, 0.0051020407
      %v1416 = vmul.f32 %v1371, 0.0051020407
      %v1417 = vmul.f32 %v1375, 0.0051020407
      %v1418 = vmul.f32 %v1379, 0.0051020407
      %v1419 = vmul.f32 %v1383, 0.0051020407
      %v1420 = vmul.f32 %v1387, 0.0051020407
      %v1421 = vmul.f32 %v1391, 0.0051020407
      %v1422 = vmul.f32 %v1395, 0.0051020407
      %v1423 = vmul.f32 %v1399, 0.0051020407
      %v1424 = vmul.f32 %v1403, 0.0051020407
      %v1425 = vmul.f32 %v1407, 0.0051020407
      %v1426 = vmul.f32 %v1247, %v1247
      %v1427 = vmul.f32 %v1249, %v1249
      %v1428 = vmul.f32 %v1251, %v1251
      %v1429 = vmul.f32 %v1253, %v1253
      %v1430 = vmul.f32 %v1257, %v1257
      %v1431 = vmul.f32 %v1259, %v1259
      %v1432 = vmul.f32 %v1261, %v1261
      %v1433 = vmul.f32 %v1263, %v1263
      %v1434 = vmul.f32 %v1267, %v1267
      %v1435 = vmul.f32 %v1269, %v1269
      %v1436 = vmul.f32 %v1271, %v1271
      %v1437 = vmul.f32 %v1273, %v1273
      %v1438 = vmul.f32 %v1277, %v1277
      %v1439 = vmul.f32 %v1279, %v1279
      %v1440 = vmul.f32 %v1281, %v1281
      %v1441 = vmul.f32 %v1283, %v1283
      %v1442 = vmul.f32 %v1287, %v1287
      %v1443 = vmul.f32 %v1289, %v1289
      %v1444 = vmul.f32 %v1291, %v1291
      %v1445 = vmul.f32 %v1293, %v1293
      %v1446 = vmul.f32 %v1297, %v1297
      %v1447 = vmul.f32 %v1299, %v1299
      %v1448 = vmul.f32 %v1301, %v1301
      %v1449 = vmul.f32 %v1303, %v1303
      %v1450 = vmul.f32 %v1307, %v1307
      %v1451 = vmul.f32 %v1309, %v1309
      %v1452 = vmul.f32 %v1311, %v1311
      %v1453 = vmul.f32 %v1313, %v1313
      %v1454 = vmul.f32 %v1317, %v1317
      %v1455 = vmul.f32 %v1319, %v1319
      %v1456 = vmul.f32 %v1321, %v1321
      %v1457 = vmul.f32 %v1323, %v1323
      %v1458 = vmul.f32 %v1327, %v1327
      %v1459 = vmul.f32 %v1329, %v1329
      %v1460 = vmul.f32 %v1331, %v1331
      %v1461 = vmul.f32 %v1333, %v1333
      %v1462 = vsel %vm1335, %v1427, 0.0
      %v1463 = vadd.f32 %v1426, %v1462
      %1464 = vadd.xlane.f32.xlu0 %v1463
      %v1465 = vpop.xlane.xlu0 %1464
      %v1466 = vsel %vm1335, %v1429, 0.0
      %v1467 = vadd.f32 %v1428, %v1466
      %1468 = vadd.xlane.f32.xlu0 %v1467
      %v1469 = vpop.xlane.xlu0 %1468
      %v1470 = vsel %vm1335, %v1431, 0.0
      %v1471 = vadd.f32 %v1430, %v1470
      %1472 = vadd.xlane.f32.xlu0 %v1471
      %v1473 = vpop.xlane.xlu0 %1472
      %v1474 = vsel %vm1335, %v1433, 0.0
      %v1475 = vadd.f32 %v1432, %v1474
      %1476 = vadd.xlane.f32.xlu0 %v1475
      %v1477 = vpop.xlane.xlu0 %1476
      %v1478 = vsel %vm1335, %v1435, 0.0
      %v1479 = vadd.f32 %v1434, %v1478
      %1480 = vadd.xlane.f32.xlu0 %v1479
      %v1481 = vpop.xlane.xlu0 %1480
      %v1482 = vsel %vm1335, %v1437, 0.0
      %v1483 = vadd.f32 %v1436, %v1482
      %1484 = vadd.xlane.f32.xlu0 %v1483
      %v1485 = vpop.xlane.xlu0 %1484
      %v1486 = vsel %vm1335, %v1439, 0.0
      %v1487 = vadd.f32 %v1438, %v1486
      %1488 = vadd.xlane.f32.xlu0 %v1487
      %v1489 = vpop.xlane.xlu0 %1488
      %v1490 = vsel %vm1335, %v1441, 0.0
      %v1491 = vadd.f32 %v1440, %v1490
      %1492 = vadd.xlane.f32.xlu0 %v1491
      %v1493 = vpop.xlane.xlu0 %1492
      %v1494 = vsel %vm1335, %v1443, 0.0
      %v1495 = vadd.f32 %v1442, %v1494
      %1496 = vadd.xlane.f32.xlu0 %v1495
      %v1497 = vpop.xlane.xlu0 %1496
      %v1498 = vsel %vm1335, %v1445, 0.0
      %v1499 = vadd.f32 %v1444, %v1498
      %1500 = vadd.xlane.f32.xlu0 %v1499
      %v1501 = vpop.xlane.xlu0 %1500
      %v1502 = vsel %vm1335, %v1447, 0.0
      %v1503 = vadd.f32 %v1446, %v1502
      %1504 = vadd.xlane.f32.xlu0 %v1503
      %v1505 = vpop.xlane.xlu0 %1504
      %v1506 = vsel %vm1335, %v1449, 0.0
      %v1507 = vadd.f32 %v1448, %v1506
      %1508 = vadd.xlane.f32.xlu0 %v1507
      %v1509 = vpop.xlane.xlu0 %1508
      %v1510 = vsel %vm1335, %v1451, 0.0
      %v1511 = vadd.f32 %v1450, %v1510
      %1512 = vadd.xlane.f32.xlu0 %v1511
      %v1513 = vpop.xlane.xlu0 %1512
      %v1514 = vsel %vm1335, %v1453, 0.0
      %v1515 = vadd.f32 %v1452, %v1514
      %1516 = vadd.xlane.f32.xlu0 %v1515
      %v1517 = vpop.xlane.xlu0 %1516
      %v1518 = vsel %vm1335, %v1455, 0.0
      %v1519 = vadd.f32 %v1454, %v1518
      %1520 = vadd.xlane.f32.xlu0 %v1519
      %v1521 = vpop.xlane.xlu0 %1520
      %v1522 = vsel %vm1335, %v1457, 0.0
      %v1523 = vadd.f32 %v1456, %v1522
      %1524 = vadd.xlane.f32.xlu0 %v1523
      %v1525 = vpop.xlane.xlu0 %1524
      %v1526 = vsel %vm1335, %v1459, 0.0
      %v1527 = vadd.f32 %v1458, %v1526
      %1528 = vadd.xlane.f32.xlu0 %v1527
      %v1529 = vpop.xlane.xlu0 %1528
      %v1530 = vsel %vm1335, %v1461, 0.0
      %v1531 = vadd.f32 %v1460, %v1530
      %1532 = vadd.xlane.f32.xlu0 %v1531
      %v1533 = vpop.xlane.xlu0 %1532
      %v1534 = vmul.f32 %v1465, 0.0051020407
      %v1535 = vmul.f32 %v1469, 0.0051020407
      %v1536 = vmul.f32 %v1473, 0.0051020407
      %v1537 = vmul.f32 %v1477, 0.0051020407
      %v1538 = vmul.f32 %v1481, 0.0051020407
      %v1539 = vmul.f32 %v1485, 0.0051020407
      %v1540 = vmul.f32 %v1489, 0.0051020407
      %v1541 = vmul.f32 %v1493, 0.0051020407
      %v1542 = vmul.f32 %v1497, 0.0051020407
      %v1543 = vmul.f32 %v1501, 0.0051020407
      %v1544 = vmul.f32 %v1505, 0.0051020407
      %v1545 = vmul.f32 %v1509, 0.0051020407
      %v1546 = vmul.f32 %v1513, 0.0051020407
      %v1547 = vmul.f32 %v1517, 0.0051020407
      %v1548 = vmul.f32 %v1521, 0.0051020407
      %v1549 = vmul.f32 %v1525, 0.0051020407
      %v1550 = vmul.f32 %v1529, 0.0051020407
      %v1551 = vmul.f32 %v1533, 0.0051020407
      %v1552 = vmul.f32 %v1408, %v1408
      %v1553 = vmul.f32 %v1409, %v1409
      %v1554 = vmul.f32 %v1410, %v1410
      %v1555 = vmul.f32 %v1411, %v1411
      %v1556 = vmul.f32 %v1412, %v1412
      %v1557 = vmul.f32 %v1413, %v1413
      %v1558 = vmul.f32 %v1414, %v1414
      %v1559 = vmul.f32 %v1415, %v1415
      %v1560 = vmul.f32 %v1416, %v1416
      %v1561 = vmul.f32 %v1417, %v1417
      %v1562 = vmul.f32 %v1418, %v1418
      %v1563 = vmul.f32 %v1419, %v1419
      %v1564 = vmul.f32 %v1420, %v1420
      %v1565 = vmul.f32 %v1421, %v1421
      %v1566 = vmul.f32 %v1422, %v1422
      %v1567 = vmul.f32 %v1423, %v1423
      %v1568 = vmul.f32 %v1424, %v1424
      %v1569 = vmul.f32 %v1425, %v1425
      %v1570 = vsub.f32 %v1534, %v1552
      %v1571 = vsub.f32 %v1535, %v1553
      %v1572 = vsub.f32 %v1536, %v1554
      %v1573 = vsub.f32 %v1537, %v1555
      %v1574 = vsub.f32 %v1538, %v1556
      %v1575 = vsub.f32 %v1539, %v1557
      %v1576 = vsub.f32 %v1540, %v1558
      %v1577 = vsub.f32 %v1541, %v1559
      %v1578 = vsub.f32 %v1542, %v1560
      %v1579 = vsub.f32 %v1543, %v1561
      %v1580 = vsub.f32 %v1544, %v1562
      %v1581 = vsub.f32 %v1545, %v1563
      %v1582 = vsub.f32 %v1546, %v1564
      %v1583 = vsub.f32 %v1547, %v1565
      %v1584 = vsub.f32 %v1548, %v1566
      %v1585 = vsub.f32 %v1549, %v1567
      %v1586 = vsub.f32 %v1550, %v1568
      %v1587 = vsub.f32 %v1551, %v1569
      %v1588 = vld [vmem:[%s3] sm:$0xff]
      %v1589 = vld [vmem:[%s3 + $0x8] sm:$0xff]
      %v1590 = vld [vmem:[%s3 + $0x10] sm:$0xff]
      %v1591 = vld [vmem:[%s3 + $0x18] sm:$0xff]
      %v1592 = vld [vmem:[%s3 + $0x20] sm:$0xff]
      %v1593 = vld [vmem:[%s3 + $0x28] sm:$0xff]
      %v1594 = vld [vmem:[%s3 + $0x30] sm:$0xff]
      %v1595 = vld [vmem:[%s3 + $0x38] sm:$0xff]
      %v1596 = vld [vmem:[%s3 + $0x40] sm:$0xff]
      %v1597 = vld [vmem:[%s3 + $0x48] sm:$0xff]
      %v1598 = vld [vmem:[%s3 + $0x50] sm:$0xff]
      %v1599 = vld [vmem:[%s3 + $0x58] sm:$0xff]
      %v1600 = vld [vmem:[%s3 + $0x60] sm:$0xff]
      %v1601 = vld [vmem:[%s3 + $0x68] sm:$0xff]
      %v1602 = vld [vmem:[%s3 + $0x70] sm:$0xff]
      %v1603 = vld [vmem:[%s3 + $0x78] sm:$0xff]
      %v1604 = vld [vmem:[%s3 + $0x80] sm:$0xff]
      %v1605 = vld [vmem:[%s3 + $0x88] sm:$0xff]
      %v1606 = vadd.f32 %v1570, 0.001
      %v1607 = vadd.f32 %v1571, 0.001
      %v1608 = vadd.f32 %v1572, 0.001
      %v1609 = vadd.f32 %v1573, 0.001
      %v1610 = vadd.f32 %v1574, 0.001
      %v1611 = vadd.f32 %v1575, 0.001
      %v1612 = vadd.f32 %v1576, 0.001
      %v1613 = vadd.f32 %v1577, 0.001
      %v1614 = vadd.f32 %v1578, 0.001
      %v1615 = vadd.f32 %v1579, 0.001
      %v1616 = vadd.f32 %v1580, 0.001
      %v1617 = vadd.f32 %v1581, 0.001
      %v1618 = vadd.f32 %v1582, 0.001
      %v1619 = vadd.f32 %v1583, 0.001
      %v1620 = vadd.f32 %v1584, 0.001
      %v1621 = vadd.f32 %v1585, 0.001
      %v1622 = vadd.f32 %v1586, 0.001
      %v1623 = vadd.f32 %v1587, 0.001
      %v1624 = vrsqrt.pop %v1606
      %v1625 = vrsqrt.pop %v1607
      %v1626 = vrsqrt.pop %v1608
      %v1627 = vrsqrt.pop %v1609
      %v1628 = vrsqrt.pop %v1610
      %v1629 = vrsqrt.pop %v1611
      %v1630 = vrsqrt.pop %v1612
      %v1631 = vrsqrt.pop %v1613
      %v1632 = vrsqrt.pop %v1614
      %v1633 = vrsqrt.pop %v1615
      %v1634 = vrsqrt.pop %v1616
      %v1635 = vrsqrt.pop %v1617
      %v1636 = vrsqrt.pop %v1618
      %v1637 = vrsqrt.pop %v1619
      %v1638 = vrsqrt.pop %v1620
      %v1639 = vrsqrt.pop %v1621
      %v1640 = vrsqrt.pop %v1622
      %v1641 = vrsqrt.pop %v1623
      %v1642 = vmul.f32 %v1588, %v1624
      %v1643 = vmul.f32 %v1589, %v1625
      %v1644 = vmul.f32 %v1590, %v1626
      %v1645 = vmul.f32 %v1591, %v1627
      %v1646 = vmul.f32 %v1592, %v1628
      %v1647 = vmul.f32 %v1593, %v1629
      %v1648 = vmul.f32 %v1594, %v1630
      %v1649 = vmul.f32 %v1595, %v1631
      %v1650 = vmul.f32 %v1596, %v1632
      %v1651 = vmul.f32 %v1597, %v1633
      %v1652 = vmul.f32 %v1598, %v1634
      %v1653 = vmul.f32 %v1599, %v1635
      %v1654 = vmul.f32 %v1600, %v1636
      %v1655 = vmul.f32 %v1601, %v1637
      %v1656 = vmul.f32 %v1602, %v1638
      %v1657 = vmul.f32 %v1603, %v1639
      %v1658 = vmul.f32 %v1604, %v1640
      %v1659 = vmul.f32 %v1605, %v1641
      %1661 = vset.pattern.permute.xlu0 0
      %1662 = vperm.xlu0 %1661, %v1642
      %v1663 = vpop.permute.xlu0 %1662
      %1666 = vset.pattern.permute.xlu0 0
      %1667 = vperm.xlu0 %1666, %v1643
      %v1668 = vpop.permute.xlu0 %1667
      %1671 = vset.pattern.permute.xlu0 0
      %1672 = vperm.xlu0 %1671, %v1644
      %v1673 = vpop.permute.xlu0 %1672
      %1676 = vset.pattern.permute.xlu0 0
      %1677 = vperm.xlu0 %1676, %v1645
      %v1678 = vpop.permute.xlu0 %1677
      %1681 = vset.pattern.permute.xlu0 0
      %1682 = vperm.xlu0 %1681, %v1646
      %v1683 = vpop.permute.xlu0 %1682
      %1686 = vset.pattern.permute.xlu0 0
      %1687 = vperm.xlu0 %1686, %v1647
      %v1688 = vpop.permute.xlu0 %1687
      %1691 = vset.pattern.permute.xlu0 0
      %1692 = vperm.xlu0 %1691, %v1648
      %v1693 = vpop.permute.xlu0 %1692
      %1696 = vset.pattern.permute.xlu0 0
      %1697 = vperm.xlu0 %1696, %v1649
      %v1698 = vpop.permute.xlu0 %1697
      %1701 = vset.pattern.permute.xlu0 0
      %1702 = vperm.xlu0 %1701, %v1650
      %v1703 = vpop.permute.xlu0 %1702
      %1706 = vset.pattern.permute.xlu0 0
      %1707 = vperm.xlu0 %1706, %v1651
      %v1708 = vpop.permute.xlu0 %1707
      %1711 = vset.pattern.permute.xlu0 0
      %1712 = vperm.xlu0 %1711, %v1652
      %v1713 = vpop.permute.xlu0 %1712
      %1716 = vset.pattern.permute.xlu0 0
      %1717 = vperm.xlu0 %1716, %v1653
      %v1718 = vpop.permute.xlu0 %1717
      %1721 = vset.pattern.permute.xlu0 0
      %1722 = vperm.xlu0 %1721, %v1654
      %v1723 = vpop.permute.xlu0 %1722
      %1726 = vset.pattern.permute.xlu0 0
      %1727 = vperm.xlu0 %1726, %v1655
      %v1728 = vpop.permute.xlu0 %1727
      %1731 = vset.pattern.permute.xlu0 0
      %1732 = vperm.xlu0 %1731, %v1656
      %v1733 = vpop.permute.xlu0 %1732
      %1736 = vset.pattern.permute.xlu0 0
      %1737 = vperm.xlu0 %1736, %v1657
      %v1738 = vpop.permute.xlu0 %1737
      %1741 = vset.pattern.permute.xlu0 0
      %1742 = vperm.xlu0 %1741, %v1658
      %v1743 = vpop.permute.xlu0 %1742
      %1746 = vset.pattern.permute.xlu0 0
      %1747 = vperm.xlu0 %1746, %v1659
      %v1748 = vpop.permute.xlu0 %1747
      %v1750 = vmul.f32 %v1247, %v1663
      %v1751 = vmul.f32 %v1249, %v1663
      %v1752 = vmul.f32 %v1251, %v1668
      %v1753 = vmul.f32 %v1253, %v1668
      %v1754 = vmul.f32 %v1257, %v1673
      %v1755 = vmul.f32 %v1259, %v1673
      %v1756 = vmul.f32 %v1261, %v1678
      %v1757 = vmul.f32 %v1263, %v1678
      %v1758 = vmul.f32 %v1267, %v1683
      %v1759 = vmul.f32 %v1269, %v1683
      %v1760 = vmul.f32 %v1271, %v1688
      %v1761 = vmul.f32 %v1273, %v1688
      %v1762 = vmul.f32 %v1277, %v1693
      %v1763 = vmul.f32 %v1279, %v1693
      %v1764 = vmul.f32 %v1281, %v1698
      %v1765 = vmul.f32 %v1283, %v1698
      %v1766 = vmul.f32 %v1287, %v1703
      %v1767 = vmul.f32 %v1289, %v1703
      %v1768 = vmul.f32 %v1291, %v1708
      %v1769 = vmul.f32 %v1293, %v1708
      %v1770 = vmul.f32 %v1297, %v1713
      %v1771 = vmul.f32 %v1299, %v1713
      %v1772 = vmul.f32 %v1301, %v1718
      %v1773 = vmul.f32 %v1303, %v1718
      %v1774 = vmul.f32 %v1307, %v1723
      %v1775 = vmul.f32 %v1309, %v1723
      %v1776 = vmul.f32 %v1311, %v1728
      %v1777 = vmul.f32 %v1313, %v1728
      %v1778 = vmul.f32 %v1317, %v1733
      %v1779 = vmul.f32 %v1319, %v1733
      %v1780 = vmul.f32 %v1321, %v1738
      %v1781 = vmul.f32 %v1323, %v1738
      %v1782 = vmul.f32 %v1327, %v1743
      %v1783 = vmul.f32 %v1329, %v1743
      %v1784 = vmul.f32 %v1331, %v1748
      %v1785 = vmul.f32 %v1333, %v1748
      %v1786 = vld [vmem:[%s4] sm:$0xff]
      %v1787 = vld [vmem:[%s4 + $0x8] sm:$0xff]
      %v1788 = vld [vmem:[%s4 + $0x10] sm:$0xff]
      %v1789 = vld [vmem:[%s4 + $0x18] sm:$0xff]
      %v1790 = vld [vmem:[%s4 + $0x20] sm:$0xff]
      %v1791 = vld [vmem:[%s4 + $0x28] sm:$0xff]
      %v1792 = vld [vmem:[%s4 + $0x30] sm:$0xff]
      %v1793 = vld [vmem:[%s4 + $0x38] sm:$0xff]
      %v1794 = vld [vmem:[%s4 + $0x40] sm:$0xff]
      %v1795 = vld [vmem:[%s4 + $0x48] sm:$0xff]
      %v1796 = vld [vmem:[%s4 + $0x50] sm:$0xff]
      %v1797 = vld [vmem:[%s4 + $0x58] sm:$0xff]
      %v1798 = vld [vmem:[%s4 + $0x60] sm:$0xff]
      %v1799 = vld [vmem:[%s4 + $0x68] sm:$0xff]
      %v1800 = vld [vmem:[%s4 + $0x70] sm:$0xff]
      %v1801 = vld [vmem:[%s4 + $0x78] sm:$0xff]
      %v1802 = vld [vmem:[%s4 + $0x80] sm:$0xff]
      %v1803 = vld [vmem:[%s4 + $0x88] sm:$0xff]
      %v1804 = vmul.f32 %v1408, %v1642
      %v1805 = vmul.f32 %v1409, %v1643
      %v1806 = vmul.f32 %v1410, %v1644
      %v1807 = vmul.f32 %v1411, %v1645
      %v1808 = vmul.f32 %v1412, %v1646
      %v1809 = vmul.f32 %v1413, %v1647
      %v1810 = vmul.f32 %v1414, %v1648
      %v1811 = vmul.f32 %v1415, %v1649
      %v1812 = vmul.f32 %v1416, %v1650
      %v1813 = vmul.f32 %v1417, %v1651
      %v1814 = vmul.f32 %v1418, %v1652
      %v1815 = vmul.f32 %v1419, %v1653
      %v1816 = vmul.f32 %v1420, %v1654
      %v1817 = vmul.f32 %v1421, %v1655
      %v1818 = vmul.f32 %v1422, %v1656
      %v1819 = vmul.f32 %v1423, %v1657
      %v1820 = vmul.f32 %v1424, %v1658
      %v1821 = vmul.f32 %v1425, %v1659
      %v1822 = vsub.f32 %v1786, %v1804
      %v1823 = vsub.f32 %v1787, %v1805
      %v1824 = vsub.f32 %v1788, %v1806
      %v1825 = vsub.f32 %v1789, %v1807
      %v1826 = vsub.f32 %v1790, %v1808
      %v1827 = vsub.f32 %v1791, %v1809
      %v1828 = vsub.f32 %v1792, %v1810
      %v1829 = vsub.f32 %v1793, %v1811
      %v1830 = vsub.f32 %v1794, %v1812
      %v1831 = vsub.f32 %v1795, %v1813
      %v1832 = vsub.f32 %v1796, %v1814
      %v1833 = vsub.f32 %v1797, %v1815
      %v1834 = vsub.f32 %v1798, %v1816
      %v1835 = vsub.f32 %v1799, %v1817
      %v1836 = vsub.f32 %v1800, %v1818
      %v1837 = vsub.f32 %v1801, %v1819
      %v1838 = vsub.f32 %v1802, %v1820
      %v1839 = vsub.f32 %v1803, %v1821
      %1841 = vset.pattern.permute.xlu0 0
      %1842 = vperm.xlu0 %1841, %v1822
      %v1843 = vpop.permute.xlu0 %1842
      %1846 = vset.pattern.permute.xlu0 0
      %1847 = vperm.xlu0 %1846, %v1823
      %v1848 = vpop.permute.xlu0 %1847
      %1851 = vset.pattern.permute.xlu0 0
      %1852 = vperm.xlu0 %1851, %v1824
      %v1853 = vpop.permute.xlu0 %1852
      %1856 = vset.pattern.permute.xlu0 0
      %1857 = vperm.xlu0 %1856, %v1825
      %v1858 = vpop.permute.xlu0 %1857
      %1861 = vset.pattern.permute.xlu0 0
      %1862 = vperm.xlu0 %1861, %v1826
      %v1863 = vpop.permute.xlu0 %1862
      %1866 = vset.pattern.permute.xlu0 0
      %1867 = vperm.xlu0 %1866, %v1827
      %v1868 = vpop.permute.xlu0 %1867
      %1871 = vset.pattern.permute.xlu0 0
      %1872 = vperm.xlu0 %1871, %v1828
      %v1873 = vpop.permute.xlu0 %1872
      %1876 = vset.pattern.permute.xlu0 0
      %1877 = vperm.xlu0 %1876, %v1829
      %v1878 = vpop.permute.xlu0 %1877
      %1881 = vset.pattern.permute.xlu0 0
      %1882 = vperm.xlu0 %1881, %v1830
      %v1883 = vpop.permute.xlu0 %1882
      %1886 = vset.pattern.permute.xlu0 0
      %1887 = vperm.xlu0 %1886, %v1831
      %v1888 = vpop.permute.xlu0 %1887
      %1891 = vset.pattern.permute.xlu0 0
      %1892 = vperm.xlu0 %1891, %v1832
      %v1893 = vpop.permute.xlu0 %1892
      %1896 = vset.pattern.permute.xlu0 0
      %1897 = vperm.xlu0 %1896, %v1833
      %v1898 = vpop.permute.xlu0 %1897
      %1901 = vset.pattern.permute.xlu0 0
      %1902 = vperm.xlu0 %1901, %v1834
      %v1903 = vpop.permute.xlu0 %1902
      %1906 = vset.pattern.permute.xlu0 0
      %1907 = vperm.xlu0 %1906, %v1835
      %v1908 = vpop.permute.xlu0 %1907
      %1911 = vset.pattern.permute.xlu0 0
      %1912 = vperm.xlu0 %1911, %v1836
      %v1913 = vpop.permute.xlu0 %1912
      %1916 = vset.pattern.permute.xlu0 0
      %1917 = vperm.xlu0 %1916, %v1837
      %v1918 = vpop.permute.xlu0 %1917
      %1921 = vset.pattern.permute.xlu0 0
      %1922 = vperm.xlu0 %1921, %v1838
      %v1923 = vpop.permute.xlu0 %1922
      %1926 = vset.pattern.permute.xlu0 0
      %1927 = vperm.xlu0 %1926, %v1839
      %v1928 = vpop.permute.xlu0 %1927
      %v1930 = vadd.f32 %v1750, %v1843
      %v1931 = vadd.f32 %v1751, %v1843
      %v1932 = vadd.f32 %v1752, %v1848
      %v1933 = vadd.f32 %v1753, %v1848
      %v1934 = vadd.f32 %v1754, %v1853
      %v1935 = vadd.f32 %v1755, %v1853
      %v1936 = vadd.f32 %v1756, %v1858
      %v1937 = vadd.f32 %v1757, %v1858
      %v1938 = vadd.f32 %v1758, %v1863
      %v1939 = vadd.f32 %v1759, %v1863
      %v1940 = vadd.f32 %v1760, %v1868
      %v1941 = vadd.f32 %v1761, %v1868
      %v1942 = vadd.f32 %v1762, %v1873
      %v1943 = vadd.f32 %v1763, %v1873
      %v1944 = vadd.f32 %v1764, %v1878
      %v1945 = vadd.f32 %v1765, %v1878
      %v1946 = vadd.f32 %v1766, %v1883
      %v1947 = vadd.f32 %v1767, %v1883
      %v1948 = vadd.f32 %v1768, %v1888
      %v1949 = vadd.f32 %v1769, %v1888
      %v1950 = vadd.f32 %v1770, %v1893
      %v1951 = vadd.f32 %v1771, %v1893
      %v1952 = vadd.f32 %v1772, %v1898
      %v1953 = vadd.f32 %v1773, %v1898
      %v1954 = vadd.f32 %v1774, %v1903
      %v1955 = vadd.f32 %v1775, %v1903
      %v1956 = vadd.f32 %v1776, %v1908
      %v1957 = vadd.f32 %v1777, %v1908
      %v1958 = vadd.f32 %v1778, %v1913
      %v1959 = vadd.f32 %v1779, %v1913
      %v1960 = vadd.f32 %v1780, %v1918
      %v1961 = vadd.f32 %v1781, %v1918
      %v1962 = vadd.f32 %v1782, %v1923
      %v1963 = vadd.f32 %v1783, %v1923
      %v1964 = vadd.f32 %v1784, %v1928
      %v1965 = vadd.f32 %v1785, %v1928
      %v1966 = vld [vmem:[%s337] sm:$0xff]
      %v1967 = vld [vmem:[%s337 + $0x8] sm:$0xff]
      %v1968 = vld [vmem:[%s337 + $0x10] sm:$0xff]
      %v1969 = vld [vmem:[%s337 + $0x18] sm:$0xff]
      %v1970 = vld [vmem:[%s337 + $0x20] sm:$0xff]
      %v1971 = vld [vmem:[%s337 + $0x28] sm:$0xff]
      %v1972 = vld [vmem:[%s337 + $0x30] sm:$0xff]
      %v1973 = vld [vmem:[%s337 + $0x38] sm:$0xff]
      %v1974 = vld [vmem:[%s337 + $0x40] sm:$0xff]
      %v1975 = vld [vmem:[%s337 + $0x48] sm:$0xff]
      %v1976 = vld [vmem:[%s337 + $0x50] sm:$0xff]
      %v1977 = vld [vmem:[%s337 + $0x58] sm:$0xff]
      %v1978 = vld [vmem:[%s337 + $0x60] sm:$0xff]
      %v1979 = vld [vmem:[%s337 + $0x68] sm:$0xff]
      %v1980 = vld [vmem:[%s337 + $0x70] sm:$0xff]
      %v1981 = vld [vmem:[%s337 + $0x78] sm:$0xff]
      %v1982 = vld [vmem:[%s337 + $0x80] sm:$0xff]
      %v1983 = vld [vmem:[%s337 + $0x88] sm:$0xff]
      %v1984 = vld [vmem:[%s337 + $0x90] sm:$0xff]
      %v1985 = vld [vmem:[%s337 + $0x98] sm:$0xff]
      %v1986 = vld [vmem:[%s337 + $0xa0] sm:$0xff]
      %v1987 = vld [vmem:[%s337 + $0xa8] sm:$0xff]
      %v1988 = vld [vmem:[%s337 + $0xb0] sm:$0xff]
      %v1989 = vld [vmem:[%s337 + $0xb8] sm:$0xff]
      %v1990 = vld [vmem:[%s337 + $0xc0] sm:$0xff]
      %v1991 = vld [vmem:[%s337 + $0xc8] sm:$0xff]
      %v1992 = vld [vmem:[%s337 + $0xd0] sm:$0xff]
      %v1993 = vld [vmem:[%s337 + $0xd8] sm:$0xff]
      %v1994 = vld [vmem:[%s337 + $0xe0] sm:$0xff]
      %v1995 = vld [vmem:[%s337 + $0xe8] sm:$0xff]
      %v1996 = vld [vmem:[%s337 + $0xf0] sm:$0xff]
      %v1997 = vld [vmem:[%s337 + $0xf8] sm:$0xff]
      %v1998 = vld [vmem:[%s337 + $0x100] sm:$0xff]
      %v1999 = vld [vmem:[%s337 + $0x108] sm:$0xff]
      %v2000 = vld [vmem:[%s337 + $0x110] sm:$0xff]
      %v2001 = vld [vmem:[%s337 + $0x118] sm:$0xff]
      %v2002 = vld [vmem:[%s337 + $0x120] sm:$0xff]
      %v2003 = vld [vmem:[%s337 + $0x128] sm:$0xff]
      %v2004 = vld [vmem:[%s337 + $0x130] sm:$0xff]
      %v2005 = vld [vmem:[%s337 + $0x138] sm:$0xff]
      %v2006 = vld [vmem:[%s337 + $0x140] sm:$0xff]
      %v2007 = vld [vmem:[%s337 + $0x148] sm:$0xff]
      %v2008 = vld [vmem:[%s337 + $0x150] sm:$0xff]
      %v2009 = vld [vmem:[%s337 + $0x158] sm:$0xff]
      %v2010 = vld [vmem:[%s337 + $0x160] sm:$0xff]
      %v2011 = vld [vmem:[%s337 + $0x168] sm:$0xff]
      %v2012 = vld [vmem:[%s337 + $0x170] sm:$0xff]
      %v2013 = vld [vmem:[%s337 + $0x178] sm:$0xff]
      %v2014 = vld [vmem:[%s337 + $0x180] sm:$0xff]
      %v2015 = vld [vmem:[%s337 + $0x188] sm:$0xff]
      %v2016 = vld [vmem:[%s337 + $0x190] sm:$0xff]
      %v2017 = vld [vmem:[%s337 + $0x198] sm:$0xff]
      %v2018 = vld [vmem:[%s337 + $0x1a0] sm:$0xff]
      %v2019 = vld [vmem:[%s337 + $0x1a8] sm:$0xff]
      %v2020 = vld [vmem:[%s337 + $0x1b0] sm:$0xff]
      %v2021 = vld [vmem:[%s337 + $0x1b8] sm:$0xff]
      %v2022 = vld [vmem:[%s337 + $0x1c0] sm:$0xff]
      %v2023 = vld [vmem:[%s337 + $0x1c8] sm:$0xff]
      %v2024 = vld [vmem:[%s337 + $0x1d0] sm:$0xff]
      %v2025 = vld [vmem:[%s337 + $0x1d8] sm:$0xff]
      %v2026 = vld [vmem:[%s337 + $0x1e0] sm:$0xff]
      %v2027 = vld [vmem:[%s337 + $0x1e8] sm:$0xff]
      %v2028 = vld [vmem:[%s337 + $0x1f0] sm:$0xff]
      %v2029 = vld [vmem:[%s337 + $0x1f8] sm:$0xff]
      %v2030 = vld [vmem:[%s337 + $0x200] sm:$0xff]
      %v2031 = vld [vmem:[%s337 + $0x208] sm:$0xff]
      %v2032 = vld [vmem:[%s337 + $0x210] sm:$0xff]
      %v2033 = vld [vmem:[%s337 + $0x218] sm:$0xff]
      %v2034 = vld [vmem:[%s337 + $0x220] sm:$0xff]
      %v2035 = vld [vmem:[%s337 + $0x228] sm:$0xff]
      %v2036 = vld [vmem:[%s337 + $0x230] sm:$0xff]
      %v2037 = vld [vmem:[%s337 + $0x238] sm:$0xff]
      %v2038 = vld [vmem:[%s337 + $0x240] sm:$0xff]
      %v2039 = vld [vmem:[%s337 + $0x248] sm:$0xff]
      %v2040 = vld [vmem:[%s337 + $0x250] sm:$0xff]
      %v2041 = vld [vmem:[%s337 + $0x258] sm:$0xff]
      %v2042 = vld [vmem:[%s337 + $0x260] sm:$0xff]
      %v2043 = vld [vmem:[%s337 + $0x268] sm:$0xff]
      %v2044 = vld [vmem:[%s337 + $0x270] sm:$0xff]
      %v2045 = vld [vmem:[%s337 + $0x278] sm:$0xff]
      %v2046 = vld [vmem:[%s337 + $0x280] sm:$0xff]
      %v2047 = vld [vmem:[%s337 + $0x288] sm:$0xff]
      %v2048 = vld [vmem:[%s337 + $0x290] sm:$0xff]
      %v2049 = vld [vmem:[%s337 + $0x298] sm:$0xff]
      %v2050 = vld [vmem:[%s337 + $0x2a0] sm:$0xff]
      %v2051 = vld [vmem:[%s337 + $0x2a8] sm:$0xff]
      %v2052 = vld [vmem:[%s337 + $0x2b0] sm:$0xff]
      %v2053 = vld [vmem:[%s337 + $0x2b8] sm:$0xff]
      %v2054 = vld [vmem:[%s337 + $0x2c0] sm:$0xff]
      %v2055 = vld [vmem:[%s337 + $0x2c8] sm:$0xff]
      %v2056 = vld [vmem:[%s337 + $0x2d0] sm:$0xff]
      %v2057 = vld [vmem:[%s337 + $0x2d8] sm:$0xff]
      %v2058 = vld [vmem:[%s337 + $0x2e0] sm:$0xff]
      %v2059 = vld [vmem:[%s337 + $0x2e8] sm:$0xff]
      %v2060 = vld [vmem:[%s337 + $0x2f0] sm:$0xff]
      %v2061 = vld [vmem:[%s337 + $0x2f8] sm:$0xff]
      %v2062 = vld [vmem:[%s337 + $0x300] sm:$0xff]
      %v2063 = vld [vmem:[%s337 + $0x308] sm:$0xff]
      %v2064 = vld [vmem:[%s337 + $0x310] sm:$0xff]
      %v2065 = vld [vmem:[%s337 + $0x318] sm:$0xff]
      %v2066 = vld [vmem:[%s337 + $0x320] sm:$0xff]
      %v2067 = vld [vmem:[%s337 + $0x328] sm:$0xff]
      %v2068 = vld [vmem:[%s337 + $0x330] sm:$0xff]
      %v2069 = vld [vmem:[%s337 + $0x338] sm:$0xff]
      %v2070 = vld [vmem:[%s337 + $0x340] sm:$0xff]
      %v2071 = vld [vmem:[%s337 + $0x348] sm:$0xff]
      %v2072 = vld [vmem:[%s337 + $0x350] sm:$0xff]
      %v2073 = vld [vmem:[%s337 + $0x358] sm:$0xff]
      %v2074 = vpack.c.bf16 %v1968, %v1966
      %v2075 = vpack.c.bf16 %v1969, %v1967
      %v2076 = vpack.c.bf16 %v1972, %v1970
      %v2077 = vpack.c.bf16 %v1973, %v1971
      %v2078 = vpack.c.bf16 %v1976, %v1974
      %v2079 = vpack.c.bf16 %v1977, %v1975
      %v2080 = vpack.c.bf16 %v1980, %v1978
      %v2081 = vpack.c.bf16 %v1981, %v1979
      %v2082 = vpack.c.bf16 %v1984, %v1982
      %v2083 = vpack.c.bf16 %v1985, %v1983
      %v2084 = vpack.c.bf16 %v1988, %v1986
      %v2085 = vpack.c.bf16 %v1989, %v1987
      %v2086 = vpack.c.bf16 %v1992, %v1990
      %v2087 = vpack.c.bf16 %v1993, %v1991
      %v2088 = vpack.c.bf16 %v1996, %v1994
      %v2089 = vpack.c.bf16 %v1997, %v1995
      %v2090 = vpack.c.bf16 %v2000, %v1998
      %v2091 = vpack.c.bf16 %v2001, %v1999
      %v2092 = vpack.c.bf16 %v2004, %v2002
      %v2093 = vpack.c.bf16 %v2005, %v2003
      %v2094 = vpack.c.bf16 %v2008, %v2006
      %v2095 = vpack.c.bf16 %v2009, %v2007
      %v2096 = vpack.c.bf16 %v2012, %v2010
      %v2097 = vpack.c.bf16 %v2013, %v2011
      %v2098 = vpack.c.bf16 %v2016, %v2014
      %v2099 = vpack.c.bf16 %v2017, %v2015
      %v2100 = vpack.c.bf16 %v2020, %v2018
      %v2101 = vpack.c.bf16 %v2021, %v2019
      %v2102 = vpack.c.bf16 %v2024, %v2022
      %v2103 = vpack.c.bf16 %v2025, %v2023
      %v2104 = vpack.c.bf16 %v2028, %v2026
      %v2105 = vpack.c.bf16 %v2029, %v2027
      %v2106 = vpack.c.bf16 %v2032, %v2030
      %v2107 = vpack.c.bf16 %v2033, %v2031
      %v2108 = vpack.c.bf16 %v2036, %v2034
      %v2109 = vpack.c.bf16 %v2037, %v2035
      %v2110 = vpack.c.bf16 %v2040, %v2038
      %v2111 = vpack.c.bf16 %v2041, %v2039
      %v2112 = vpack.c.bf16 %v2044, %v2042
      %v2113 = vpack.c.bf16 %v2045, %v2043
      %v2114 = vpack.c.bf16 %v2048, %v2046
      %v2115 = vpack.c.bf16 %v2049, %v2047
      %v2116 = vpack.c.bf16 %v2052, %v2050
      %v2117 = vpack.c.bf16 %v2053, %v2051
      %v2118 = vpack.c.bf16 %v2056, %v2054
      %v2119 = vpack.c.bf16 %v2057, %v2055
      %v2120 = vpack.c.bf16 %v2060, %v2058
      %v2121 = vpack.c.bf16 %v2061, %v2059
      %v2122 = vpack.c.bf16 %v2064, %v2062
      %v2123 = vpack.c.bf16 %v2065, %v2063
      %v2124 = vpack.c.bf16 %v2068, %v2066
      %v2125 = vpack.c.bf16 %v2069, %v2067
      %v2126 = vpack.c.bf16 %v2072, %v2070
      %v2127 = vpack.c.bf16 %v2073, %v2071
      %v2128 = vpack.c.bf16 %v1932, %v1930
      %v2129 = vpack.c.bf16 %v1933, %v1931
      %v2130 = vpack.c.bf16 %v1936, %v1934
      %v2131 = vpack.c.bf16 %v1937, %v1935
      %v2132 = vpack.c.bf16 %v1940, %v1938
      %v2133 = vpack.c.bf16 %v1941, %v1939
      %v2134 = vpack.c.bf16 %v1944, %v1942
      %v2135 = vpack.c.bf16 %v1945, %v1943
      %v2136 = vpack.c.bf16 %v1948, %v1946
      %v2137 = vpack.c.bf16 %v1949, %v1947
      %v2138 = vpack.c.bf16 %v1952, %v1950
      %v2139 = vpack.c.bf16 %v1953, %v1951
      %v2140 = vpack.c.bf16 %v1956, %v1954
      %v2141 = vpack.c.bf16 %v1957, %v1955
      %v2142 = vpack.c.bf16 %v1960, %v1958
      %v2143 = vpack.c.bf16 %v1961, %v1959
      %v2144 = vpack.c.bf16 %v1964, %v1962
      %v2145 = vpack.c.bf16 %v1965, %v1963
      %vm2146 = vcmask 130048
      %v2148 = vsel %vm2146, %v2075, 0
      %v2151 = vsel %vm2146, %v2077, 0
      %v2154 = vsel %vm2146, %v2079, 0
      %v2157 = vsel %vm2146, %v2081, 0
      %v2160 = vsel %vm2146, %v2083, 0
      %v2163 = vsel %vm2146, %v2085, 0
      %v2166 = vsel %vm2146, %v2087, 0
      %v2169 = vsel %vm2146, %v2089, 0
      %v2172 = vsel %vm2146, %v2091, 0
      %v2175 = vsel %vm2146, %v2093, 0
      %v2178 = vsel %vm2146, %v2095, 0
      %v2181 = vsel %vm2146, %v2097, 0
      %v2184 = vsel %vm2146, %v2099, 0
      %v2187 = vsel %vm2146, %v2101, 0
      %v2190 = vsel %vm2146, %v2103, 0
      %v2193 = vsel %vm2146, %v2105, 0
      %v2196 = vsel %vm2146, %v2107, 0
      %v2199 = vsel %vm2146, %v2109, 0
      %v2202 = vsel %vm2146, %v2111, 0
      %v2205 = vsel %vm2146, %v2113, 0
      %v2208 = vsel %vm2146, %v2115, 0
      %v2211 = vsel %vm2146, %v2117, 0
      %v2214 = vsel %vm2146, %v2119, 0
      %v2217 = vsel %vm2146, %v2121, 0
      %v2220 = vsel %vm2146, %v2123, 0
      %v2223 = vsel %vm2146, %v2125, 0
      %v2226 = vsel %vm2146, %v2127, 0
      %2228 = vmatprep.subr.bf16.mxu0 %v2129
      %2229 = vmatpush1.bf16.msra.mxu0 %v2128
      %2230 = vmatprep.subr.bf16.mxu0 %v2131
      %2231 = vmatpush1.bf16.msra.mxu0 %v2130
      %2232 = vmatprep.subr.bf16.mxu0 %v2133
      %2233 = vmatpush1.bf16.msra.mxu0 %v2132
      %2234 = vmatprep.subr.bf16.mxu0 %v2135
      %2235 = vmatpush1.bf16.msra.mxu0 %v2134
      %2236 = vmatprep.subr.bf16.mxu0 %v2137
      %2237 = vmatpush1.bf16.msra.mxu0 %v2136
      %2238 = vmatprep.subr.bf16.mxu0 %v2139
      %2239 = vmatpush1.bf16.msra.mxu0 %v2138
      %2240 = vmatprep.subr.bf16.mxu0 %v2141
      %2241 = vmatpush1.bf16.msra.mxu0 %v2140
      %2242 = vmatprep.subr.bf16.mxu0 %v2143
      %2243 = vmatpush1.bf16.msra.mxu0 %v2142
      %2244 = vmatprep.subr.bf16.mxu0 %v2145
      %2245 = vmatpush1.bf16.msra.mxu0 %v2144
      %2246 = vmatprep.subr.bf16.mxu0 0
      %2247 = vmatpush1.bf16.msra.mxu0 0
      %2248 = vmatprep.subr.bf16.mxu0 0
      %2249 = vmatpush1.bf16.msra.mxu0 0
      %2250 = vmatprep.subr.bf16.mxu0 0
      %2251 = vmatpush1.bf16.msra.mxu0 0
      %2252 = vmatprep.subr.bf16.mxu0 0
      %2253 = vmatpush1.bf16.msra.mxu0 0
      %2254 = vmatprep.subr.bf16.mxu0 0
      %2255 = vmatpush1.bf16.msra.mxu0 0
      %2256 = vmatprep.subr.bf16.mxu0 0
      %2257 = vmatpush1.bf16.msra.mxu0 0
      %2258 = vmatprep.subr.bf16.mxu0 0
      %2259 = vmatpush1.bf16.msra.mxu0 0
      %2260 = vmatprep.mubr.bf16.mxu0 %v2148
      %2261 = vmatmul.mubr.bf16.gmra.mrb[0].mxu0 %v2074
      %v2262 = vpop.f32.mrb[0].mxu0
      %v2263 = vadd.f32 0.0, %v2262
      %v2264 = vpop.f32.mrb[0].mxu0
      %v2265 = vadd.f32 0.0, %v2264
      %v2266 = vpop.f32.mrb[0].mxu0
      %v2267 = vadd.f32 0.0, %v2266
      %v2268 = vpop.f32.mrb[0].mxu0
      %v2269 = vadd.f32 0.0, %v2268
      %2270 = vmatprep.mubr.bf16.mxu0 %v2151
      %2271 = vmatmul.mubr.bf16.gmra.mrb[0].mxu0 %v2076
      %v2272 = vpop.f32.mrb[0].mxu0
      %v2273 = vadd.f32 0.0, %v2272
      %v2274 = vpop.f32.mrb[0].mxu0
      %v2275 = vadd.f32 0.0, %v2274
      %v2276 = vpop.f32.mrb[0].mxu0
      %v2277 = vadd.f32 0.0, %v2276
      %v2278 = vpop.f32.mrb[0].mxu0
      %v2279 = vadd.f32 0.0, %v2278
      %2280 = vmatprep.mubr.bf16.mxu0 %v2154
      %2281 = vmatmul.mubr.bf16.gmra.mrb[0].mxu0 %v2078
      %v2282 = vpop.f32.mrb[0].mxu0
      %v2283 = vadd.f32 0.0, %v2282
      %v2284 = vpop.f32.mrb[0].mxu0
      %v2285 = vadd.f32 0.0, %v2284
      %v2286 = vpop.f32.mrb[0].mxu0
      %v2287 = vadd.f32 0.0, %v2286
      %v2288 = vpop.f32.mrb[0].mxu0
      %v2289 = vadd.f32 0.0, %v2288
      %2290 = vmatprep.mubr.bf16.mxu0 %v2157
      %2291 = vmatmul.mubr.bf16.gmra.mrb[0].mxu0 %v2080
      %v2292 = vpop.f32.mrb[0].mxu0
      %v2293 = vadd.f32 0.0, %v2292
      %v2294 = vpop.f32.mrb[0].mxu0
      %v2295 = vadd.f32 0.0, %v2294
      %v2296 = vpop.f32.mrb[0].mxu0
      %v2297 = vadd.f32 0.0, %v2296
      %v2298 = vpop.f32.mrb[0].mxu0
      %v2299 = vadd.f32 0.0, %v2298
      %2300 = vmatprep.mubr.bf16.mxu0 %v2160
      %2301 = vmatmul.mubr.bf16.gmra.mrb[0].mxu0 %v2082
      %v2302 = vpop.f32.mrb[0].mxu0
      %v2303 = vadd.f32 0.0, %v2302
      %v2304 = vpop.f32.mrb[0].mxu0
      %v2305 = vadd.f32 0.0, %v2304
      %v2306 = vpop.f32.mrb[0].mxu0
      %v2307 = vadd.f32 0.0, %v2306
      %v2308 = vpop.f32.mrb[0].mxu0
      %v2309 = vadd.f32 0.0, %v2308
      %2310 = vmatprep.mubr.bf16.mxu0 %v2163
      %2311 = vmatmul.mubr.bf16.gmra.mrb[0].mxu0 %v2084
      %v2312 = vpop.f32.mrb[0].mxu0
      %v2313 = vadd.f32 0.0, %v2312
      %v2314 = vpop.f32.mrb[0].mxu0
      %v2315 = vadd.f32 0.0, %v2314
      %v2316 = vpop.f32.mrb[0].mxu0
      %v2317 = vadd.f32 0.0, %v2316
      %v2318 = vpop.f32.mrb[0].mxu0
      %v2319 = vadd.f32 0.0, %v2318
      %2320 = vmatprep.mubr.bf16.mxu0 %v2166
      %2321 = vmatmul.mubr.bf16.gmra.mrb[0].mxu0 %v2086
      %v2322 = vpop.f32.mrb[0].mxu0
      %v2323 = vadd.f32 0.0, %v2322
      %v2324 = vpop.f32.mrb[0].mxu0
      %v2325 = vadd.f32 0.0, %v2324
      %v2326 = vpop.f32.mrb[0].mxu0
      %v2327 = vadd.f32 0.0, %v2326
      %v2328 = vpop.f32.mrb[0].mxu0
      %v2329 = vadd.f32 0.0, %v2328
      %2330 = vmatprep.mubr.bf16.mxu0 %v2169
      %2331 = vmatmul.mubr.bf16.gmra.mrb[0].mxu0 %v2088
      %v2332 = vpop.f32.mrb[0].mxu0
      %v2333 = vadd.f32 0.0, %v2332
      %v2334 = vpop.f32.mrb[0].mxu0
      %v2335 = vadd.f32 0.0, %v2334
      %v2336 = vpop.f32.mrb[0].mxu0
      %v2337 = vadd.f32 0.0, %v2336
      %v2338 = vpop.f32.mrb[0].mxu0
      %v2339 = vadd.f32 0.0, %v2338
      %2340 = vmatprep.mubr.bf16.mxu0 %v2172
      %2341 = vmatmul.mubr.bf16.gmra.mrb[0].mxu0 %v2090
      %v2342 = vpop.f32.mrb[0].mxu0
      %v2343 = vadd.f32 0.0, %v2342
      %v2344 = vpop.f32.mrb[0].mxu0
      %v2345 = vadd.f32 0.0, %v2344
      %v2346 = vpop.f32.mrb[0].mxu0
      %v2347 = vadd.f32 0.0, %v2346
      %v2348 = vpop.f32.mrb[0].mxu0
      %v2349 = vadd.f32 0.0, %v2348
      %2350 = vmatprep.mubr.bf16.mxu0 %v2175
      %2351 = vmatmul.mubr.bf16.gmra.mrb[0].mxu0 %v2092
      %v2352 = vpop.f32.mrb[0].mxu0
      %v2353 = vadd.f32 0.0, %v2352
      %v2354 = vpop.f32.mrb[0].mxu0
      %v2355 = vadd.f32 0.0, %v2354
      %v2356 = vpop.f32.mrb[0].mxu0
      %v2357 = vadd.f32 0.0, %v2356
      %v2358 = vpop.f32.mrb[0].mxu0
      %v2359 = vadd.f32 0.0, %v2358
      %2360 = vmatprep.mubr.bf16.mxu0 %v2178
      %2361 = vmatmul.mubr.bf16.gmra.mrb[0].mxu0 %v2094
      %v2362 = vpop.f32.mrb[0].mxu0
      %v2363 = vadd.f32 0.0, %v2362
      %v2364 = vpop.f32.mrb[0].mxu0
      %v2365 = vadd.f32 0.0, %v2364
      %v2366 = vpop.f32.mrb[0].mxu0
      %v2367 = vadd.f32 0.0, %v2366
      %v2368 = vpop.f32.mrb[0].mxu0
      %v2369 = vadd.f32 0.0, %v2368
      %2370 = vmatprep.mubr.bf16.mxu0 %v2181
      %2371 = vmatmul.mubr.bf16.gmra.mrb[0].mxu0 %v2096
      %v2372 = vpop.f32.mrb[0].mxu0
      %v2373 = vadd.f32 0.0, %v2372
      %v2374 = vpop.f32.mrb[0].mxu0
      %v2375 = vadd.f32 0.0, %v2374
      %v2376 = vpop.f32.mrb[0].mxu0
      %v2377 = vadd.f32 0.0, %v2376
      %v2378 = vpop.f32.mrb[0].mxu0
      %v2379 = vadd.f32 0.0, %v2378
      %2380 = vmatprep.mubr.bf16.mxu0 %v2184
      %2381 = vmatmul.mubr.bf16.gmra.mrb[0].mxu0 %v2098
      %v2382 = vpop.f32.mrb[0].mxu0
      %v2383 = vadd.f32 0.0, %v2382
      %v2384 = vpop.f32.mrb[0].mxu0
      %v2385 = vadd.f32 0.0, %v2384
      %v2386 = vpop.f32.mrb[0].mxu0
      %v2387 = vadd.f32 0.0, %v2386
      %v2388 = vpop.f32.mrb[0].mxu0
      %v2389 = vadd.f32 0.0, %v2388
      %2390 = vmatprep.mubr.bf16.mxu0 %v2187
      %2391 = vmatmul.mubr.bf16.gmra.mrb[0].mxu0 %v2100
      %v2392 = vpop.f32.mrb[0].mxu0
      %v2393 = vadd.f32 0.0, %v2392
      %v2394 = vpop.f32.mrb[0].mxu0
      %v2395 = vadd.f32 0.0, %v2394
      %v2396 = vpop.f32.mrb[0].mxu0
      %v2397 = vadd.f32 0.0, %v2396
      %v2398 = vpop.f32.mrb[0].mxu0
      %v2399 = vadd.f32 0.0, %v2398
      %2400 = vmatprep.mubr.bf16.mxu0 %v2190
      %2401 = vmatmul.mubr.bf16.gmra.mrb[0].mxu0 %v2102
      %v2402 = vpop.f32.mrb[0].mxu0
      %v2403 = vadd.f32 0.0, %v2402
      %v2404 = vpop.f32.mrb[0].mxu0
      %v2405 = vadd.f32 0.0, %v2404
      %v2406 = vpop.f32.mrb[0].mxu0
      %v2407 = vadd.f32 0.0, %v2406
      %v2408 = vpop.f32.mrb[0].mxu0
      %v2409 = vadd.f32 0.0, %v2408
      %2410 = vmatprep.mubr.bf16.mxu0 %v2193
      %2411 = vmatmul.mubr.bf16.gmra.mrb[0].mxu0 %v2104
      %v2412 = vpop.f32.mrb[0].mxu0
      %v2413 = vadd.f32 0.0, %v2412
      %v2414 = vpop.f32.mrb[0].mxu0
      %v2415 = vadd.f32 0.0, %v2414
      %v2416 = vpop.f32.mrb[0].mxu0
      %v2417 = vadd.f32 0.0, %v2416
      %v2418 = vpop.f32.mrb[0].mxu0
      %v2419 = vadd.f32 0.0, %v2418
      %2420 = vmatprep.mubr.bf16.mxu0 %v2196
      %2421 = vmatmul.mubr.bf16.gmra.mrb[0].mxu0 %v2106
      %v2422 = vpop.f32.mrb[0].mxu0
      %v2423 = vadd.f32 0.0, %v2422
      %v2424 = vpop.f32.mrb[0].mxu0
      %v2425 = vadd.f32 0.0, %v2424
      %v2426 = vpop.f32.mrb[0].mxu0
      %v2427 = vadd.f32 0.0, %v2426
      %v2428 = vpop.f32.mrb[0].mxu0
      %v2429 = vadd.f32 0.0, %v2428
      %2430 = vmatprep.mubr.bf16.mxu0 %v2199
      %2431 = vmatmul.mubr.bf16.gmra.mrb[0].mxu0 %v2108
      %v2432 = vpop.f32.mrb[0].mxu0
      %v2433 = vadd.f32 0.0, %v2432
      %v2434 = vpop.f32.mrb[0].mxu0
      %v2435 = vadd.f32 0.0, %v2434
      %v2436 = vpop.f32.mrb[0].mxu0
      %v2437 = vadd.f32 0.0, %v2436
      %v2438 = vpop.f32.mrb[0].mxu0
      %v2439 = vadd.f32 0.0, %v2438
      %2440 = vmatprep.mubr.bf16.mxu0 %v2202
      %2441 = vmatmul.mubr.bf16.gmra.mrb[0].mxu0 %v2110
      %v2442 = vpop.f32.mrb[0].mxu0
      %v2443 = vadd.f32 0.0, %v2442
      %v2444 = vpop.f32.mrb[0].mxu0
      %v2445 = vadd.f32 0.0, %v2444
      %v2446 = vpop.f32.mrb[0].mxu0
      %v2447 = vadd.f32 0.0, %v2446
      %v2448 = vpop.f32.mrb[0].mxu0
      %v2449 = vadd.f32 0.0, %v2448
      %2450 = vmatprep.mubr.bf16.mxu0 %v2205
      %2451 = vmatmul.mubr.bf16.gmra.mrb[0].mxu0 %v2112
      %v2452 = vpop.f32.mrb[0].mxu0
      %v2453 = vadd.f32 0.0, %v2452
      %v2454 = vpop.f32.mrb[0].mxu0
      %v2455 = vadd.f32 0.0, %v2454
      %v2456 = vpop.f32.mrb[0].mxu0
      %v2457 = vadd.f32 0.0, %v2456
      %v2458 = vpop.f32.mrb[0].mxu0
      %v2459 = vadd.f32 0.0, %v2458
      %2460 = vmatprep.mubr.bf16.mxu0 %v2208
      %2461 = vmatmul.mubr.bf16.gmra.mrb[0].mxu0 %v2114
      %v2462 = vpop.f32.mrb[0].mxu0
      %v2463 = vadd.f32 0.0, %v2462
      %v2464 = vpop.f32.mrb[0].mxu0
      %v2465 = vadd.f32 0.0, %v2464
      %v2466 = vpop.f32.mrb[0].mxu0
      %v2467 = vadd.f32 0.0, %v2466
      %v2468 = vpop.f32.mrb[0].mxu0
      %v2469 = vadd.f32 0.0, %v2468
      %2470 = vmatprep.mubr.bf16.mxu0 %v2211
      %2471 = vmatmul.mubr.bf16.gmra.mrb[0].mxu0 %v2116
      %v2472 = vpop.f32.mrb[0].mxu0
      %v2473 = vadd.f32 0.0, %v2472
      %v2474 = vpop.f32.mrb[0].mxu0
      %v2475 = vadd.f32 0.0, %v2474
      %v2476 = vpop.f32.mrb[0].mxu0
      %v2477 = vadd.f32 0.0, %v2476
      %v2478 = vpop.f32.mrb[0].mxu0
      %v2479 = vadd.f32 0.0, %v2478
      %2480 = vmatprep.mubr.bf16.mxu0 %v2214
      %2481 = vmatmul.mubr.bf16.gmra.mrb[0].mxu0 %v2118
      %v2482 = vpop.f32.mrb[0].mxu0
      %v2483 = vadd.f32 0.0, %v2482
      %v2484 = vpop.f32.mrb[0].mxu0
      %v2485 = vadd.f32 0.0, %v2484
      %v2486 = vpop.f32.mrb[0].mxu0
      %v2487 = vadd.f32 0.0, %v2486
      %v2488 = vpop.f32.mrb[0].mxu0
      %v2489 = vadd.f32 0.0, %v2488
      %2490 = vmatprep.mubr.bf16.mxu0 %v2217
      %2491 = vmatmul.mubr.bf16.gmra.mrb[0].mxu0 %v2120
      %v2492 = vpop.f32.mrb[0].mxu0
      %v2493 = vadd.f32 0.0, %v2492
      %v2494 = vpop.f32.mrb[0].mxu0
      %v2495 = vadd.f32 0.0, %v2494
      %v2496 = vpop.f32.mrb[0].mxu0
      %v2497 = vadd.f32 0.0, %v2496
      %v2498 = vpop.f32.mrb[0].mxu0
      %v2499 = vadd.f32 0.0, %v2498
      %2500 = vmatprep.mubr.bf16.mxu0 %v2220
      %2501 = vmatmul.mubr.bf16.gmra.mrb[0].mxu0 %v2122
      %v2502 = vpop.f32.mrb[0].mxu0
      %v2503 = vadd.f32 0.0, %v2502
      %v2504 = vpop.f32.mrb[0].mxu0
      %v2505 = vadd.f32 0.0, %v2504
      %v2506 = vpop.f32.mrb[0].mxu0
      %v2507 = vadd.f32 0.0, %v2506
      %v2508 = vpop.f32.mrb[0].mxu0
      %v2509 = vadd.f32 0.0, %v2508
      %2510 = vmatprep.mubr.bf16.mxu0 %v2223
      %2511 = vmatmul.mubr.bf16.gmra.mrb[0].mxu0 %v2124
      %v2512 = vpop.f32.mrb[0].mxu0
      %v2513 = vadd.f32 0.0, %v2512
      %v2514 = vpop.f32.mrb[0].mxu0
      %v2515 = vadd.f32 0.0, %v2514
      %v2516 = vpop.f32.mrb[0].mxu0
      %v2517 = vadd.f32 0.0, %v2516
      %v2518 = vpop.f32.mrb[0].mxu0
      %v2519 = vadd.f32 0.0, %v2518
      %2520 = vmatprep.mubr.bf16.mxu0 %v2226
      %2521 = vmatmul.mubr.bf16.gmra.mrb[0].mxu0 %v2126
      %v2522 = vpop.f32.mrb[0].mxu0
      %v2523 = vadd.f32 0.0, %v2522
      %v2524 = vpop.f32.mrb[0].mxu0
      %v2525 = vadd.f32 0.0, %v2524
      %v2526 = vpop.f32.mrb[0].mxu0
      %v2527 = vadd.f32 0.0, %v2526
      %v2528 = vpop.f32.mrb[0].mxu0
      %v2529 = vadd.f32 0.0, %v2528
      %2530 = vdwg.mxu0
      %v2531 = vsel %vm1335, %v1931, 0.0
      %v2532 = vadd.f32 %v1930, %v2531
      %2533 = vadd.xlane.f32.xlu0 %v2532
      %v2534 = vpop.xlane.xlu0 %2533
      %v2535 = vsel %vm1335, %v1933, 0.0
      %v2536 = vadd.f32 %v1932, %v2535
      %2537 = vadd.xlane.f32.xlu0 %v2536
      %v2538 = vpop.xlane.xlu0 %2537
      %v2539 = vsel %vm1335, %v1935, 0.0
      %v2540 = vadd.f32 %v1934, %v2539
      %2541 = vadd.xlane.f32.xlu0 %v2540
      %v2542 = vpop.xlane.xlu0 %2541
      %v2543 = vsel %vm1335, %v1937, 0.0
      %v2544 = vadd.f32 %v1936, %v2543
      %2545 = vadd.xlane.f32.xlu0 %v2544
      %v2546 = vpop.xlane.xlu0 %2545
      %v2547 = vsel %vm1335, %v1939, 0.0
      %v2548 = vadd.f32 %v1938, %v2547
      %2549 = vadd.xlane.f32.xlu0 %v2548
      %v2550 = vpop.xlane.xlu0 %2549
      %v2551 = vsel %vm1335, %v1941, 0.0
      %v2552 = vadd.f32 %v1940, %v2551
      %2553 = vadd.xlane.f32.xlu0 %v2552
      %v2554 = vpop.xlane.xlu0 %2553
      %v2555 = vsel %vm1335, %v1943, 0.0
      %v2556 = vadd.f32 %v1942, %v2555
      %2557 = vadd.xlane.f32.xlu0 %v2556
      %v2558 = vpop.xlane.xlu0 %2557
      %v2559 = vsel %vm1335, %v1945, 0.0
      %v2560 = vadd.f32 %v1944, %v2559
      %2561 = vadd.xlane.f32.xlu0 %v2560
      %v2562 = vpop.xlane.xlu0 %2561
      %v2563 = vsel %vm1335, %v1947, 0.0
      %v2564 = vadd.f32 %v1946, %v2563
      %2565 = vadd.xlane.f32.xlu0 %v2564
      %v2566 = vpop.xlane.xlu0 %2565
      %v2567 = vsel %vm1335, %v1949, 0.0
      %v2568 = vadd.f32 %v1948, %v2567
      %2569 = vadd.xlane.f32.xlu0 %v2568
      %v2570 = vpop.xlane.xlu0 %2569
      %v2571 = vsel %vm1335, %v1951, 0.0
      %v2572 = vadd.f32 %v1950, %v2571
      %2573 = vadd.xlane.f32.xlu0 %v2572
      %v2574 = vpop.xlane.xlu0 %2573
      %v2575 = vsel %vm1335, %v1953, 0.0
      %v2576 = vadd.f32 %v1952, %v2575
      %2577 = vadd.xlane.f32.xlu0 %v2576
      %v2578 = vpop.xlane.xlu0 %2577
      %v2579 = vsel %vm1335, %v1955, 0.0
      %v2580 = vadd.f32 %v1954, %v2579
      %2581 = vadd.xlane.f32.xlu0 %v2580
      %v2582 = vpop.xlane.xlu0 %2581
      %v2583 = vsel %vm1335, %v1957, 0.0
      %v2584 = vadd.f32 %v1956, %v2583
      %2585 = vadd.xlane.f32.xlu0 %v2584
      %v2586 = vpop.xlane.xlu0 %2585
      %v2587 = vsel %vm1335, %v1959, 0.0
      %v2588 = vadd.f32 %v1958, %v2587
      %2589 = vadd.xlane.f32.xlu0 %v2588
      %v2590 = vpop.xlane.xlu0 %2589
      %v2591 = vsel %vm1335, %v1961, 0.0
      %v2592 = vadd.f32 %v1960, %v2591
      %2593 = vadd.xlane.f32.xlu0 %v2592
      %v2594 = vpop.xlane.xlu0 %2593
      %v2595 = vsel %vm1335, %v1963, 0.0
      %v2596 = vadd.f32 %v1962, %v2595
      %2597 = vadd.xlane.f32.xlu0 %v2596
      %v2598 = vpop.xlane.xlu0 %2597
      %v2599 = vsel %vm1335, %v1965, 0.0
      %v2600 = vadd.f32 %v1964, %v2599
      %2601 = vadd.xlane.f32.xlu0 %v2600
      %v2602 = vpop.xlane.xlu0 %2601
      %v2603 = vmul.f32 %v2534, 0.0051020407
      %v2604 = vmul.f32 %v2538, 0.0051020407
      %v2605 = vmul.f32 %v2542, 0.0051020407
      %v2606 = vmul.f32 %v2546, 0.0051020407
      %v2607 = vmul.f32 %v2550, 0.0051020407
      %v2608 = vmul.f32 %v2554, 0.0051020407
      %v2609 = vmul.f32 %v2558, 0.0051020407
      %v2610 = vmul.f32 %v2562, 0.0051020407
      %v2611 = vmul.f32 %v2566, 0.0051020407
      %v2612 = vmul.f32 %v2570, 0.0051020407
      %v2613 = vmul.f32 %v2574, 0.0051020407
      %v2614 = vmul.f32 %v2578, 0.0051020407
      %v2615 = vmul.f32 %v2582, 0.0051020407
      %v2616 = vmul.f32 %v2586, 0.0051020407
      %v2617 = vmul.f32 %v2590, 0.0051020407
      %v2618 = vmul.f32 %v2594, 0.0051020407
      %v2619 = vmul.f32 %v2598, 0.0051020407
      %v2620 = vmul.f32 %v2602, 0.0051020407
      %v2621 = vpack.c.bf16 %v2604, %v2603
      %v2622 = vpack.c.bf16 %v2606, %v2605
      %v2623 = vpack.c.bf16 %v2608, %v2607
      %v2624 = vpack.c.bf16 %v2610, %v2609
      %v2625 = vpack.c.bf16 %v2612, %v2611
      %v2626 = vpack.c.bf16 %v2614, %v2613
      %v2627 = vpack.c.bf16 %v2616, %v2615
      %v2628 = vpack.c.bf16 %v2618, %v2617
      %v2629 = vpack.c.bf16 %v2620, %v2619
      %2630 = vmatprep.subr.bf16.mxu0 0
      %2631 = vmatpush1.bf16.msra.mxu0 %v2621
      %2632 = vmatprep.subr.bf16.mxu0 0
      %2633 = vmatpush1.bf16.msra.mxu0 %v2622
      %2634 = vmatprep.subr.bf16.mxu0 0
      %2635 = vmatpush1.bf16.msra.mxu0 %v2623
      %2636 = vmatprep.subr.bf16.mxu0 0
      %2637 = vmatpush1.bf16.msra.mxu0 %v2624
      %2638 = vmatprep.subr.bf16.mxu0 0
      %2639 = vmatpush1.bf16.msra.mxu0 %v2625
      %2640 = vmatprep.subr.bf16.mxu0 0
      %2641 = vmatpush1.bf16.msra.mxu0 %v2626
      %2642 = vmatprep.subr.bf16.mxu0 0
      %2643 = vmatpush1.bf16.msra.mxu0 %v2627
      %2644 = vmatprep.subr.bf16.mxu0 0
      %2645 = vmatpush1.bf16.msra.mxu0 %v2628
      %2646 = vmatprep.subr.bf16.mxu0 0
      %2647 = vmatpush1.bf16.msra.mxu0 %v2629
      %2648 = vmatprep.subr.bf16.mxu0 0
      %2649 = vmatpush1.bf16.msra.mxu0 0
      %2650 = vmatprep.subr.bf16.mxu0 0
      %2651 = vmatpush1.bf16.msra.mxu0 0
      %2652 = vmatprep.subr.bf16.mxu0 0
      %2653 = vmatpush1.bf16.msra.mxu0 0
      %2654 = vmatprep.subr.bf16.mxu0 0
      %2655 = vmatpush1.bf16.msra.mxu0 0
      %2656 = vmatprep.subr.bf16.mxu0 0
      %2657 = vmatpush1.bf16.msra.mxu0 0
      %2658 = vmatprep.subr.bf16.mxu0 0
      %2659 = vmatpush1.bf16.msra.mxu0 0
      %2660 = vmatprep.subr.bf16.mxu0 0
      %2661 = vmatpush1.bf16.msra.mxu0 0
      %2662 = vmatprep.mubr.bf16.mxu0 %v2148
      %2663 = vmatmul.mubr.bf16.gmra.mrb[0].mxu0 %v2074
      %v2664 = vpop.f32.mrb[0].mxu0
      %v2665 = vadd.f32 0.0, %v2664
      %v2666 = vpop.f32.mrb[0].mxu0
      %v2667 = vpop.f32.mrb[0].mxu0
      %v2668 = vadd.f32 0.0, %v2667
      %v2669 = vpop.f32.mrb[0].mxu0
      %2670 = vmatprep.mubr.bf16.mxu0 %v2151
      %2671 = vmatmul.mubr.bf16.gmra.mrb[0].mxu0 %v2076
      %v2672 = vpop.f32.mrb[0].mxu0
      %v2673 = vadd.f32 0.0, %v2672
      %v2674 = vpop.f32.mrb[0].mxu0
      %v2675 = vpop.f32.mrb[0].mxu0
      %v2676 = vadd.f32 0.0, %v2675
      %v2677 = vpop.f32.mrb[0].mxu0
      %2678 = vmatprep.mubr.bf16.mxu0 %v2154
      %2679 = vmatmul.mubr.bf16.gmra.mrb[0].mxu0 %v2078
      %v2680 = vpop.f32.mrb[0].mxu0
      %v2681 = vadd.f32 0.0, %v2680
      %v2682 = vpop.f32.mrb[0].mxu0
      %v2683 = vpop.f32.mrb[0].mxu0
      %v2684 = vadd.f32 0.0, %v2683
      %v2685 = vpop.f32.mrb[0].mxu0
      %2686 = vmatprep.mubr.bf16.mxu0 %v2157
      %2687 = vmatmul.mubr.bf16.gmra.mrb[0].mxu0 %v2080
      %v2688 = vpop.f32.mrb[0].mxu0
      %v2689 = vadd.f32 0.0, %v2688
      %v2690 = vpop.f32.mrb[0].mxu0
      %v2691 = vpop.f32.mrb[0].mxu0
      %v2692 = vadd.f32 0.0, %v2691
      %v2693 = vpop.f32.mrb[0].mxu0
      %2694 = vmatprep.mubr.bf16.mxu0 %v2160
      %2695 = vmatmul.mubr.bf16.gmra.mrb[0].mxu0 %v2082
      %v2696 = vpop.f32.mrb[0].mxu0
      %v2697 = vadd.f32 0.0, %v2696
      %v2698 = vpop.f32.mrb[0].mxu0
      %v2699 = vpop.f32.mrb[0].mxu0
      %v2700 = vadd.f32 0.0, %v2699
      %v2701 = vpop.f32.mrb[0].mxu0
      %2702 = vmatprep.mubr.bf16.mxu0 %v2163
      %2703 = vmatmul.mubr.bf16.gmra.mrb[0].mxu0 %v2084
      %v2704 = vpop.f32.mrb[0].mxu0
      %v2705 = vadd.f32 0.0, %v2704
      %v2706 = vpop.f32.mrb[0].mxu0
      %v2707 = vpop.f32.mrb[0].mxu0
      %v2708 = vadd.f32 0.0, %v2707
      %v2709 = vpop.f32.mrb[0].mxu0
      %2710 = vmatprep.mubr.bf16.mxu0 %v2166
      %2711 = vmatmul.mubr.bf16.gmra.mrb[0].mxu0 %v2086
      %v2712 = vpop.f32.mrb[0].mxu0
      %v2713 = vadd.f32 0.0, %v2712
      %v2714 = vpop.f32.mrb[0].mxu0
      %v2715 = vpop.f32.mrb[0].mxu0
      %v2716 = vadd.f32 0.0, %v2715
      %v2717 = vpop.f32.mrb[0].mxu0
      %2718 = vmatprep.mubr.bf16.mxu0 %v2169
      %2719 = vmatmul.mubr.bf16.gmra.mrb[0].mxu0 %v2088
      %v2720 = vpop.f32.mrb[0].mxu0
      %v2721 = vadd.f32 0.0, %v2720
      %v2722 = vpop.f32.mrb[0].mxu0
      %v2723 = vpop.f32.mrb[0].mxu0
      %v2724 = vadd.f32 0.0, %v2723
      %v2725 = vpop.f32.mrb[0].mxu0
      %2726 = vmatprep.mubr.bf16.mxu0 %v2172
      %2727 = vmatmul.mubr.bf16.gmra.mrb[0].mxu0 %v2090
      %v2728 = vpop.f32.mrb[0].mxu0
      %v2729 = vadd.f32 0.0, %v2728
      %v2730 = vpop.f32.mrb[0].mxu0
      %v2731 = vpop.f32.mrb[0].mxu0
      %v2732 = vadd.f32 0.0, %v2731
      %v2733 = vpop.f32.mrb[0].mxu0
      %2734 = vmatprep.mubr.bf16.mxu0 %v2175
      %2735 = vmatmul.mubr.bf16.gmra.mrb[0].mxu0 %v2092
      %v2736 = vpop.f32.mrb[0].mxu0
      %v2737 = vadd.f32 0.0, %v2736
      %v2738 = vpop.f32.mrb[0].mxu0
      %v2739 = vpop.f32.mrb[0].mxu0
      %v2740 = vadd.f32 0.0, %v2739
      %v2741 = vpop.f32.mrb[0].mxu0
      %2742 = vmatprep.mubr.bf16.mxu0 %v2178
      %2743 = vmatmul.mubr.bf16.gmra.mrb[0].mxu0 %v2094
      %v2744 = vpop.f32.mrb[0].mxu0
      %v2745 = vadd.f32 0.0, %v2744
      %v2746 = vpop.f32.mrb[0].mxu0
      %v2747 = vpop.f32.mrb[0].mxu0
      %v2748 = vadd.f32 0.0, %v2747
      %v2749 = vpop.f32.mrb[0].mxu0
      %2750 = vmatprep.mubr.bf16.mxu0 %v2181
      %2751 = vmatmul.mubr.bf16.gmra.mrb[0].mxu0 %v2096
      %v2752 = vpop.f32.mrb[0].mxu0
      %v2753 = vadd.f32 0.0, %v2752
      %v2754 = vpop.f32.mrb[0].mxu0
      %v2755 = vpop.f32.mrb[0].mxu0
      %v2756 = vadd.f32 0.0, %v2755
      %v2757 = vpop.f32.mrb[0].mxu0
      %2758 = vmatprep.mubr.bf16.mxu0 %v2184
      %2759 = vmatmul.mubr.bf16.gmra.mrb[0].mxu0 %v2098
      %v2760 = vpop.f32.mrb[0].mxu0
      %v2761 = vadd.f32 0.0, %v2760
      %v2762 = vpop.f32.mrb[0].mxu0
      %v2763 = vpop.f32.mrb[0].mxu0
      %v2764 = vadd.f32 0.0, %v2763
      %v2765 = vpop.f32.mrb[0].mxu0
      %2766 = vmatprep.mubr.bf16.mxu0 %v2187
      %2767 = vmatmul.mubr.bf16.gmra.mrb[0].mxu0 %v2100
      %v2768 = vpop.f32.mrb[0].mxu0
      %v2769 = vadd.f32 0.0, %v2768
      %v2770 = vpop.f32.mrb[0].mxu0
      %v2771 = vpop.f32.mrb[0].mxu0
      %v2772 = vadd.f32 0.0, %v2771
      %v2773 = vpop.f32.mrb[0].mxu0
      %2774 = vmatprep.mubr.bf16.mxu0 %v2190
      %2775 = vmatmul.mubr.bf16.gmra.mrb[0].mxu0 %v2102
      %v2776 = vpop.f32.mrb[0].mxu0
      %v2777 = vadd.f32 0.0, %v2776
      %v2778 = vpop.f32.mrb[0].mxu0
      %v2779 = vpop.f32.mrb[0].mxu0
      %v2780 = vadd.f32 0.0, %v2779
      %v2781 = vpop.f32.mrb[0].mxu0
      %2782 = vmatprep.mubr.bf16.mxu0 %v2193
      %2783 = vmatmul.mubr.bf16.gmra.mrb[0].mxu0 %v2104
      %v2784 = vpop.f32.mrb[0].mxu0
      %v2785 = vadd.f32 0.0, %v2784
      %v2786 = vpop.f32.mrb[0].mxu0
      %v2787 = vpop.f32.mrb[0].mxu0
      %v2788 = vadd.f32 0.0, %v2787
      %v2789 = vpop.f32.mrb[0].mxu0
      %2790 = vmatprep.mubr.bf16.mxu0 %v2196
      %2791 = vmatmul.mubr.bf16.gmra.mrb[0].mxu0 %v2106
      %v2792 = vpop.f32.mrb[0].mxu0
      %v2793 = vadd.f32 0.0, %v2792
      %v2794 = vpop.f32.mrb[0].mxu0
      %v2795 = vpop.f32.mrb[0].mxu0
      %v2796 = vadd.f32 0.0, %v2795
      %v2797 = vpop.f32.mrb[0].mxu0
      %2798 = vmatprep.mubr.bf16.mxu0 %v2199
      %2799 = vmatmul.mubr.bf16.gmra.mrb[0].mxu0 %v2108
      %v2800 = vpop.f32.mrb[0].mxu0
      %v2801 = vadd.f32 0.0, %v2800
      %v2802 = vpop.f32.mrb[0].mxu0
      %v2803 = vpop.f32.mrb[0].mxu0
      %v2804 = vadd.f32 0.0, %v2803
      %v2805 = vpop.f32.mrb[0].mxu0
      %2806 = vmatprep.mubr.bf16.mxu0 %v2202
      %2807 = vmatmul.mubr.bf16.gmra.mrb[0].mxu0 %v2110
      %v2808 = vpop.f32.mrb[0].mxu0
      %v2809 = vadd.f32 0.0, %v2808
      %v2810 = vpop.f32.mrb[0].mxu0
      %v2811 = vpop.f32.mrb[0].mxu0
      %v2812 = vadd.f32 0.0, %v2811
      %v2813 = vpop.f32.mrb[0].mxu0
      %2814 = vmatprep.mubr.bf16.mxu0 %v2205
      %2815 = vmatmul.mubr.bf16.gmra.mrb[0].mxu0 %v2112
      %v2816 = vpop.f32.mrb[0].mxu0
      %v2817 = vadd.f32 0.0, %v2816
      %v2818 = vpop.f32.mrb[0].mxu0
      %v2819 = vpop.f32.mrb[0].mxu0
      %v2820 = vadd.f32 0.0, %v2819
      %v2821 = vpop.f32.mrb[0].mxu0
      %2822 = vmatprep.mubr.bf16.mxu0 %v2208
      %2823 = vmatmul.mubr.bf16.gmra.mrb[0].mxu0 %v2114
      %v2824 = vpop.f32.mrb[0].mxu0
      %v2825 = vadd.f32 0.0, %v2824
      %v2826 = vpop.f32.mrb[0].mxu0
      %v2827 = vpop.f32.mrb[0].mxu0
      %v2828 = vadd.f32 0.0, %v2827
      %v2829 = vpop.f32.mrb[0].mxu0
      %2830 = vmatprep.mubr.bf16.mxu0 %v2211
      %2831 = vmatmul.mubr.bf16.gmra.mrb[0].mxu0 %v2116
      %v2832 = vpop.f32.mrb[0].mxu0
      %v2833 = vadd.f32 0.0, %v2832
      %v2834 = vpop.f32.mrb[0].mxu0
      %v2835 = vpop.f32.mrb[0].mxu0
      %v2836 = vadd.f32 0.0, %v2835
      %v2837 = vpop.f32.mrb[0].mxu0
      %2838 = vmatprep.mubr.bf16.mxu0 %v2214
      %2839 = vmatmul.mubr.bf16.gmra.mrb[0].mxu0 %v2118
      %v2840 = vpop.f32.mrb[0].mxu0
      %v2841 = vadd.f32 0.0, %v2840
      %v2842 = vpop.f32.mrb[0].mxu0
      %v2843 = vpop.f32.mrb[0].mxu0
      %v2844 = vadd.f32 0.0, %v2843
      %v2845 = vpop.f32.mrb[0].mxu0
      %2846 = vmatprep.mubr.bf16.mxu0 %v2217
      %2847 = vmatmul.mubr.bf16.gmra.mrb[0].mxu0 %v2120
      %v2848 = vpop.f32.mrb[0].mxu0
      %v2849 = vadd.f32 0.0, %v2848
      %v2850 = vpop.f32.mrb[0].mxu0
      %v2851 = vpop.f32.mrb[0].mxu0
      %v2852 = vadd.f32 0.0, %v2851
      %v2853 = vpop.f32.mrb[0].mxu0
      %2854 = vmatprep.mubr.bf16.mxu0 %v2220
      %2855 = vmatmul.mubr.bf16.gmra.mrb[0].mxu0 %v2122
      %v2856 = vpop.f32.mrb[0].mxu0
      %v2857 = vadd.f32 0.0, %v2856
      %v2858 = vpop.f32.mrb[0].mxu0
      %v2859 = vpop.f32.mrb[0].mxu0
      %v2860 = vadd.f32 0.0, %v2859
      %v2861 = vpop.f32.mrb[0].mxu0
      %2862 = vmatprep.mubr.bf16.mxu0 %v2223
      %2863 = vmatmul.mubr.bf16.gmra.mrb[0].mxu0 %v2124
      %v2864 = vpop.f32.mrb[0].mxu0
      %v2865 = vadd.f32 0.0, %v2864
      %v2866 = vpop.f32.mrb[0].mxu0
      %v2867 = vpop.f32.mrb[0].mxu0
      %v2868 = vadd.f32 0.0, %v2867
      %v2869 = vpop.f32.mrb[0].mxu0
      %2870 = vmatprep.mubr.bf16.mxu0 %v2226
      %2871 = vmatmul.mubr.bf16.gmra.mrb[0].mxu0 %v2126
      %v2872 = vpop.f32.mrb[0].mxu0
      %v2873 = vadd.f32 0.0, %v2872
      %v2874 = vpop.f32.mrb[0].mxu0
      %v2875 = vpop.f32.mrb[0].mxu0
      %v2876 = vadd.f32 0.0, %v2875
      %v2877 = vpop.f32.mrb[0].mxu0
      %2878 = vdwg.mxu0
      %v2879 = vmul.f32 %v2263, %v2263
      %v2880 = vmul.f32 %v2265, %v2265
      %v2881 = vmul.f32 %v2267, %v2267
      %v2882 = vmul.f32 %v2269, %v2269
      %v2883 = vmul.f32 %v2273, %v2273
      %v2884 = vmul.f32 %v2275, %v2275
      %v2885 = vmul.f32 %v2277, %v2277
      %v2886 = vmul.f32 %v2279, %v2279
      %v2887 = vmul.f32 %v2283, %v2283
      %v2888 = vmul.f32 %v2285, %v2285
      %v2889 = vmul.f32 %v2287, %v2287
      %v2890 = vmul.f32 %v2289, %v2289
      %v2891 = vmul.f32 %v2293, %v2293
      %v2892 = vmul.f32 %v2295, %v2295
      %v2893 = vmul.f32 %v2297, %v2297
      %v2894 = vmul.f32 %v2299, %v2299
      %v2895 = vmul.f32 %v2303, %v2303
      %v2896 = vmul.f32 %v2305, %v2305
      %v2897 = vmul.f32 %v2307, %v2307
      %v2898 = vmul.f32 %v2309, %v2309
      %v2899 = vmul.f32 %v2313, %v2313
      %v2900 = vmul.f32 %v2315, %v2315
      %v2901 = vmul.f32 %v2317, %v2317
      %v2902 = vmul.f32 %v2319, %v2319
      %v2903 = vmul.f32 %v2323, %v2323
      %v2904 = vmul.f32 %v2325, %v2325
      %v2905 = vmul.f32 %v2327, %v2327
      %v2906 = vmul.f32 %v2329, %v2329
      %v2907 = vmul.f32 %v2333, %v2333
      %v2908 = vmul.f32 %v2335, %v2335
      %v2909 = vmul.f32 %v2337, %v2337
      %v2910 = vmul.f32 %v2339, %v2339
      %v2911 = vmul.f32 %v2343, %v2343
      %v2912 = vmul.f32 %v2345, %v2345
      %v2913 = vmul.f32 %v2347, %v2347
      %v2914 = vmul.f32 %v2349, %v2349
      %v2915 = vmul.f32 %v2353, %v2353
      %v2916 = vmul.f32 %v2355, %v2355
      %v2917 = vmul.f32 %v2357, %v2357
      %v2918 = vmul.f32 %v2359, %v2359
      %v2919 = vmul.f32 %v2363, %v2363
      %v2920 = vmul.f32 %v2365, %v2365
      %v2921 = vmul.f32 %v2367, %v2367
      %v2922 = vmul.f32 %v2369, %v2369
      %v2923 = vmul.f32 %v2373, %v2373
      %v2924 = vmul.f32 %v2375, %v2375
      %v2925 = vmul.f32 %v2377, %v2377
      %v2926 = vmul.f32 %v2379, %v2379
      %v2927 = vmul.f32 %v2383, %v2383
      %v2928 = vmul.f32 %v2385, %v2385
      %v2929 = vmul.f32 %v2387, %v2387
      %v2930 = vmul.f32 %v2389, %v2389
      %v2931 = vmul.f32 %v2393, %v2393
      %v2932 = vmul.f32 %v2395, %v2395
      %v2933 = vmul.f32 %v2397, %v2397
      %v2934 = vmul.f32 %v2399, %v2399
      %v2935 = vmul.f32 %v2403, %v2403
      %v2936 = vmul.f32 %v2405, %v2405
      %v2937 = vmul.f32 %v2407, %v2407
      %v2938 = vmul.f32 %v2409, %v2409
      %v2939 = vmul.f32 %v2413, %v2413
      %v2940 = vmul.f32 %v2415, %v2415
      %v2941 = vmul.f32 %v2417, %v2417
      %v2942 = vmul.f32 %v2419, %v2419
      %v2943 = vmul.f32 %v2423, %v2423
      %v2944 = vmul.f32 %v2425, %v2425
      %v2945 = vmul.f32 %v2427, %v2427
      %v2946 = vmul.f32 %v2429, %v2429
      %v2947 = vmul.f32 %v2433, %v2433
      %v2948 = vmul.f32 %v2435, %v2435
      %v2949 = vmul.f32 %v2437, %v2437
      %v2950 = vmul.f32 %v2439, %v2439
      %v2951 = vmul.f32 %v2443, %v2443
      %v2952 = vmul.f32 %v2445, %v2445
      %v2953 = vmul.f32 %v2447, %v2447
      %v2954 = vmul.f32 %v2449, %v2449
      %v2955 = vmul.f32 %v2453, %v2453
      %v2956 = vmul.f32 %v2455, %v2455
      %v2957 = vmul.f32 %v2457, %v2457
      %v2958 = vmul.f32 %v2459, %v2459
      %v2959 = vmul.f32 %v2463, %v2463
      %v2960 = vmul.f32 %v2465, %v2465
      %v2961 = vmul.f32 %v2467, %v2467
      %v2962 = vmul.f32 %v2469, %v2469
      %v2963 = vmul.f32 %v2473, %v2473
      %v2964 = vmul.f32 %v2475, %v2475
      %v2965 = vmul.f32 %v2477, %v2477
      %v2966 = vmul.f32 %v2479, %v2479
      %v2967 = vmul.f32 %v2483, %v2483
      %v2968 = vmul.f32 %v2485, %v2485
      %v2969 = vmul.f32 %v2487, %v2487
      %v2970 = vmul.f32 %v2489, %v2489
      %v2971 = vmul.f32 %v2493, %v2493
      %v2972 = vmul.f32 %v2495, %v2495
      %v2973 = vmul.f32 %v2497, %v2497
      %v2974 = vmul.f32 %v2499, %v2499
      %v2975 = vmul.f32 %v2503, %v2503
      %v2976 = vmul.f32 %v2505, %v2505
      %v2977 = vmul.f32 %v2507, %v2507
      %v2978 = vmul.f32 %v2509, %v2509
      %v2979 = vmul.f32 %v2513, %v2513
      %v2980 = vmul.f32 %v2515, %v2515
      %v2981 = vmul.f32 %v2517, %v2517
      %v2982 = vmul.f32 %v2519, %v2519
      %v2983 = vmul.f32 %v2523, %v2523
      %v2984 = vmul.f32 %v2525, %v2525
      %v2985 = vmul.f32 %v2527, %v2527
      %v2986 = vmul.f32 %v2529, %v2529
      %v2987 = vsel %vm1335, %v2880, 0.0
      %v2988 = vadd.f32 %v2879, %v2987
      %2989 = vadd.xlane.f32.xlu0 %v2988
      %v2990 = vpop.xlane.xlu0 %2989
      %v2991 = vsel %vm1335, %v2882, 0.0
      %v2992 = vadd.f32 %v2881, %v2991
      %2993 = vadd.xlane.f32.xlu0 %v2992
      %v2994 = vpop.xlane.xlu0 %2993
      %v2995 = vsel %vm1335, %v2884, 0.0
      %v2996 = vadd.f32 %v2883, %v2995
      %2997 = vadd.xlane.f32.xlu0 %v2996
      %v2998 = vpop.xlane.xlu0 %2997
      %v2999 = vsel %vm1335, %v2886, 0.0
      %v3000 = vadd.f32 %v2885, %v2999
      %3001 = vadd.xlane.f32.xlu0 %v3000
      %v3002 = vpop.xlane.xlu0 %3001
      %v3003 = vsel %vm1335, %v2888, 0.0
      %v3004 = vadd.f32 %v2887, %v3003
      %3005 = vadd.xlane.f32.xlu0 %v3004
      %v3006 = vpop.xlane.xlu0 %3005
      %v3007 = vsel %vm1335, %v2890, 0.0
      %v3008 = vadd.f32 %v2889, %v3007
      %3009 = vadd.xlane.f32.xlu0 %v3008
      %v3010 = vpop.xlane.xlu0 %3009
      %v3011 = vsel %vm1335, %v2892, 0.0
      %v3012 = vadd.f32 %v2891, %v3011
      %3013 = vadd.xlane.f32.xlu0 %v3012
      %v3014 = vpop.xlane.xlu0 %3013
      %v3015 = vsel %vm1335, %v2894, 0.0
      %v3016 = vadd.f32 %v2893, %v3015
      %3017 = vadd.xlane.f32.xlu0 %v3016
      %v3018 = vpop.xlane.xlu0 %3017
      %v3019 = vsel %vm1335, %v2896, 0.0
      %v3020 = vadd.f32 %v2895, %v3019
      %3021 = vadd.xlane.f32.xlu0 %v3020
      %v3022 = vpop.xlane.xlu0 %3021
      %v3023 = vsel %vm1335, %v2898, 0.0
      %v3024 = vadd.f32 %v2897, %v3023
      %3025 = vadd.xlane.f32.xlu0 %v3024
      %v3026 = vpop.xlane.xlu0 %3025
      %v3027 = vsel %vm1335, %v2900, 0.0
      %v3028 = vadd.f32 %v2899, %v3027
      %3029 = vadd.xlane.f32.xlu0 %v3028
      %v3030 = vpop.xlane.xlu0 %3029
      %v3031 = vsel %vm1335, %v2902, 0.0
      %v3032 = vadd.f32 %v2901, %v3031
      %3033 = vadd.xlane.f32.xlu0 %v3032
      %v3034 = vpop.xlane.xlu0 %3033
      %v3035 = vsel %vm1335, %v2904, 0.0
      %v3036 = vadd.f32 %v2903, %v3035
      %3037 = vadd.xlane.f32.xlu0 %v3036
      %v3038 = vpop.xlane.xlu0 %3037
      %v3039 = vsel %vm1335, %v2906, 0.0
      %v3040 = vadd.f32 %v2905, %v3039
      %3041 = vadd.xlane.f32.xlu0 %v3040
      %v3042 = vpop.xlane.xlu0 %3041
      %v3043 = vsel %vm1335, %v2908, 0.0
      %v3044 = vadd.f32 %v2907, %v3043
      %3045 = vadd.xlane.f32.xlu0 %v3044
      %v3046 = vpop.xlane.xlu0 %3045
      %v3047 = vsel %vm1335, %v2910, 0.0
      %v3048 = vadd.f32 %v2909, %v3047
      %3049 = vadd.xlane.f32.xlu0 %v3048
      %v3050 = vpop.xlane.xlu0 %3049
      %v3051 = vsel %vm1335, %v2912, 0.0
      %v3052 = vadd.f32 %v2911, %v3051
      %3053 = vadd.xlane.f32.xlu0 %v3052
      %v3054 = vpop.xlane.xlu0 %3053
      %v3055 = vsel %vm1335, %v2914, 0.0
      %v3056 = vadd.f32 %v2913, %v3055
      %3057 = vadd.xlane.f32.xlu0 %v3056
      %v3058 = vpop.xlane.xlu0 %3057
      %v3059 = vsel %vm1335, %v2916, 0.0
      %v3060 = vadd.f32 %v2915, %v3059
      %3061 = vadd.xlane.f32.xlu0 %v3060
      %v3062 = vpop.xlane.xlu0 %3061
      %v3063 = vsel %vm1335, %v2918, 0.0
      %v3064 = vadd.f32 %v2917, %v3063
      %3065 = vadd.xlane.f32.xlu0 %v3064
      %v3066 = vpop.xlane.xlu0 %3065
      %v3067 = vsel %vm1335, %v2920, 0.0
      %v3068 = vadd.f32 %v2919, %v3067
      %3069 = vadd.xlane.f32.xlu0 %v3068
      %v3070 = vpop.xlane.xlu0 %3069
      %v3071 = vsel %vm1335, %v2922, 0.0
      %v3072 = vadd.f32 %v2921, %v3071
      %3073 = vadd.xlane.f32.xlu0 %v3072
      %v3074 = vpop.xlane.xlu0 %3073
      %v3075 = vsel %vm1335, %v2924, 0.0
      %v3076 = vadd.f32 %v2923, %v3075
      %3077 = vadd.xlane.f32.xlu0 %v3076
      %v3078 = vpop.xlane.xlu0 %3077
      %v3079 = vsel %vm1335, %v2926, 0.0
      %v3080 = vadd.f32 %v2925, %v3079
      %3081 = vadd.xlane.f32.xlu0 %v3080
      %v3082 = vpop.xlane.xlu0 %3081
      %v3083 = vsel %vm1335, %v2928, 0.0
      %v3084 = vadd.f32 %v2927, %v3083
      %3085 = vadd.xlane.f32.xlu0 %v3084
      %v3086 = vpop.xlane.xlu0 %3085
      %v3087 = vsel %vm1335, %v2930, 0.0
      %v3088 = vadd.f32 %v2929, %v3087
      %3089 = vadd.xlane.f32.xlu0 %v3088
      %v3090 = vpop.xlane.xlu0 %3089
      %v3091 = vsel %vm1335, %v2932, 0.0
      %v3092 = vadd.f32 %v2931, %v3091
      %3093 = vadd.xlane.f32.xlu0 %v3092
      %v3094 = vpop.xlane.xlu0 %3093
      %v3095 = vsel %vm1335, %v2934, 0.0
      %v3096 = vadd.f32 %v2933, %v3095
      %3097 = vadd.xlane.f32.xlu0 %v3096
      %v3098 = vpop.xlane.xlu0 %3097
      %v3099 = vsel %vm1335, %v2936, 0.0
      %v3100 = vadd.f32 %v2935, %v3099
      %3101 = vadd.xlane.f32.xlu0 %v3100
      %v3102 = vpop.xlane.xlu0 %3101
      %v3103 = vsel %vm1335, %v2938, 0.0
      %v3104 = vadd.f32 %v2937, %v3103
      %3105 = vadd.xlane.f32.xlu0 %v3104
      %v3106 = vpop.xlane.xlu0 %3105
      %v3107 = vsel %vm1335, %v2940, 0.0
      %v3108 = vadd.f32 %v2939, %v3107
      %3109 = vadd.xlane.f32.xlu0 %v3108
      %v3110 = vpop.xlane.xlu0 %3109
      %v3111 = vsel %vm1335, %v2942, 0.0
      %v3112 = vadd.f32 %v2941, %v3111
      %3113 = vadd.xlane.f32.xlu0 %v3112
      %v3114 = vpop.xlane.xlu0 %3113
      %v3115 = vsel %vm1335, %v2944, 0.0
      %v3116 = vadd.f32 %v2943, %v3115
      %3117 = vadd.xlane.f32.xlu0 %v3116
      %v3118 = vpop.xlane.xlu0 %3117
      %v3119 = vsel %vm1335, %v2946, 0.0
      %v3120 = vadd.f32 %v2945, %v3119
      %3121 = vadd.xlane.f32.xlu0 %v3120
      %v3122 = vpop.xlane.xlu0 %3121
      %v3123 = vsel %vm1335, %v2948, 0.0
      %v3124 = vadd.f32 %v2947, %v3123
      %3125 = vadd.xlane.f32.xlu0 %v3124
      %v3126 = vpop.xlane.xlu0 %3125
      %v3127 = vsel %vm1335, %v2950, 0.0
      %v3128 = vadd.f32 %v2949, %v3127
      %3129 = vadd.xlane.f32.xlu0 %v3128
      %v3130 = vpop.xlane.xlu0 %3129
      %v3131 = vsel %vm1335, %v2952, 0.0
      %v3132 = vadd.f32 %v2951, %v3131
      %3133 = vadd.xlane.f32.xlu0 %v3132
      %v3134 = vpop.xlane.xlu0 %3133
      %v3135 = vsel %vm1335, %v2954, 0.0
      %v3136 = vadd.f32 %v2953, %v3135
      %3137 = vadd.xlane.f32.xlu0 %v3136
      %v3138 = vpop.xlane.xlu0 %3137
      %v3139 = vsel %vm1335, %v2956, 0.0
      %v3140 = vadd.f32 %v2955, %v3139
      %3141 = vadd.xlane.f32.xlu0 %v3140
      %v3142 = vpop.xlane.xlu0 %3141
      %v3143 = vsel %vm1335, %v2958, 0.0
      %v3144 = vadd.f32 %v2957, %v3143
      %3145 = vadd.xlane.f32.xlu0 %v3144
      %v3146 = vpop.xlane.xlu0 %3145
      %v3147 = vsel %vm1335, %v2960, 0.0
      %v3148 = vadd.f32 %v2959, %v3147
      %3149 = vadd.xlane.f32.xlu0 %v3148
      %v3150 = vpop.xlane.xlu0 %3149
      %v3151 = vsel %vm1335, %v2962, 0.0
      %v3152 = vadd.f32 %v2961, %v3151
      %3153 = vadd.xlane.f32.xlu0 %v3152
      %v3154 = vpop.xlane.xlu0 %3153
      %v3155 = vsel %vm1335, %v2964, 0.0
      %v3156 = vadd.f32 %v2963, %v3155
      %3157 = vadd.xlane.f32.xlu0 %v3156
      %v3158 = vpop.xlane.xlu0 %3157
      %v3159 = vsel %vm1335, %v2966, 0.0
      %v3160 = vadd.f32 %v2965, %v3159
      %3161 = vadd.xlane.f32.xlu0 %v3160
      %v3162 = vpop.xlane.xlu0 %3161
      %v3163 = vsel %vm1335, %v2968, 0.0
      %v3164 = vadd.f32 %v2967, %v3163
      %3165 = vadd.xlane.f32.xlu0 %v3164
      %v3166 = vpop.xlane.xlu0 %3165
      %v3167 = vsel %vm1335, %v2970, 0.0
      %v3168 = vadd.f32 %v2969, %v3167
      %3169 = vadd.xlane.f32.xlu0 %v3168
      %v3170 = vpop.xlane.xlu0 %3169
      %v3171 = vsel %vm1335, %v2972, 0.0
      %v3172 = vadd.f32 %v2971, %v3171
      %3173 = vadd.xlane.f32.xlu0 %v3172
      %v3174 = vpop.xlane.xlu0 %3173
      %v3175 = vsel %vm1335, %v2974, 0.0
      %v3176 = vadd.f32 %v2973, %v3175
      %3177 = vadd.xlane.f32.xlu0 %v3176
      %v3178 = vpop.xlane.xlu0 %3177
      %v3179 = vsel %vm1335, %v2976, 0.0
      %v3180 = vadd.f32 %v2975, %v3179
      %3181 = vadd.xlane.f32.xlu0 %v3180
      %v3182 = vpop.xlane.xlu0 %3181
      %v3183 = vsel %vm1335, %v2978, 0.0
      %v3184 = vadd.f32 %v2977, %v3183
      %3185 = vadd.xlane.f32.xlu0 %v3184
      %v3186 = vpop.xlane.xlu0 %3185
      %v3187 = vsel %vm1335, %v2980, 0.0
      %v3188 = vadd.f32 %v2979, %v3187
      %3189 = vadd.xlane.f32.xlu0 %v3188
      %v3190 = vpop.xlane.xlu0 %3189
      %v3191 = vsel %vm1335, %v2982, 0.0
      %v3192 = vadd.f32 %v2981, %v3191
      %3193 = vadd.xlane.f32.xlu0 %v3192
      %v3194 = vpop.xlane.xlu0 %3193
      %v3195 = vsel %vm1335, %v2984, 0.0
      %v3196 = vadd.f32 %v2983, %v3195
      %3197 = vadd.xlane.f32.xlu0 %v3196
      %v3198 = vpop.xlane.xlu0 %3197
      %v3199 = vsel %vm1335, %v2986, 0.0
      %v3200 = vadd.f32 %v2985, %v3199
      %3201 = vadd.xlane.f32.xlu0 %v3200
      %v3202 = vpop.xlane.xlu0 %3201
      %v3203 = vmul.f32 %v2990, 0.0051020407
      %v3204 = vmul.f32 %v2994, 0.0051020407
      %v3205 = vmul.f32 %v2998, 0.0051020407
      %v3206 = vmul.f32 %v3002, 0.0051020407
      %v3207 = vmul.f32 %v3006, 0.0051020407
      %v3208 = vmul.f32 %v3010, 0.0051020407
      %v3209 = vmul.f32 %v3014, 0.0051020407
      %v3210 = vmul.f32 %v3018, 0.0051020407
      %v3211 = vmul.f32 %v3022, 0.0051020407
      %v3212 = vmul.f32 %v3026, 0.0051020407
      %v3213 = vmul.f32 %v3030, 0.0051020407
      %v3214 = vmul.f32 %v3034, 0.0051020407
      %v3215 = vmul.f32 %v3038, 0.0051020407
      %v3216 = vmul.f32 %v3042, 0.0051020407
      %v3217 = vmul.f32 %v3046, 0.0051020407
      %v3218 = vmul.f32 %v3050, 0.0051020407
      %v3219 = vmul.f32 %v3054, 0.0051020407
      %v3220 = vmul.f32 %v3058, 0.0051020407
      %v3221 = vmul.f32 %v3062, 0.0051020407
      %v3222 = vmul.f32 %v3066, 0.0051020407
      %v3223 = vmul.f32 %v3070, 0.0051020407
      %v3224 = vmul.f32 %v3074, 0.0051020407
      %v3225 = vmul.f32 %v3078, 0.0051020407
      %v3226 = vmul.f32 %v3082, 0.0051020407
      %v3227 = vmul.f32 %v3086, 0.0051020407
      %v3228 = vmul.f32 %v3090, 0.0051020407
      %v3229 = vmul.f32 %v3094, 0.0051020407
      %v3230 = vmul.f32 %v3098, 0.0051020407
      %v3231 = vmul.f32 %v3102, 0.0051020407
      %v3232 = vmul.f32 %v3106, 0.0051020407
      %v3233 = vmul.f32 %v3110, 0.0051020407
      %v3234 = vmul.f32 %v3114, 0.0051020407
      %v3235 = vmul.f32 %v3118, 0.0051020407
      %v3236 = vmul.f32 %v3122, 0.0051020407
      %v3237 = vmul.f32 %v3126, 0.0051020407
      %v3238 = vmul.f32 %v3130, 0.0051020407
      %v3239 = vmul.f32 %v3134, 0.0051020407
      %v3240 = vmul.f32 %v3138, 0.0051020407
      %v3241 = vmul.f32 %v3142, 0.0051020407
      %v3242 = vmul.f32 %v3146, 0.0051020407
      %v3243 = vmul.f32 %v3150, 0.0051020407
      %v3244 = vmul.f32 %v3154, 0.0051020407
      %v3245 = vmul.f32 %v3158, 0.0051020407
      %v3246 = vmul.f32 %v3162, 0.0051020407
      %v3247 = vmul.f32 %v3166, 0.0051020407
      %v3248 = vmul.f32 %v3170, 0.0051020407
      %v3249 = vmul.f32 %v3174, 0.0051020407
      %v3250 = vmul.f32 %v3178, 0.0051020407
      %v3251 = vmul.f32 %v3182, 0.0051020407
      %v3252 = vmul.f32 %v3186, 0.0051020407
      %v3253 = vmul.f32 %v3190, 0.0051020407
      %v3254 = vmul.f32 %v3194, 0.0051020407
      %v3255 = vmul.f32 %v3198, 0.0051020407
      %v3256 = vmul.f32 %v3202, 0.0051020407
      %v3257 = vmul.f32 %v2665, %v2665
      %v3258 = vmul.f32 %v2668, %v2668
      %v3259 = vmul.f32 %v2673, %v2673
      %v3260 = vmul.f32 %v2676, %v2676
      %v3261 = vmul.f32 %v2681, %v2681
      %v3262 = vmul.f32 %v2684, %v2684
      %v3263 = vmul.f32 %v2689, %v2689
      %v3264 = vmul.f32 %v2692, %v2692
      %v3265 = vmul.f32 %v2697, %v2697
      %v3266 = vmul.f32 %v2700, %v2700
      %v3267 = vmul.f32 %v2705, %v2705
      %v3268 = vmul.f32 %v2708, %v2708
      %v3269 = vmul.f32 %v2713, %v2713
      %v3270 = vmul.f32 %v2716, %v2716
      %v3271 = vmul.f32 %v2721, %v2721
      %v3272 = vmul.f32 %v2724, %v2724
      %v3273 = vmul.f32 %v2729, %v2729
      %v3274 = vmul.f32 %v2732, %v2732
      %v3275 = vmul.f32 %v2737, %v2737
      %v3276 = vmul.f32 %v2740, %v2740
      %v3277 = vmul.f32 %v2745, %v2745
      %v3278 = vmul.f32 %v2748, %v2748
      %v3279 = vmul.f32 %v2753, %v2753
      %v3280 = vmul.f32 %v2756, %v2756
      %v3281 = vmul.f32 %v2761, %v2761
      %v3282 = vmul.f32 %v2764, %v2764
      %v3283 = vmul.f32 %v2769, %v2769
      %v3284 = vmul.f32 %v2772, %v2772
      %v3285 = vmul.f32 %v2777, %v2777
      %v3286 = vmul.f32 %v2780, %v2780
      %v3287 = vmul.f32 %v2785, %v2785
      %v3288 = vmul.f32 %v2788, %v2788
      %v3289 = vmul.f32 %v2793, %v2793
      %v3290 = vmul.f32 %v2796, %v2796
      %v3291 = vmul.f32 %v2801, %v2801
      %v3292 = vmul.f32 %v2804, %v2804
      %v3293 = vmul.f32 %v2809, %v2809
      %v3294 = vmul.f32 %v2812, %v2812
      %v3295 = vmul.f32 %v2817, %v2817
      %v3296 = vmul.f32 %v2820, %v2820
      %v3297 = vmul.f32 %v2825, %v2825
      %v3298 = vmul.f32 %v2828, %v2828
      %v3299 = vmul.f32 %v2833, %v2833
      %v3300 = vmul.f32 %v2836, %v2836
      %v3301 = vmul.f32 %v2841, %v2841
      %v3302 = vmul.f32 %v2844, %v2844
      %v3303 = vmul.f32 %v2849, %v2849
      %v3304 = vmul.f32 %v2852, %v2852
      %v3305 = vmul.f32 %v2857, %v2857
      %v3306 = vmul.f32 %v2860, %v2860
      %v3307 = vmul.f32 %v2865, %v2865
      %v3308 = vmul.f32 %v2868, %v2868
      %v3309 = vmul.f32 %v2873, %v2873
      %v3310 = vmul.f32 %v2876, %v2876
      %v3311 = vsub.f32 %v3203, %v3257
      %v3312 = vsub.f32 %v3204, %v3258
      %v3313 = vsub.f32 %v3205, %v3259
      %v3314 = vsub.f32 %v3206, %v3260
      %v3315 = vsub.f32 %v3207, %v3261
      %v3316 = vsub.f32 %v3208, %v3262
      %v3317 = vsub.f32 %v3209, %v3263
      %v3318 = vsub.f32 %v3210, %v3264
      %v3319 = vsub.f32 %v3211, %v3265
      %v3320 = vsub.f32 %v3212, %v3266
      %v3321 = vsub.f32 %v3213, %v3267
      %v3322 = vsub.f32 %v3214, %v3268
      %v3323 = vsub.f32 %v3215, %v3269
      %v3324 = vsub.f32 %v3216, %v3270
      %v3325 = vsub.f32 %v3217, %v3271
      %v3326 = vsub.f32 %v3218, %v3272
      %v3327 = vsub.f32 %v3219, %v3273
      %v3328 = vsub.f32 %v3220, %v3274
      %v3329 = vsub.f32 %v3221, %v3275
      %v3330 = vsub.f32 %v3222, %v3276
      %v3331 = vsub.f32 %v3223, %v3277
      %v3332 = vsub.f32 %v3224, %v3278
      %v3333 = vsub.f32 %v3225, %v3279
      %v3334 = vsub.f32 %v3226, %v3280
      %v3335 = vsub.f32 %v3227, %v3281
      %v3336 = vsub.f32 %v3228, %v3282
      %v3337 = vsub.f32 %v3229, %v3283
      %v3338 = vsub.f32 %v3230, %v3284
      %v3339 = vsub.f32 %v3231, %v3285
      %v3340 = vsub.f32 %v3232, %v3286
      %v3341 = vsub.f32 %v3233, %v3287
      %v3342 = vsub.f32 %v3234, %v3288
      %v3343 = vsub.f32 %v3235, %v3289
      %v3344 = vsub.f32 %v3236, %v3290
      %v3345 = vsub.f32 %v3237, %v3291
      %v3346 = vsub.f32 %v3238, %v3292
      %v3347 = vsub.f32 %v3239, %v3293
      %v3348 = vsub.f32 %v3240, %v3294
      %v3349 = vsub.f32 %v3241, %v3295
      %v3350 = vsub.f32 %v3242, %v3296
      %v3351 = vsub.f32 %v3243, %v3297
      %v3352 = vsub.f32 %v3244, %v3298
      %v3353 = vsub.f32 %v3245, %v3299
      %v3354 = vsub.f32 %v3246, %v3300
      %v3355 = vsub.f32 %v3247, %v3301
      %v3356 = vsub.f32 %v3248, %v3302
      %v3357 = vsub.f32 %v3249, %v3303
      %v3358 = vsub.f32 %v3250, %v3304
      %v3359 = vsub.f32 %v3251, %v3305
      %v3360 = vsub.f32 %v3252, %v3306
      %v3361 = vsub.f32 %v3253, %v3307
      %v3362 = vsub.f32 %v3254, %v3308
      %v3363 = vsub.f32 %v3255, %v3309
      %v3364 = vsub.f32 %v3256, %v3310
      %v3365 = vld [vmem:[%s343] sm:$0xff]
      %v3366 = vld [vmem:[%s343 + $0x8] sm:$0xff]
      %v3367 = vld [vmem:[%s343 + $0x10] sm:$0xff]
      %v3368 = vld [vmem:[%s343 + $0x18] sm:$0xff]
      %v3369 = vld [vmem:[%s343 + $0x20] sm:$0xff]
      %v3370 = vld [vmem:[%s343 + $0x28] sm:$0xff]
      %v3371 = vld [vmem:[%s343 + $0x30] sm:$0xff]
      %v3372 = vld [vmem:[%s343 + $0x38] sm:$0xff]
      %v3373 = vld [vmem:[%s343 + $0x40] sm:$0xff]
      %v3374 = vld [vmem:[%s343 + $0x48] sm:$0xff]
      %v3375 = vld [vmem:[%s343 + $0x50] sm:$0xff]
      %v3376 = vld [vmem:[%s343 + $0x58] sm:$0xff]
      %v3377 = vld [vmem:[%s343 + $0x60] sm:$0xff]
      %v3378 = vld [vmem:[%s343 + $0x68] sm:$0xff]
      %v3379 = vld [vmem:[%s343 + $0x70] sm:$0xff]
      %v3380 = vld [vmem:[%s343 + $0x78] sm:$0xff]
      %v3381 = vld [vmem:[%s343 + $0x80] sm:$0xff]
      %v3382 = vld [vmem:[%s343 + $0x88] sm:$0xff]
      %v3383 = vld [vmem:[%s343 + $0x90] sm:$0xff]
      %v3384 = vld [vmem:[%s343 + $0x98] sm:$0xff]
      %v3385 = vld [vmem:[%s343 + $0xa0] sm:$0xff]
      %v3386 = vld [vmem:[%s343 + $0xa8] sm:$0xff]
      %v3387 = vld [vmem:[%s343 + $0xb0] sm:$0xff]
      %v3388 = vld [vmem:[%s343 + $0xb8] sm:$0xff]
      %v3389 = vld [vmem:[%s343 + $0xc0] sm:$0xff]
      %v3390 = vld [vmem:[%s343 + $0xc8] sm:$0xff]
      %v3391 = vld [vmem:[%s343 + $0xd0] sm:$0xff]
      %v3392 = vld [vmem:[%s343 + $0xd8] sm:$0xff]
      %v3393 = vld [vmem:[%s343 + $0xe0] sm:$0xff]
      %v3394 = vld [vmem:[%s343 + $0xe8] sm:$0xff]
      %v3395 = vld [vmem:[%s343 + $0xf0] sm:$0xff]
      %v3396 = vld [vmem:[%s343 + $0xf8] sm:$0xff]
      %v3397 = vld [vmem:[%s343 + $0x100] sm:$0xff]
      %v3398 = vld [vmem:[%s343 + $0x108] sm:$0xff]
      %v3399 = vld [vmem:[%s343 + $0x110] sm:$0xff]
      %v3400 = vld [vmem:[%s343 + $0x118] sm:$0xff]
      %v3401 = vld [vmem:[%s343 + $0x120] sm:$0xff]
      %v3402 = vld [vmem:[%s343 + $0x128] sm:$0xff]
      %v3403 = vld [vmem:[%s343 + $0x130] sm:$0xff]
      %v3404 = vld [vmem:[%s343 + $0x138] sm:$0xff]
      %v3405 = vld [vmem:[%s343 + $0x140] sm:$0xff]
      %v3406 = vld [vmem:[%s343 + $0x148] sm:$0xff]
      %v3407 = vld [vmem:[%s343 + $0x150] sm:$0xff]
      %v3408 = vld [vmem:[%s343 + $0x158] sm:$0xff]
      %v3409 = vld [vmem:[%s343 + $0x160] sm:$0xff]
      %v3410 = vld [vmem:[%s343 + $0x168] sm:$0xff]
      %v3411 = vld [vmem:[%s343 + $0x170] sm:$0xff]
      %v3412 = vld [vmem:[%s343 + $0x178] sm:$0xff]
      %v3413 = vld [vmem:[%s343 + $0x180] sm:$0xff]
      %v3414 = vld [vmem:[%s343 + $0x188] sm:$0xff]
      %v3415 = vld [vmem:[%s343 + $0x190] sm:$0xff]
      %v3416 = vld [vmem:[%s343 + $0x198] sm:$0xff]
      %v3417 = vld [vmem:[%s343 + $0x1a0] sm:$0xff]
      %v3418 = vld [vmem:[%s343 + $0x1a8] sm:$0xff]
      %v3419 = vadd.f32 %v3311, 0.001
      %v3420 = vadd.f32 %v3312, 0.001
      %v3421 = vadd.f32 %v3313, 0.001
      %v3422 = vadd.f32 %v3314, 0.001
      %v3423 = vadd.f32 %v3315, 0.001
      %v3424 = vadd.f32 %v3316, 0.001
      %v3425 = vadd.f32 %v3317, 0.001
      %v3426 = vadd.f32 %v3318, 0.001
      %v3427 = vadd.f32 %v3319, 0.001
      %v3428 = vadd.f32 %v3320, 0.001
      %v3429 = vadd.f32 %v3321, 0.001
      %v3430 = vadd.f32 %v3322, 0.001
      %v3431 = vadd.f32 %v3323, 0.001
      %v3432 = vadd.f32 %v3324, 0.001
      %v3433 = vadd.f32 %v3325, 0.001
      %v3434 = vadd.f32 %v3326, 0.001
      %v3435 = vadd.f32 %v3327, 0.001
      %v3436 = vadd.f32 %v3328, 0.001
      %v3437 = vadd.f32 %v3329, 0.001
      %v3438 = vadd.f32 %v3330, 0.001
      %v3439 = vadd.f32 %v3331, 0.001
      %v3440 = vadd.f32 %v3332, 0.001
      %v3441 = vadd.f32 %v3333, 0.001
      %v3442 = vadd.f32 %v3334, 0.001
      %v3443 = vadd.f32 %v3335, 0.001
      %v3444 = vadd.f32 %v3336, 0.001
      %v3445 = vadd.f32 %v3337, 0.001
      %v3446 = vadd.f32 %v3338, 0.001
      %v3447 = vadd.f32 %v3339, 0.001
      %v3448 = vadd.f32 %v3340, 0.001
      %v3449 = vadd.f32 %v3341, 0.001
      %v3450 = vadd.f32 %v3342, 0.001
      %v3451 = vadd.f32 %v3343, 0.001
      %v3452 = vadd.f32 %v3344, 0.001
      %v3453 = vadd.f32 %v3345, 0.001
      %v3454 = vadd.f32 %v3346, 0.001
      %v3455 = vadd.f32 %v3347, 0.001
      %v3456 = vadd.f32 %v3348, 0.001
      %v3457 = vadd.f32 %v3349, 0.001
      %v3458 = vadd.f32 %v3350, 0.001
      %v3459 = vadd.f32 %v3351, 0.001
      %v3460 = vadd.f32 %v3352, 0.001
      %v3461 = vadd.f32 %v3353, 0.001
      %v3462 = vadd.f32 %v3354, 0.001
      %v3463 = vadd.f32 %v3355, 0.001
      %v3464 = vadd.f32 %v3356, 0.001
      %v3465 = vadd.f32 %v3357, 0.001
      %v3466 = vadd.f32 %v3358, 0.001
      %v3467 = vadd.f32 %v3359, 0.001
      %v3468 = vadd.f32 %v3360, 0.001
      %v3469 = vadd.f32 %v3361, 0.001
      %v3470 = vadd.f32 %v3362, 0.001
      %v3471 = vadd.f32 %v3363, 0.001
      %v3472 = vadd.f32 %v3364, 0.001
      %v3473 = vrsqrt.pop %v3419
      %v3474 = vrsqrt.pop %v3420
      %v3475 = vrsqrt.pop %v3421
      %v3476 = vrsqrt.pop %v3422
      %v3477 = vrsqrt.pop %v3423
      %v3478 = vrsqrt.pop %v3424
      %v3479 = vrsqrt.pop %v3425
      %v3480 = vrsqrt.pop %v3426
      %v3481 = vrsqrt.pop %v3427
      %v3482 = vrsqrt.pop %v3428
      %v3483 = vrsqrt.pop %v3429
      %v3484 = vrsqrt.pop %v3430
      %v3485 = vrsqrt.pop %v3431
      %v3486 = vrsqrt.pop %v3432
      %v3487 = vrsqrt.pop %v3433
      %v3488 = vrsqrt.pop %v3434
      %v3489 = vrsqrt.pop %v3435
      %v3490 = vrsqrt.pop %v3436
      %v3491 = vrsqrt.pop %v3437
      %v3492 = vrsqrt.pop %v3438
      %v3493 = vrsqrt.pop %v3439
      %v3494 = vrsqrt.pop %v3440
      %v3495 = vrsqrt.pop %v3441
      %v3496 = vrsqrt.pop %v3442
      %v3497 = vrsqrt.pop %v3443
      %v3498 = vrsqrt.pop %v3444
      %v3499 = vrsqrt.pop %v3445
      %v3500 = vrsqrt.pop %v3446
      %v3501 = vrsqrt.pop %v3447
      %v3502 = vrsqrt.pop %v3448
      %v3503 = vrsqrt.pop %v3449
      %v3504 = vrsqrt.pop %v3450
      %v3505 = vrsqrt.pop %v3451
      %v3506 = vrsqrt.pop %v3452
      %v3507 = vrsqrt.pop %v3453
      %v3508 = vrsqrt.pop %v3454
      %v3509 = vrsqrt.pop %v3455
      %v3510 = vrsqrt.pop %v3456
      %v3511 = vrsqrt.pop %v3457
      %v3512 = vrsqrt.pop %v3458
      %v3513 = vrsqrt.pop %v3459
      %v3514 = vrsqrt.pop %v3460
      %v3515 = vrsqrt.pop %v3461
      %v3516 = vrsqrt.pop %v3462
      %v3517 = vrsqrt.pop %v3463
      %v3518 = vrsqrt.pop %v3464
      %v3519 = vrsqrt.pop %v3465
      %v3520 = vrsqrt.pop %v3466
      %v3521 = vrsqrt.pop %v3467
      %v3522 = vrsqrt.pop %v3468
      %v3523 = vrsqrt.pop %v3469
      %v3524 = vrsqrt.pop %v3470
      %v3525 = vrsqrt.pop %v3471
      %v3526 = vrsqrt.pop %v3472
      %v3527 = vmul.f32 %v3365, %v3473
      %v3528 = vmul.f32 %v3366, %v3474
      %v3529 = vmul.f32 %v3367, %v3475
      %v3530 = vmul.f32 %v3368, %v3476
      %v3531 = vmul.f32 %v3369, %v3477
      %v3532 = vmul.f32 %v3370, %v3478
      %v3533 = vmul.f32 %v3371, %v3479
      %v3534 = vmul.f32 %v3372, %v3480
      %v3535 = vmul.f32 %v3373, %v3481
      %v3536 = vmul.f32 %v3374, %v3482
      %v3537 = vmul.f32 %v3375, %v3483
      %v3538 = vmul.f32 %v3376, %v3484
      %v3539 = vmul.f32 %v3377, %v3485
      %v3540 = vmul.f32 %v3378, %v3486
      %v3541 = vmul.f32 %v3379, %v3487
      %v3542 = vmul.f32 %v3380, %v3488
      %v3543 = vmul.f32 %v3381, %v3489
      %v3544 = vmul.f32 %v3382, %v3490
      %v3545 = vmul.f32 %v3383, %v3491
      %v3546 = vmul.f32 %v3384, %v3492
      %v3547 = vmul.f32 %v3385, %v3493
      %v3548 = vmul.f32 %v3386, %v3494
      %v3549 = vmul.f32 %v3387, %v3495
      %v3550 = vmul.f32 %v3388, %v3496
      %v3551 = vmul.f32 %v3389, %v3497
      %v3552 = vmul.f32 %v3390, %v3498
      %v3553 = vmul.f32 %v3391, %v3499
      %v3554 = vmul.f32 %v3392, %v3500
      %v3555 = vmul.f32 %v3393, %v3501
      %v3556 = vmul.f32 %v3394, %v3502
      %v3557 = vmul.f32 %v3395, %v3503
      %v3558 = vmul.f32 %v3396, %v3504
      %v3559 = vmul.f32 %v3397, %v3505
      %v3560 = vmul.f32 %v3398, %v3506
      %v3561 = vmul.f32 %v3399, %v3507
      %v3562 = vmul.f32 %v3400, %v3508
      %v3563 = vmul.f32 %v3401, %v3509
      %v3564 = vmul.f32 %v3402, %v3510
      %v3565 = vmul.f32 %v3403, %v3511
      %v3566 = vmul.f32 %v3404, %v3512
      %v3567 = vmul.f32 %v3405, %v3513
      %v3568 = vmul.f32 %v3406, %v3514
      %v3569 = vmul.f32 %v3407, %v3515
      %v3570 = vmul.f32 %v3408, %v3516
      %v3571 = vmul.f32 %v3409, %v3517
      %v3572 = vmul.f32 %v3410, %v3518
      %v3573 = vmul.f32 %v3411, %v3519
      %v3574 = vmul.f32 %v3412, %v3520
      %v3575 = vmul.f32 %v3413, %v3521
      %v3576 = vmul.f32 %v3414, %v3522
      %v3577 = vmul.f32 %v3415, %v3523
      %v3578 = vmul.f32 %v3416, %v3524
      %v3579 = vmul.f32 %v3417, %v3525
      %v3580 = vmul.f32 %v3418, %v3526
      %3582 = vset.pattern.permute.xlu0 0
      %3583 = vperm.xlu0 %3582, %v3527
      %v3584 = vpop.permute.xlu0 %3583
      %3587 = vset.pattern.permute.xlu0 0
      %3588 = vperm.xlu0 %3587, %v3528
      %v3589 = vpop.permute.xlu0 %3588
      %3592 = vset.pattern.permute.xlu0 0
      %3593 = vperm.xlu0 %3592, %v3529
      %v3594 = vpop.permute.xlu0 %3593
      %3597 = vset.pattern.permute.xlu0 0
      %3598 = vperm.xlu0 %3597, %v3530
      %v3599 = vpop.permute.xlu0 %3598
      %3602 = vset.pattern.permute.xlu0 0
      %3603 = vperm.xlu0 %3602, %v3531
      %v3604 = vpop.permute.xlu0 %3603
      %3607 = vset.pattern.permute.xlu0 0
      %3608 = vperm.xlu0 %3607, %v3532
      %v3609 = vpop.permute.xlu0 %3608
      %3612 = vset.pattern.permute.xlu0 0
      %3613 = vperm.xlu0 %3612, %v3533
      %v3614 = vpop.permute.xlu0 %3613
      %3617 = vset.pattern.permute.xlu0 0
      %3618 = vperm.xlu0 %3617, %v3534
      %v3619 = vpop.permute.xlu0 %3618
      %3622 = vset.pattern.permute.xlu0 0
      %3623 = vperm.xlu0 %3622, %v3535
      %v3624 = vpop.permute.xlu0 %3623
      %3627 = vset.pattern.permute.xlu0 0
      %3628 = vperm.xlu0 %3627, %v3536
      %v3629 = vpop.permute.xlu0 %3628
      %3632 = vset.pattern.permute.xlu0 0
      %3633 = vperm.xlu0 %3632, %v3537
      %v3634 = vpop.permute.xlu0 %3633
      %3637 = vset.pattern.permute.xlu0 0
      %3638 = vperm.xlu0 %3637, %v3538
      %v3639 = vpop.permute.xlu0 %3638
      %3642 = vset.pattern.permute.xlu0 0
      %3643 = vperm.xlu0 %3642, %v3539
      %v3644 = vpop.permute.xlu0 %3643
      %3647 = vset.pattern.permute.xlu0 0
      %3648 = vperm.xlu0 %3647, %v3540
      %v3649 = vpop.permute.xlu0 %3648
      %3652 = vset.pattern.permute.xlu0 0
      %3653 = vperm.xlu0 %3652, %v3541
      %v3654 = vpop.permute.xlu0 %3653
      %3657 = vset.pattern.permute.xlu0 0
      %3658 = vperm.xlu0 %3657, %v3542
      %v3659 = vpop.permute.xlu0 %3658
      %3662 = vset.pattern.permute.xlu0 0
      %3663 = vperm.xlu0 %3662, %v3543
      %v3664 = vpop.permute.xlu0 %3663
      %3667 = vset.pattern.permute.xlu0 0
      %3668 = vperm.xlu0 %3667, %v3544
      %v3669 = vpop.permute.xlu0 %3668
      %3672 = vset.pattern.permute.xlu0 0
      %3673 = vperm.xlu0 %3672, %v3545
      %v3674 = vpop.permute.xlu0 %3673
      %3677 = vset.pattern.permute.xlu0 0
      %3678 = vperm.xlu0 %3677, %v3546
      %v3679 = vpop.permute.xlu0 %3678
      %3682 = vset.pattern.permute.xlu0 0
      %3683 = vperm.xlu0 %3682, %v3547
      %v3684 = vpop.permute.xlu0 %3683
      %3687 = vset.pattern.permute.xlu0 0
      %3688 = vperm.xlu0 %3687, %v3548
      %v3689 = vpop.permute.xlu0 %3688
      %3692 = vset.pattern.permute.xlu0 0
      %3693 = vperm.xlu0 %3692, %v3549
      %v3694 = vpop.permute.xlu0 %3693
      %3697 = vset.pattern.permute.xlu0 0
      %3698 = vperm.xlu0 %3697, %v3550
      %v3699 = vpop.permute.xlu0 %3698
      %3702 = vset.pattern.permute.xlu0 0
      %3703 = vperm.xlu0 %3702, %v3551
      %v3704 = vpop.permute.xlu0 %3703
      %3707 = vset.pattern.permute.xlu0 0
      %3708 = vperm.xlu0 %3707, %v3552
      %v3709 = vpop.permute.xlu0 %3708
      %3712 = vset.pattern.permute.xlu0 0
      %3713 = vperm.xlu0 %3712, %v3553
      %v3714 = vpop.permute.xlu0 %3713
      %3717 = vset.pattern.permute.xlu0 0
      %3718 = vperm.xlu0 %3717, %v3554
      %v3719 = vpop.permute.xlu0 %3718
      %3722 = vset.pattern.permute.xlu0 0
      %3723 = vperm.xlu0 %3722, %v3555
      %v3724 = vpop.permute.xlu0 %3723
      %3727 = vset.pattern.permute.xlu0 0
      %3728 = vperm.xlu0 %3727, %v3556
      %v3729 = vpop.permute.xlu0 %3728
      %3732 = vset.pattern.permute.xlu0 0
      %3733 = vperm.xlu0 %3732, %v3557
      %v3734 = vpop.permute.xlu0 %3733
      %3737 = vset.pattern.permute.xlu0 0
      %3738 = vperm.xlu0 %3737, %v3558
      %v3739 = vpop.permute.xlu0 %3738
      %3742 = vset.pattern.permute.xlu0 0
      %3743 = vperm.xlu0 %3742, %v3559
      %v3744 = vpop.permute.xlu0 %3743
      %3747 = vset.pattern.permute.xlu0 0
      %3748 = vperm.xlu0 %3747, %v3560
      %v3749 = vpop.permute.xlu0 %3748
      %3752 = vset.pattern.permute.xlu0 0
      %3753 = vperm.xlu0 %3752, %v3561
      %v3754 = vpop.permute.xlu0 %3753
      %3757 = vset.pattern.permute.xlu0 0
      %3758 = vperm.xlu0 %3757, %v3562
      %v3759 = vpop.permute.xlu0 %3758
      %3762 = vset.pattern.permute.xlu0 0
      %3763 = vperm.xlu0 %3762, %v3563
      %v3764 = vpop.permute.xlu0 %3763
      %3767 = vset.pattern.permute.xlu0 0
      %3768 = vperm.xlu0 %3767, %v3564
      %v3769 = vpop.permute.xlu0 %3768
      %3772 = vset.pattern.permute.xlu0 0
      %3773 = vperm.xlu0 %3772, %v3565
      %v3774 = vpop.permute.xlu0 %3773
      %3777 = vset.pattern.permute.xlu0 0
      %3778 = vperm.xlu0 %3777, %v3566
      %v3779 = vpop.permute.xlu0 %3778
      %3782 = vset.pattern.permute.xlu0 0
      %3783 = vperm.xlu0 %3782, %v3567
      %v3784 = vpop.permute.xlu0 %3783
      %3787 = vset.pattern.permute.xlu0 0
      %3788 = vperm.xlu0 %3787, %v3568
      %v3789 = vpop.permute.xlu0 %3788
      %3792 = vset.pattern.permute.xlu0 0
      %3793 = vperm.xlu0 %3792, %v3569
      %v3794 = vpop.permute.xlu0 %3793
      %3797 = vset.pattern.permute.xlu0 0
      %3798 = vperm.xlu0 %3797, %v3570
      %v3799 = vpop.permute.xlu0 %3798
      %3802 = vset.pattern.permute.xlu0 0
      %3803 = vperm.xlu0 %3802, %v3571
      %v3804 = vpop.permute.xlu0 %3803
      %3807 = vset.pattern.permute.xlu0 0
      %3808 = vperm.xlu0 %3807, %v3572
      %v3809 = vpop.permute.xlu0 %3808
      %3812 = vset.pattern.permute.xlu0 0
      %3813 = vperm.xlu0 %3812, %v3573
      %v3814 = vpop.permute.xlu0 %3813
      %3817 = vset.pattern.permute.xlu0 0
      %3818 = vperm.xlu0 %3817, %v3574
      %v3819 = vpop.permute.xlu0 %3818
      %3822 = vset.pattern.permute.xlu0 0
      %3823 = vperm.xlu0 %3822, %v3575
      %v3824 = vpop.permute.xlu0 %3823
      %3827 = vset.pattern.permute.xlu0 0
      %3828 = vperm.xlu0 %3827, %v3576
      %v3829 = vpop.permute.xlu0 %3828
      %3832 = vset.pattern.permute.xlu0 0
      %3833 = vperm.xlu0 %3832, %v3577
      %v3834 = vpop.permute.xlu0 %3833
      %3837 = vset.pattern.permute.xlu0 0
      %3838 = vperm.xlu0 %3837, %v3578
      %v3839 = vpop.permute.xlu0 %3838
      %3842 = vset.pattern.permute.xlu0 0
      %3843 = vperm.xlu0 %3842, %v3579
      %v3844 = vpop.permute.xlu0 %3843
      %3847 = vset.pattern.permute.xlu0 0
      %3848 = vperm.xlu0 %3847, %v3580
      %v3849 = vpop.permute.xlu0 %3848
      %v3851 = vmul.f32 %v2263, %v3584
      %v3852 = vmul.f32 %v2265, %v3584
      %v3853 = vmul.f32 %v2267, %v3589
      %v3854 = vmul.f32 %v2269, %v3589
      %v3855 = vmul.f32 %v2273, %v3594
      %v3856 = vmul.f32 %v2275, %v3594
      %v3857 = vmul.f32 %v2277, %v3599
      %v3858 = vmul.f32 %v2279, %v3599
      %v3859 = vmul.f32 %v2283, %v3604
      %v3860 = vmul.f32 %v2285, %v3604
      %v3861 = vmul.f32 %v2287, %v3609
      %v3862 = vmul.f32 %v2289, %v3609
      %v3863 = vmul.f32 %v2293, %v3614
      %v3864 = vmul.f32 %v2295, %v3614
      %v3865 = vmul.f32 %v2297, %v3619
      %v3866 = vmul.f32 %v2299, %v3619
      %v3867 = vmul.f32 %v2303, %v3624
      %v3868 = vmul.f32 %v2305, %v3624
      %v3869 = vmul.f32 %v2307, %v3629
      %v3870 = vmul.f32 %v2309, %v3629
      %v3871 = vmul.f32 %v2313, %v3634
      %v3872 = vmul.f32 %v2315, %v3634
      %v3873 = vmul.f32 %v2317, %v3639
      %v3874 = vmul.f32 %v2319, %v3639
      %v3875 = vmul.f32 %v2323, %v3644
      %v3876 = vmul.f32 %v2325, %v3644
      %v3877 = vmul.f32 %v2327, %v3649
      %v3878 = vmul.f32 %v2329, %v3649
      %v3879 = vmul.f32 %v2333, %v3654
      %v3880 = vmul.f32 %v2335, %v3654
      %v3881 = vmul.f32 %v2337, %v3659
      %v3882 = vmul.f32 %v2339, %v3659
      %v3883 = vmul.f32 %v2343, %v3664
      %v3884 = vmul.f32 %v2345, %v3664
      %v3885 = vmul.f32 %v2347, %v3669
      %v3886 = vmul.f32 %v2349, %v3669
      %v3887 = vmul.f32 %v2353, %v3674
      %v3888 = vmul.f32 %v2355, %v3674
      %v3889 = vmul.f32 %v2357, %v3679
      %v3890 = vmul.f32 %v2359, %v3679
      %v3891 = vmul.f32 %v2363, %v3684
      %v3892 = vmul.f32 %v2365, %v3684
      %v3893 = vmul.f32 %v2367, %v3689
      %v3894 = vmul.f32 %v2369, %v3689
      %v3895 = vmul.f32 %v2373, %v3694
      %v3896 = vmul.f32 %v2375, %v3694
      %v3897 = vmul.f32 %v2377, %v3699
      %v3898 = vmul.f32 %v2379, %v3699
      %v3899 = vmul.f32 %v2383, %v3704
      %v3900 = vmul.f32 %v2385, %v3704
      %v3901 = vmul.f32 %v2387, %v3709
      %v3902 = vmul.f32 %v2389, %v3709
      %v3903 = vmul.f32 %v2393, %v3714
      %v3904 = vmul.f32 %v2395, %v3714
      %v3905 = vmul.f32 %v2397, %v3719
      %v3906 = vmul.f32 %v2399, %v3719
      %v3907 = vmul.f32 %v2403, %v3724
      %v3908 = vmul.f32 %v2405, %v3724
      %v3909 = vmul.f32 %v2407, %v3729
      %v3910 = vmul.f32 %v2409, %v3729
      %v3911 = vmul.f32 %v2413, %v3734
      %v3912 = vmul.f32 %v2415, %v3734
      %v3913 = vmul.f32 %v2417, %v3739
      %v3914 = vmul.f32 %v2419, %v3739
      %v3915 = vmul.f32 %v2423, %v3744
      %v3916 = vmul.f32 %v2425, %v3744
      %v3917 = vmul.f32 %v2427, %v3749
      %v3918 = vmul.f32 %v2429, %v3749
      %v3919 = vmul.f32 %v2433, %v3754
      %v3920 = vmul.f32 %v2435, %v3754
      %v3921 = vmul.f32 %v2437, %v3759
      %v3922 = vmul.f32 %v2439, %v3759
      %v3923 = vmul.f32 %v2443, %v3764
      %v3924 = vmul.f32 %v2445, %v3764
      %v3925 = vmul.f32 %v2447, %v3769
      %v3926 = vmul.f32 %v2449, %v3769
      %v3927 = vmul.f32 %v2453, %v3774
      %v3928 = vmul.f32 %v2455, %v3774
      %v3929 = vmul.f32 %v2457, %v3779
      %v3930 = vmul.f32 %v2459, %v3779
      %v3931 = vmul.f32 %v2463, %v3784
      %v3932 = vmul.f32 %v2465, %v3784
      %v3933 = vmul.f32 %v2467, %v3789
      %v3934 = vmul.f32 %v2469, %v3789
      %v3935 = vmul.f32 %v2473, %v3794
      %v3936 = vmul.f32 %v2475, %v3794
      %v3937 = vmul.f32 %v2477, %v3799
      %v3938 = vmul.f32 %v2479, %v3799
      %v3939 = vmul.f32 %v2483, %v3804
      %v3940 = vmul.f32 %v2485, %v3804
      %v3941 = vmul.f32 %v2487, %v3809
      %v3942 = vmul.f32 %v2489, %v3809
      %v3943 = vmul.f32 %v2493, %v3814
      %v3944 = vmul.f32 %v2495, %v3814
      %v3945 = vmul.f32 %v2497, %v3819
      %v3946 = vmul.f32 %v2499, %v3819
      %v3947 = vmul.f32 %v2503, %v3824
      %v3948 = vmul.f32 %v2505, %v3824
      %v3949 = vmul.f32 %v2507, %v3829
      %v3950 = vmul.f32 %v2509, %v3829
      %v3951 = vmul.f32 %v2513, %v3834
      %v3952 = vmul.f32 %v2515, %v3834
      %v3953 = vmul.f32 %v2517, %v3839
      %v3954 = vmul.f32 %v2519, %v3839
      %v3955 = vmul.f32 %v2523, %v3844
      %v3956 = vmul.f32 %v2525, %v3844
      %v3957 = vmul.f32 %v2527, %v3849
      %v3958 = vmul.f32 %v2529, %v3849
      %v3959 = vld [vmem:[%s349] sm:$0xff]
      %v3960 = vld [vmem:[%s349 + $0x8] sm:$0xff]
      %v3961 = vld [vmem:[%s349 + $0x10] sm:$0xff]
      %v3962 = vld [vmem:[%s349 + $0x18] sm:$0xff]
      %v3963 = vld [vmem:[%s349 + $0x20] sm:$0xff]
      %v3964 = vld [vmem:[%s349 + $0x28] sm:$0xff]
      %v3965 = vld [vmem:[%s349 + $0x30] sm:$0xff]
      %v3966 = vld [vmem:[%s349 + $0x38] sm:$0xff]
      %v3967 = vld [vmem:[%s349 + $0x40] sm:$0xff]
      %v3968 = vld [vmem:[%s349 + $0x48] sm:$0xff]
      %v3969 = vld [vmem:[%s349 + $0x50] sm:$0xff]
      %v3970 = vld [vmem:[%s349 + $0x58] sm:$0xff]
      %v3971 = vld [vmem:[%s349 + $0x60] sm:$0xff]
      %v3972 = vld [vmem:[%s349 + $0x68] sm:$0xff]
      %v3973 = vld [vmem:[%s349 + $0x70] sm:$0xff]
      %v3974 = vld [vmem:[%s349 + $0x78] sm:$0xff]
      %v3975 = vld [vmem:[%s349 + $0x80] sm:$0xff]
      %v3976 = vld [vmem:[%s349 + $0x88] sm:$0xff]
      %v3977 = vld [vmem:[%s349 + $0x90] sm:$0xff]
      %v3978 = vld [vmem:[%s349 + $0x98] sm:$0xff]
      %v3979 = vld [vmem:[%s349 + $0xa0] sm:$0xff]
      %v3980 = vld [vmem:[%s349 + $0xa8] sm:$0xff]
      %v3981 = vld [vmem:[%s349 + $0xb0] sm:$0xff]
      %v3982 = vld [vmem:[%s349 + $0xb8] sm:$0xff]
      %v3983 = vld [vmem:[%s349 + $0xc0] sm:$0xff]
      %v3984 = vld [vmem:[%s349 + $0xc8] sm:$0xff]
      %v3985 = vld [vmem:[%s349 + $0xd0] sm:$0xff]
      %v3986 = vld [vmem:[%s349 + $0xd8] sm:$0xff]
      %v3987 = vld [vmem:[%s349 + $0xe0] sm:$0xff]
      %v3988 = vld [vmem:[%s349 + $0xe8] sm:$0xff]
      %v3989 = vld [vmem:[%s349 + $0xf0] sm:$0xff]
      %v3990 = vld [vmem:[%s349 + $0xf8] sm:$0xff]
      %v3991 = vld [vmem:[%s349 + $0x100] sm:$0xff]
      %v3992 = vld [vmem:[%s349 + $0x108] sm:$0xff]
      %v3993 = vld [vmem:[%s349 + $0x110] sm:$0xff]
      %v3994 = vld [vmem:[%s349 + $0x118] sm:$0xff]
      %v3995 = vld [vmem:[%s349 + $0x120] sm:$0xff]
      %v3996 = vld [vmem:[%s349 + $0x128] sm:$0xff]
      %v3997 = vld [vmem:[%s349 + $0x130] sm:$0xff]
      %v3998 = vld [vmem:[%s349 + $0x138] sm:$0xff]
      %v3999 = vld [vmem:[%s349 + $0x140] sm:$0xff]
      %v4000 = vld [vmem:[%s349 + $0x148] sm:$0xff]
      %v4001 = vld [vmem:[%s349 + $0x150] sm:$0xff]
      %v4002 = vld [vmem:[%s349 + $0x158] sm:$0xff]
      %v4003 = vld [vmem:[%s349 + $0x160] sm:$0xff]
      %v4004 = vld [vmem:[%s349 + $0x168] sm:$0xff]
      %v4005 = vld [vmem:[%s349 + $0x170] sm:$0xff]
      %v4006 = vld [vmem:[%s349 + $0x178] sm:$0xff]
      %v4007 = vld [vmem:[%s349 + $0x180] sm:$0xff]
      %v4008 = vld [vmem:[%s349 + $0x188] sm:$0xff]
      %v4009 = vld [vmem:[%s349 + $0x190] sm:$0xff]
      %v4010 = vld [vmem:[%s349 + $0x198] sm:$0xff]
      %v4011 = vld [vmem:[%s349 + $0x1a0] sm:$0xff]
      %v4012 = vld [vmem:[%s349 + $0x1a8] sm:$0xff]
      %v4013 = vmul.f32 %v2665, %v3527
      %v4014 = vmul.f32 %v2668, %v3528
      %v4015 = vmul.f32 %v2673, %v3529
      %v4016 = vmul.f32 %v2676, %v3530
      %v4017 = vmul.f32 %v2681, %v3531
      %v4018 = vmul.f32 %v2684, %v3532
      %v4019 = vmul.f32 %v2689, %v3533
      %v4020 = vmul.f32 %v2692, %v3534
      %v4021 = vmul.f32 %v2697, %v3535
      %v4022 = vmul.f32 %v2700, %v3536
      %v4023 = vmul.f32 %v2705, %v3537
      %v4024 = vmul.f32 %v2708, %v3538
      %v4025 = vmul.f32 %v2713, %v3539
      %v4026 = vmul.f32 %v2716, %v3540
      %v4027 = vmul.f32 %v2721, %v3541
      %v4028 = vmul.f32 %v2724, %v3542
      %v4029 = vmul.f32 %v2729, %v3543
      %v4030 = vmul.f32 %v2732, %v3544
      %v4031 = vmul.f32 %v2737, %v3545
      %v4032 = vmul.f32 %v2740, %v3546
      %v4033 = vmul.f32 %v2745, %v3547
      %v4034 = vmul.f32 %v2748, %v3548
      %v4035 = vmul.f32 %v2753, %v3549
      %v4036 = vmul.f32 %v2756, %v3550
      %v4037 = vmul.f32 %v2761, %v3551
      %v4038 = vmul.f32 %v2764, %v3552
      %v4039 = vmul.f32 %v2769, %v3553
      %v4040 = vmul.f32 %v2772, %v3554
      %v4041 = vmul.f32 %v2777, %v3555
      %v4042 = vmul.f32 %v2780, %v3556
      %v4043 = vmul.f32 %v2785, %v3557
      %v4044 = vmul.f32 %v2788, %v3558
      %v4045 = vmul.f32 %v2793, %v3559
      %v4046 = vmul.f32 %v2796, %v3560
      %v4047 = vmul.f32 %v2801, %v3561
      %v4048 = vmul.f32 %v2804, %v3562
      %v4049 = vmul.f32 %v2809, %v3563
      %v4050 = vmul.f32 %v2812, %v3564
      %v4051 = vmul.f32 %v2817, %v3565
      %v4052 = vmul.f32 %v2820, %v3566
      %v4053 = vmul.f32 %v2825, %v3567
      %v4054 = vmul.f32 %v2828, %v3568
      %v4055 = vmul.f32 %v2833, %v3569
      %v4056 = vmul.f32 %v2836, %v3570
      %v4057 = vmul.f32 %v2841, %v3571
      %v4058 = vmul.f32 %v2844, %v3572
      %v4059 = vmul.f32 %v2849, %v3573
      %v4060 = vmul.f32 %v2852, %v3574
      %v4061 = vmul.f32 %v2857, %v3575
      %v4062 = vmul.f32 %v2860, %v3576
      %v4063 = vmul.f32 %v2865, %v3577
      %v4064 = vmul.f32 %v2868, %v3578
      %v4065 = vmul.f32 %v2873, %v3579
      %v4066 = vmul.f32 %v2876, %v3580
      %v4067 = vsub.f32 %v3959, %v4013
      %v4068 = vsub.f32 %v3960, %v4014
      %v4069 = vsub.f32 %v3961, %v4015
      %v4070 = vsub.f32 %v3962, %v4016
      %v4071 = vsub.f32 %v3963, %v4017
      %v4072 = vsub.f32 %v3964, %v4018
      %v4073 = vsub.f32 %v3965, %v4019
      %v4074 = vsub.f32 %v3966, %v4020
      %v4075 = vsub.f32 %v3967, %v4021
      %v4076 = vsub.f32 %v3968, %v4022
      %v4077 = vsub.f32 %v3969, %v4023
      %v4078 = vsub.f32 %v3970, %v4024
      %v4079 = vsub.f32 %v3971, %v4025
      %v4080 = vsub.f32 %v3972, %v4026
      %v4081 = vsub.f32 %v3973, %v4027
      %v4082 = vsub.f32 %v3974, %v4028
      %v4083 = vsub.f32 %v3975, %v4029
      %v4084 = vsub.f32 %v3976, %v4030
      %v4085 = vsub.f32 %v3977, %v4031
      %v4086 = vsub.f32 %v3978, %v4032
      %v4087 = vsub.f32 %v3979, %v4033
      %v4088 = vsub.f32 %v3980, %v4034
      %v4089 = vsub.f32 %v3981, %v4035
      %v4090 = vsub.f32 %v3982, %v4036
      %v4091 = vsub.f32 %v3983, %v4037
      %v4092 = vsub.f32 %v3984, %v4038
      %v4093 = vsub.f32 %v3985, %v4039
      %v4094 = vsub.f32 %v3986, %v4040
      %v4095 = vsub.f32 %v3987, %v4041
      %v4096 = vsub.f32 %v3988, %v4042
      %v4097 = vsub.f32 %v3989, %v4043
      %v4098 = vsub.f32 %v3990, %v4044
      %v4099 = vsub.f32 %v3991, %v4045
      %v4100 = vsub.f32 %v3992, %v4046
      %v4101 = vsub.f32 %v3993, %v4047
      %v4102 = vsub.f32 %v3994, %v4048
      %v4103 = vsub.f32 %v3995, %v4049
      %v4104 = vsub.f32 %v3996, %v4050
      %v4105 = vsub.f32 %v3997, %v4051
      %v4106 = vsub.f32 %v3998, %v4052
      %v4107 = vsub.f32 %v3999, %v4053
      %v4108 = vsub.f32 %v4000, %v4054
      %v4109 = vsub.f32 %v4001, %v4055
      %v4110 = vsub.f32 %v4002, %v4056
      %v4111 = vsub.f32 %v4003, %v4057
      %v4112 = vsub.f32 %v4004, %v4058
      %v4113 = vsub.f32 %v4005, %v4059
      %v4114 = vsub.f32 %v4006, %v4060
      %v4115 = vsub.f32 %v4007, %v4061
      %v4116 = vsub.f32 %v4008, %v4062
      %v4117 = vsub.f32 %v4009, %v4063
      %v4118 = vsub.f32 %v4010, %v4064
      %v4119 = vsub.f32 %v4011, %v4065
      %v4120 = vsub.f32 %v4012, %v4066
      %4122 = vset.pattern.permute.xlu0 0
      %4123 = vperm.xlu0 %4122, %v4067
      %v4124 = vpop.permute.xlu0 %4123
      %4127 = vset.pattern.permute.xlu0 0
      %4128 = vperm.xlu0 %4127, %v4068
      %v4129 = vpop.permute.xlu0 %4128
      %4132 = vset.pattern.permute.xlu0 0
      %4133 = vperm.xlu0 %4132, %v4069
      %v4134 = vpop.permute.xlu0 %4133
      %4137 = vset.pattern.permute.xlu0 0
      %4138 = vperm.xlu0 %4137, %v4070
      %v4139 = vpop.permute.xlu0 %4138
      %4142 = vset.pattern.permute.xlu0 0
      %4143 = vperm.xlu0 %4142, %v4071
      %v4144 = vpop.permute.xlu0 %4143
      %4147 = vset.pattern.permute.xlu0 0
      %4148 = vperm.xlu0 %4147, %v4072
      %v4149 = vpop.permute.xlu0 %4148
      %4152 = vset.pattern.permute.xlu0 0
      %4153 = vperm.xlu0 %4152, %v4073
      %v4154 = vpop.permute.xlu0 %4153
      %4157 = vset.pattern.permute.xlu0 0
      %4158 = vperm.xlu0 %4157, %v4074
      %v4159 = vpop.permute.xlu0 %4158
      %4162 = vset.pattern.permute.xlu0 0
      %4163 = vperm.xlu0 %4162, %v4075
      %v4164 = vpop.permute.xlu0 %4163
      %4167 = vset.pattern.permute.xlu0 0
      %4168 = vperm.xlu0 %4167, %v4076
      %v4169 = vpop.permute.xlu0 %4168
      %4172 = vset.pattern.permute.xlu0 0
      %4173 = vperm.xlu0 %4172, %v4077
      %v4174 = vpop.permute.xlu0 %4173
      %4177 = vset.pattern.permute.xlu0 0
      %4178 = vperm.xlu0 %4177, %v4078
      %v4179 = vpop.permute.xlu0 %4178
      %4182 = vset.pattern.permute.xlu0 0
      %4183 = vperm.xlu0 %4182, %v4079
      %v4184 = vpop.permute.xlu0 %4183
      %4187 = vset.pattern.permute.xlu0 0
      %4188 = vperm.xlu0 %4187, %v4080
      %v4189 = vpop.permute.xlu0 %4188
      %4192 = vset.pattern.permute.xlu0 0
      %4193 = vperm.xlu0 %4192, %v4081
      %v4194 = vpop.permute.xlu0 %4193
      %4197 = vset.pattern.permute.xlu0 0
      %4198 = vperm.xlu0 %4197, %v4082
      %v4199 = vpop.permute.xlu0 %4198
      %4202 = vset.pattern.permute.xlu0 0
      %4203 = vperm.xlu0 %4202, %v4083
      %v4204 = vpop.permute.xlu0 %4203
      %4207 = vset.pattern.permute.xlu0 0
      %4208 = vperm.xlu0 %4207, %v4084
      %v4209 = vpop.permute.xlu0 %4208
      %4212 = vset.pattern.permute.xlu0 0
      %4213 = vperm.xlu0 %4212, %v4085
      %v4214 = vpop.permute.xlu0 %4213
      %4217 = vset.pattern.permute.xlu0 0
      %4218 = vperm.xlu0 %4217, %v4086
      %v4219 = vpop.permute.xlu0 %4218
      %4222 = vset.pattern.permute.xlu0 0
      %4223 = vperm.xlu0 %4222, %v4087
      %v4224 = vpop.permute.xlu0 %4223
      %4227 = vset.pattern.permute.xlu0 0
      %4228 = vperm.xlu0 %4227, %v4088
      %v4229 = vpop.permute.xlu0 %4228
      %4232 = vset.pattern.permute.xlu0 0
      %4233 = vperm.xlu0 %4232, %v4089
      %v4234 = vpop.permute.xlu0 %4233
      %4237 = vset.pattern.permute.xlu0 0
      %4238 = vperm.xlu0 %4237, %v4090
      %v4239 = vpop.permute.xlu0 %4238
      %4242 = vset.pattern.permute.xlu0 0
      %4243 = vperm.xlu0 %4242, %v4091
      %v4244 = vpop.permute.xlu0 %4243
      %4247 = vset.pattern.permute.xlu0 0
      %4248 = vperm.xlu0 %4247, %v4092
      %v4249 = vpop.permute.xlu0 %4248
      %4252 = vset.pattern.permute.xlu0 0
      %4253 = vperm.xlu0 %4252, %v4093
      %v4254 = vpop.permute.xlu0 %4253
      %4257 = vset.pattern.permute.xlu0 0
      %4258 = vperm.xlu0 %4257, %v4094
      %v4259 = vpop.permute.xlu0 %4258
      %4262 = vset.pattern.permute.xlu0 0
      %4263 = vperm.xlu0 %4262, %v4095
      %v4264 = vpop.permute.xlu0 %4263
      %4267 = vset.pattern.permute.xlu0 0
      %4268 = vperm.xlu0 %4267, %v4096
      %v4269 = vpop.permute.xlu0 %4268
      %4272 = vset.pattern.permute.xlu0 0
      %4273 = vperm.xlu0 %4272, %v4097
      %v4274 = vpop.permute.xlu0 %4273
      %4277 = vset.pattern.permute.xlu0 0
      %4278 = vperm.xlu0 %4277, %v4098
      %v4279 = vpop.permute.xlu0 %4278
      %4282 = vset.pattern.permute.xlu0 0
      %4283 = vperm.xlu0 %4282, %v4099
      %v4284 = vpop.permute.xlu0 %4283
      %4287 = vset.pattern.permute.xlu0 0
      %4288 = vperm.xlu0 %4287, %v4100
      %v4289 = vpop.permute.xlu0 %4288
      %4292 = vset.pattern.permute.xlu0 0
      %4293 = vperm.xlu0 %4292, %v4101
      %v4294 = vpop.permute.xlu0 %4293
      %4297 = vset.pattern.permute.xlu0 0
      %4298 = vperm.xlu0 %4297, %v4102
      %v4299 = vpop.permute.xlu0 %4298
      %4302 = vset.pattern.permute.xlu0 0
      %4303 = vperm.xlu0 %4302, %v4103
      %v4304 = vpop.permute.xlu0 %4303
      %4307 = vset.pattern.permute.xlu0 0
      %4308 = vperm.xlu0 %4307, %v4104
      %v4309 = vpop.permute.xlu0 %4308
      %4312 = vset.pattern.permute.xlu0 0
      %4313 = vperm.xlu0 %4312, %v4105
      %v4314 = vpop.permute.xlu0 %4313
      %4317 = vset.pattern.permute.xlu0 0
      %4318 = vperm.xlu0 %4317, %v4106
      %v4319 = vpop.permute.xlu0 %4318
      %4322 = vset.pattern.permute.xlu0 0
      %4323 = vperm.xlu0 %4322, %v4107
      %v4324 = vpop.permute.xlu0 %4323
      %4327 = vset.pattern.permute.xlu0 0
      %4328 = vperm.xlu0 %4327, %v4108
      %v4329 = vpop.permute.xlu0 %4328
      %4332 = vset.pattern.permute.xlu0 0
      %4333 = vperm.xlu0 %4332, %v4109
      %v4334 = vpop.permute.xlu0 %4333
      %4337 = vset.pattern.permute.xlu0 0
      %4338 = vperm.xlu0 %4337, %v4110
      %v4339 = vpop.permute.xlu0 %4338
      %4342 = vset.pattern.permute.xlu0 0
      %4343 = vperm.xlu0 %4342, %v4111
      %v4344 = vpop.permute.xlu0 %4343
      %4347 = vset.pattern.permute.xlu0 0
      %4348 = vperm.xlu0 %4347, %v4112
      %v4349 = vpop.permute.xlu0 %4348
      %4352 = vset.pattern.permute.xlu0 0
      %4353 = vperm.xlu0 %4352, %v4113
      %v4354 = vpop.permute.xlu0 %4353
      %4357 = vset.pattern.permute.xlu0 0
      %4358 = vperm.xlu0 %4357, %v4114
      %v4359 = vpop.permute.xlu0 %4358
      %4362 = vset.pattern.permute.xlu0 0
      %4363 = vperm.xlu0 %4362, %v4115
      %v4364 = vpop.permute.xlu0 %4363
      %4367 = vset.pattern.permute.xlu0 0
      %4368 = vperm.xlu0 %4367, %v4116
      %v4369 = vpop.permute.xlu0 %4368
      %4372 = vset.pattern.permute.xlu0 0
      %4373 = vperm.xlu0 %4372, %v4117
      %v4374 = vpop.permute.xlu0 %4373
      %4377 = vset.pattern.permute.xlu0 0
      %4378 = vperm.xlu0 %4377, %v4118
      %v4379 = vpop.permute.xlu0 %4378
      %4382 = vset.pattern.permute.xlu0 0
      %4383 = vperm.xlu0 %4382, %v4119
      %v4384 = vpop.permute.xlu0 %4383
      %4387 = vset.pattern.permute.xlu0 0
      %4388 = vperm.xlu0 %4387, %v4120
      %v4389 = vpop.permute.xlu0 %4388
      %v4391 = vadd.f32 %v3851, %v4124
      %v4392 = vadd.f32 %v3852, %v4124
      %v4393 = vadd.f32 %v3853, %v4129
      %v4394 = vadd.f32 %v3854, %v4129
      %v4395 = vadd.f32 %v3855, %v4134
      %v4396 = vadd.f32 %v3856, %v4134
      %v4397 = vadd.f32 %v3857, %v4139
      %v4398 = vadd.f32 %v3858, %v4139
      %v4399 = vadd.f32 %v3859, %v4144
      %v4400 = vadd.f32 %v3860, %v4144
      %v4401 = vadd.f32 %v3861, %v4149
      %v4402 = vadd.f32 %v3862, %v4149
      %v4403 = vadd.f32 %v3863, %v4154
      %v4404 = vadd.f32 %v3864, %v4154
      %v4405 = vadd.f32 %v3865, %v4159
      %v4406 = vadd.f32 %v3866, %v4159
      %v4407 = vadd.f32 %v3867, %v4164
      %v4408 = vadd.f32 %v3868, %v4164
      %v4409 = vadd.f32 %v3869, %v4169
      %v4410 = vadd.f32 %v3870, %v4169
      %v4411 = vadd.f32 %v3871, %v4174
      %v4412 = vadd.f32 %v3872, %v4174
      %v4413 = vadd.f32 %v3873, %v4179
      %v4414 = vadd.f32 %v3874, %v4179
      %v4415 = vadd.f32 %v3875, %v4184
      %v4416 = vadd.f32 %v3876, %v4184
      %v4417 = vadd.f32 %v3877, %v4189
      %v4418 = vadd.f32 %v3878, %v4189
      %v4419 = vadd.f32 %v3879, %v4194
      %v4420 = vadd.f32 %v3880, %v4194
      %v4421 = vadd.f32 %v3881, %v4199
      %v4422 = vadd.f32 %v3882, %v4199
      %v4423 = vadd.f32 %v3883, %v4204
      %v4424 = vadd.f32 %v3884, %v4204
      %v4425 = vadd.f32 %v3885, %v4209
      %v4426 = vadd.f32 %v3886, %v4209
      %v4427 = vadd.f32 %v3887, %v4214
      %v4428 = vadd.f32 %v3888, %v4214
      %v4429 = vadd.f32 %v3889, %v4219
      %v4430 = vadd.f32 %v3890, %v4219
      %v4431 = vadd.f32 %v3891, %v4224
      %v4432 = vadd.f32 %v3892, %v4224
      %v4433 = vadd.f32 %v3893, %v4229
      %v4434 = vadd.f32 %v3894, %v4229
      %v4435 = vadd.f32 %v3895, %v4234
      %v4436 = vadd.f32 %v3896, %v4234
      %v4437 = vadd.f32 %v3897, %v4239
      %v4438 = vadd.f32 %v3898, %v4239
      %v4439 = vadd.f32 %v3899, %v4244
      %v4440 = vadd.f32 %v3900, %v4244
      %v4441 = vadd.f32 %v3901, %v4249
      %v4442 = vadd.f32 %v3902, %v4249
      %v4443 = vadd.f32 %v3903, %v4254
      %v4444 = vadd.f32 %v3904, %v4254
      %v4445 = vadd.f32 %v3905, %v4259
      %v4446 = vadd.f32 %v3906, %v4259
      %v4447 = vadd.f32 %v3907, %v4264
      %v4448 = vadd.f32 %v3908, %v4264
      %v4449 = vadd.f32 %v3909, %v4269
      %v4450 = vadd.f32 %v3910, %v4269
      %v4451 = vadd.f32 %v3911, %v4274
      %v4452 = vadd.f32 %v3912, %v4274
      %v4453 = vadd.f32 %v3913, %v4279
      %v4454 = vadd.f32 %v3914, %v4279
      %v4455 = vadd.f32 %v3915, %v4284
      %v4456 = vadd.f32 %v3916, %v4284
      %v4457 = vadd.f32 %v3917, %v4289
      %v4458 = vadd.f32 %v3918, %v4289
      %v4459 = vadd.f32 %v3919, %v4294
      %v4460 = vadd.f32 %v3920, %v4294
      %v4461 = vadd.f32 %v3921, %v4299
      %v4462 = vadd.f32 %v3922, %v4299
      %v4463 = vadd.f32 %v3923, %v4304
      %v4464 = vadd.f32 %v3924, %v4304
      %v4465 = vadd.f32 %v3925, %v4309
      %v4466 = vadd.f32 %v3926, %v4309
      %v4467 = vadd.f32 %v3927, %v4314
      %v4468 = vadd.f32 %v3928, %v4314
      %v4469 = vadd.f32 %v3929, %v4319
      %v4470 = vadd.f32 %v3930, %v4319
      %v4471 = vadd.f32 %v3931, %v4324
      %v4472 = vadd.f32 %v3932, %v4324
      %v4473 = vadd.f32 %v3933, %v4329
      %v4474 = vadd.f32 %v3934, %v4329
      %v4475 = vadd.f32 %v3935, %v4334
      %v4476 = vadd.f32 %v3936, %v4334
      %v4477 = vadd.f32 %v3937, %v4339
      %v4478 = vadd.f32 %v3938, %v4339
      %v4479 = vadd.f32 %v3939, %v4344
      %v4480 = vadd.f32 %v3940, %v4344
      %v4481 = vadd.f32 %v3941, %v4349
      %v4482 = vadd.f32 %v3942, %v4349
      %v4483 = vadd.f32 %v3943, %v4354
      %v4484 = vadd.f32 %v3944, %v4354
      %v4485 = vadd.f32 %v3945, %v4359
      %v4486 = vadd.f32 %v3946, %v4359
      %v4487 = vadd.f32 %v3947, %v4364
      %v4488 = vadd.f32 %v3948, %v4364
      %v4489 = vadd.f32 %v3949, %v4369
      %v4490 = vadd.f32 %v3950, %v4369
      %v4491 = vadd.f32 %v3951, %v4374
      %v4492 = vadd.f32 %v3952, %v4374
      %v4493 = vadd.f32 %v3953, %v4379
      %v4494 = vadd.f32 %v3954, %v4379
      %v4495 = vadd.f32 %v3955, %v4384
      %v4496 = vadd.f32 %v3956, %v4384
      %v4497 = vadd.f32 %v3957, %v4389
      %v4498 = vadd.f32 %v3958, %v4389
      %4499 = vst [vmem:[%s356] sm:$0xff] %v4391
      %4500 = vst.msk [vmem:[%s356 + $0x8] sm:$0xff] %vm1335, %v4392
      %4501 = vst [vmem:[%s356 + $0x10] sm:$0xff] %v4393
      %4502 = vst.msk [vmem:[%s356 + $0x18] sm:$0xff] %vm1335, %v4394
      %4503 = vst [vmem:[%s356 + $0x20] sm:$0xff] %v4395
      %4504 = vst.msk [vmem:[%s356 + $0x28] sm:$0xff] %vm1335, %v4396
      %4505 = vst [vmem:[%s356 + $0x30] sm:$0xff] %v4397
      %4506 = vst.msk [vmem:[%s356 + $0x38] sm:$0xff] %vm1335, %v4398
      %4507 = vst [vmem:[%s356 + $0x40] sm:$0xff] %v4399
      %4508 = vst.msk [vmem:[%s356 + $0x48] sm:$0xff] %vm1335, %v4400
      %4509 = vst [vmem:[%s356 + $0x50] sm:$0xff] %v4401
      %4510 = vst.msk [vmem:[%s356 + $0x58] sm:$0xff] %vm1335, %v4402
      %4511 = vst [vmem:[%s356 + $0x60] sm:$0xff] %v4403
      %4512 = vst.msk [vmem:[%s356 + $0x68] sm:$0xff] %vm1335, %v4404
      %4513 = vst [vmem:[%s356 + $0x70] sm:$0xff] %v4405
      %4514 = vst.msk [vmem:[%s356 + $0x78] sm:$0xff] %vm1335, %v4406
      %4515 = vst [vmem:[%s356 + $0x80] sm:$0xff] %v4407
      %4516 = vst.msk [vmem:[%s356 + $0x88] sm:$0xff] %vm1335, %v4408
      %4517 = vst [vmem:[%s356 + $0x90] sm:$0xff] %v4409
      %4518 = vst.msk [vmem:[%s356 + $0x98] sm:$0xff] %vm1335, %v4410
      %4519 = vst [vmem:[%s356 + $0xa0] sm:$0xff] %v4411
      %4520 = vst.msk [vmem:[%s356 + $0xa8] sm:$0xff] %vm1335, %v4412
      %4521 = vst [vmem:[%s356 + $0xb0] sm:$0xff] %v4413
      %4522 = vst.msk [vmem:[%s356 + $0xb8] sm:$0xff] %vm1335, %v4414
      %4523 = vst [vmem:[%s356 + $0xc0] sm:$0xff] %v4415
      %4524 = vst.msk [vmem:[%s356 + $0xc8] sm:$0xff] %vm1335, %v4416
      %4525 = vst [vmem:[%s356 + $0xd0] sm:$0xff] %v4417
      %4526 = vst.msk [vmem:[%s356 + $0xd8] sm:$0xff] %vm1335, %v4418
      %4527 = vst [vmem:[%s356 + $0xe0] sm:$0xff] %v4419
      %4528 = vst.msk [vmem:[%s356 + $0xe8] sm:$0xff] %vm1335, %v4420
      %4529 = vst [vmem:[%s356 + $0xf0] sm:$0xff] %v4421
      %4530 = vst.msk [vmem:[%s356 + $0xf8] sm:$0xff] %vm1335, %v4422
      %4531 = vst [vmem:[%s356 + $0x100] sm:$0xff] %v4423
      %4532 = vst.msk [vmem:[%s356 + $0x108] sm:$0xff] %vm1335, %v4424
      %4533 = vst [vmem:[%s356 + $0x110] sm:$0xff] %v4425
      %4534 = vst.msk [vmem:[%s356 + $0x118] sm:$0xff] %vm1335, %v4426
      %4535 = vst [vmem:[%s356 + $0x120] sm:$0xff] %v4427
      %4536 = vst.msk [vmem:[%s356 + $0x128] sm:$0xff] %vm1335, %v4428
      %4537 = vst [vmem:[%s356 + $0x130] sm:$0xff] %v4429
      %4538 = vst.msk [vmem:[%s356 + $0x138] sm:$0xff] %vm1335, %v4430
      %4539 = vst [vmem:[%s356 + $0x140] sm:$0xff] %v4431
      %4540 = vst.msk [vmem:[%s356 + $0x148] sm:$0xff] %vm1335, %v4432
      %4541 = vst [vmem:[%s356 + $0x150] sm:$0xff] %v4433
      %4542 = vst.msk [vmem:[%s356 + $0x158] sm:$0xff] %vm1335, %v4434
      %4543 = vst [vmem:[%s356 + $0x160] sm:$0xff] %v4435
      %4544 = vst.msk [vmem:[%s356 + $0x168] sm:$0xff] %vm1335, %v4436
      %4545 = vst [vmem:[%s356 + $0x170] sm:$0xff] %v4437
      %4546 = vst.msk [vmem:[%s356 + $0x178] sm:$0xff] %vm1335, %v4438
      %4547 = vst [vmem:[%s356 + $0x180] sm:$0xff] %v4439
      %4548 = vst.msk [vmem:[%s356 + $0x188] sm:$0xff] %vm1335, %v4440
      %4549 = vst [vmem:[%s356 + $0x190] sm:$0xff] %v4441
      %4550 = vst.msk [vmem:[%s356 + $0x198] sm:$0xff] %vm1335, %v4442
      %4551 = vst [vmem:[%s356 + $0x1a0] sm:$0xff] %v4443
      %4552 = vst.msk [vmem:[%s356 + $0x1a8] sm:$0xff] %vm1335, %v4444
      %4553 = vst [vmem:[%s356 + $0x1b0] sm:$0xff] %v4445
      %4554 = vst.msk [vmem:[%s356 + $0x1b8] sm:$0xff] %vm1335, %v4446
      %4555 = vst [vmem:[%s356 + $0x1c0] sm:$0xff] %v4447
      %4556 = vst.msk [vmem:[%s356 + $0x1c8] sm:$0xff] %vm1335, %v4448
      %4557 = vst [vmem:[%s356 + $0x1d0] sm:$0xff] %v4449
      %4558 = vst.msk [vmem:[%s356 + $0x1d8] sm:$0xff] %vm1335, %v4450
      %4559 = vst [vmem:[%s356 + $0x1e0] sm:$0xff] %v4451
      %4560 = vst.msk [vmem:[%s356 + $0x1e8] sm:$0xff] %vm1335, %v4452
      %4561 = vst [vmem:[%s356 + $0x1f0] sm:$0xff] %v4453
      %4562 = vst.msk [vmem:[%s356 + $0x1f8] sm:$0xff] %vm1335, %v4454
      %4563 = vst [vmem:[%s356 + $0x200] sm:$0xff] %v4455
      %4564 = vst.msk [vmem:[%s356 + $0x208] sm:$0xff] %vm1335, %v4456
      %4565 = vst [vmem:[%s356 + $0x210] sm:$0xff] %v4457
      %4566 = vst.msk [vmem:[%s356 + $0x218] sm:$0xff] %vm1335, %v4458
      %4567 = vst [vmem:[%s356 + $0x220] sm:$0xff] %v4459
      %4568 = vst.msk [vmem:[%s356 + $0x228] sm:$0xff] %vm1335, %v4460
      %4569 = vst [vmem:[%s356 + $0x230] sm:$0xff] %v4461
      %4570 = vst.msk [vmem:[%s356 + $0x238] sm:$0xff] %vm1335, %v4462
      %4571 = vst [vmem:[%s356 + $0x240] sm:$0xff] %v4463
      %4572 = vst.msk [vmem:[%s356 + $0x248] sm:$0xff] %vm1335, %v4464
      %4573 = vst [vmem:[%s356 + $0x250] sm:$0xff] %v4465
      %4574 = vst.msk [vmem:[%s356 + $0x258] sm:$0xff] %vm1335, %v4466
      %4575 = vst [vmem:[%s356 + $0x260] sm:$0xff] %v4467
      %4576 = vst.msk [vmem:[%s356 + $0x268] sm:$0xff] %vm1335, %v4468
      %4577 = vst [vmem:[%s356 + $0x270] sm:$0xff] %v4469
      %4578 = vst.msk [vmem:[%s356 + $0x278] sm:$0xff] %vm1335, %v4470
      %4579 = vst [vmem:[%s356 + $0x280] sm:$0xff] %v4471
      %4580 = vst.msk [vmem:[%s356 + $0x288] sm:$0xff] %vm1335, %v4472
      %4581 = vst [vmem:[%s356 + $0x290] sm:$0xff] %v4473
      %4582 = vst.msk [vmem:[%s356 + $0x298] sm:$0xff] %vm1335, %v4474
      %4583 = vst [vmem:[%s356 + $0x2a0] sm:$0xff] %v4475
      %4584 = vst.msk [vmem:[%s356 + $0x2a8] sm:$0xff] %vm1335, %v4476
      %4585 = vst [vmem:[%s356 + $0x2b0] sm:$0xff] %v4477
      %4586 = vst.msk [vmem:[%s356 + $0x2b8] sm:$0xff] %vm1335, %v4478
      %4587 = vst [vmem:[%s356 + $0x2c0] sm:$0xff] %v4479
      %4588 = vst.msk [vmem:[%s356 + $0x2c8] sm:$0xff] %vm1335, %v4480
      %4589 = vst [vmem:[%s356 + $0x2d0] sm:$0xff] %v4481
      %4590 = vst.msk [vmem:[%s356 + $0x2d8] sm:$0xff] %vm1335, %v4482
      %4591 = vst [vmem:[%s356 + $0x2e0] sm:$0xff] %v4483
      %4592 = vst.msk [vmem:[%s356 + $0x2e8] sm:$0xff] %vm1335, %v4484
      %4593 = vst [vmem:[%s356 + $0x2f0] sm:$0xff] %v4485
      %4594 = vst.msk [vmem:[%s356 + $0x2f8] sm:$0xff] %vm1335, %v4486
      %4595 = vst [vmem:[%s356 + $0x300] sm:$0xff] %v4487
      %4596 = vst.msk [vmem:[%s356 + $0x308] sm:$0xff] %vm1335, %v4488
      %4597 = vst [vmem:[%s356 + $0x310] sm:$0xff] %v4489
      %4598 = vst.msk [vmem:[%s356 + $0x318] sm:$0xff] %vm1335, %v4490
      %4599 = vst [vmem:[%s356 + $0x320] sm:$0xff] %v4491
      %4600 = vst.msk [vmem:[%s356 + $0x328] sm:$0xff] %vm1335, %v4492
      %4601 = vst [vmem:[%s356 + $0x330] sm:$0xff] %v4493
      %4602 = vst.msk [vmem:[%s356 + $0x338] sm:$0xff] %vm1335, %v4494
      %4603 = vst [vmem:[%s356 + $0x340] sm:$0xff] %v4495
      %4604 = vst.msk [vmem:[%s356 + $0x348] sm:$0xff] %vm1335, %v4496
      %4605 = vst [vmem:[%s356 + $0x350] sm:$0xff] %v4497
      %4606 = vst.msk [vmem:[%s356 + $0x358] sm:$0xff] %vm1335, %v4498
      %s4607 = smul.u32 54, %s19
      %p4608 = scmp.lt.s32.totalorder %s4607, 107
      %s4609 = scalar_select %p4608, %s4607, 107
      %s4610 = smul.addr %s4609, 2
      %s4611 = smul.addr %s4610, 8
      %s4612 = scalar_lea.vmem %s8, %s4611
      // Predicated region
      $region53: #{tpu_custom_call.1} parent=51 // pred_check
        %p4613 = pneg %p220
      $region54: #{tpu_custom_call.1} parent=51 // pred_check_branch
        %4615 = sbr.rel (%p4613) target = $region56
      $region55: #{tpu_custom_call.1} parent=51 // pred_region
        %s4616 = smul.u32 54, %s19
      $region56: #{tpu_custom_call.1} parent=51 // pred_fallthru
        _
    $region52: #{tpu_custom_call.1} parent=5 // pred_fallthru
      _
    %p4617 = scmp.le.s32.totalorder 2, %s14
    // Predicated region
    $region57: #{tpu_custom_call.1} parent=5 // pred_check
      %p4618 = pneg %p4617
    $region58: #{tpu_custom_call.1} parent=5 // pred_check_branch
      %4620 = sbr.rel (%p4618) target = $region60
    $region59: #{tpu_custom_call.1} parent=5 // pred_region
      %s4621 = ssub.s32 %s14, 2
      // Predicated region
      $region61: #{tpu_custom_call.1} parent=59 // pred_check
        %p4622 = pneg %p226
      $region62: #{tpu_custom_call.1} parent=59 // pred_check_branch
        %4624 = sbr.rel (%p4622) target = $region64
      $region63: #{tpu_custom_call.1} parent=59 // pred_region
        %s4625 = smul.u32 54, %s20
        %p4626 = scmp.lt.s32.totalorder %s4625, 107
        %s4627 = scalar_select %p4626, %s4625, 107
        %s4628 = smul.addr %s4627, 2
        %s4629 = smul.addr %s4628, 8
        %s4630 = scalar_lea.vmem %s8, %s4629
      $region64: #{tpu_custom_call.1} parent=59 // pred_fallthru
        _
    $region60: #{tpu_custom_call.1} parent=5 // pred_fallthru
      _
  $region6: #{tpu_custom_call.1} parent=0 // loop_footer
    %s18 = sadd.s32 1, %s14
  $region7: #{tpu_custom_call.1} parent=0 // loop_footer_branch
    %13 = sbr.rel target = $region3
  $region8: #{tpu_custom_call.1} parent=0 // loop_exit
    _

</llo_original>
